<compile_context>
chip_gen: v7x
topology: tpu7x:2x2x1
jax: 0.10.0
libtpu: 0.0.40
codegen_flags: <defaults>
</compile_context>

<pallas_src>
import functools

import jax
import jax.numpy as jnp
import numpy as np
from jax.experimental import pallas as pl
from jax.experimental.pallas import tpu as pltpu


# -----------------------------------------------------------------------------
# Kernel
# -----------------------------------------------------------------------------
def _conv3x3_fused(a, w_ref, mask_dn, mask_up):
    """3x3 'same' conv on a lane-dense (M, W*C) f32 slab as ONE MXU matmul.

    a       : (M, WC) f32 activations, M = Nb*H rows of Nb vertically stacked images.
    w_ref   : (3*WC, WC) bf16 fused block-tridiagonal weights (kh stacked along K;
              kw taps and horizontal zero padding folded into the contraction).
    mask_*  : (M, 1) bool, False on image-boundary rows (implements vertical zero padding).

    Vertical taps use XLU sublane rolls (free slot while the MXU is busy); a single
    accumulation chain per conv avoids 3x MXU start/drain overhead at small M.
    """
    M, WC = a.shape
    a_dn = jnp.where(mask_dn, pltpu.roll(a, shift=1, axis=0), 0.0)       # row r sees a[r-1]
    a_up = jnp.where(mask_up, pltpu.roll(a, shift=M - 1, axis=0), 0.0)   # row r sees a[r+1]
    a3 = jnp.concatenate([a_dn, a, a_up], axis=1).astype(jnp.bfloat16)   # (M, 3*WC) bf16
    return jnp.dot(a3, w_ref[...], preferred_element_type=jnp.float32)   # (M, WC) f32


def resblock_kernel(x_ref, w1_ref, s1_ref, b1_ref, w2_ref, s2_ref, b2_ref, o_ref):
    # x_ref : (Nb, H, W*C) f32   lane-dense input block (also the exact f32 residual)
    # w*_ref: (3*W*C, W*C) bf16  fused banded conv weights (HWIO folded)
    # s*/b* : (1, W*C) f32       folded BN (+conv bias) affine, tiled to the lane layout
    # o_ref : (Nb, H, W*C) f32
    nb, h, wc = x_ref.shape
    m = nb * h
    x = x_ref[...].reshape(m, wc)                    # f32, kept exact for the residual add

    # Image-boundary row masks (vertical zero padding for the stacked-images M dimension).
    row = jax.lax.broadcasted_iota(jnp.int32, (m, 1), 0)
    rmod = jax.lax.rem(row, h)
    mask_dn = rmod != 0
    mask_up = rmod != (h - 1)

    # ---- conv1 + BN1 (folded affine) + ReLU ----
    h1 = _conv3x3_fused(x, w1_ref, mask_dn, mask_up)
    h1 = jnp.maximum(h1 * s1_ref[...] + b1_ref[...], 0.0)

    # ---- conv2 + BN2 ----
    h2 = _conv3x3_fused(h1, w2_ref, mask_dn, mask_up)
    h2 = h2 * s2_ref[...] + b2_ref[...]

    # residual add (exact f32 input) + final ReLU; lane-dense (512-lane) store.
    o_ref[...] = jnp.maximum(h2 + x, 0.0).reshape(nb, h, wc)


# -----------------------------------------------------------------------------
# One-time parameter prep (host side, NOT jitted)
# -----------------------------------------------------------------------------
def _banded_weights_fused(w_hwio, W):
    """(3,3,C,C) HWIO -> (3*W*C, W*C) bf16 fused block-tridiagonal weights.

    Output column block wo receives input column block wi = wo + (kw-1) with weight
    w[kh, kw]; out-of-range wi are omitted (horizontal zero padding).  The 3 per-kh
    matrices are stacked along rows so one matmul covers the full 3x3 contraction.
    """
    w = np.asarray(jax.device_get(w_hwio), dtype=np.float32)
    C = w.shape[2]
    WC = W * C
    bw = np.zeros((3, WC, WC), np.float32)
    for kh in range(3):
        for kw in range(3):
            dw = kw - 1
            for wo in range(W):
                wi = wo + dw
                if 0 <= wi < W:
                    bw[kh, wi * C:(wi + 1) * C, wo * C:(wo + 1) * C] = w[kh, kw]
    return jnp.asarray(bw.reshape(3 * WC, WC), dtype=jnp.bfloat16)


def prepare_resblock_params(folded, W):
    """Build banded weights + lane-tiled affines ONCE (avoids per-call host loops/uploads)."""
    w1, s1, b1, w2, s2, b2 = folded
    C = int(s1.shape[0])
    WC = W * C
    return (
        _banded_weights_fused(w1, W),
        jnp.tile(s1, W).reshape(1, WC),
        jnp.tile(b1, W).reshape(1, WC),
        _banded_weights_fused(w2, W),
        jnp.tile(s2, W).reshape(1, WC),
        jnp.tile(b2, W).reshape(1, WC),
    )


# -----------------------------------------------------------------------------
# Forward wrappers (jitted)
# -----------------------------------------------------------------------------
def _pick_nb(N, H, target_rows=256):
    """Images per grid step: grow matmul M toward the MXU height, keep >=2 steps for v7x."""
    nb = max(1, min(N, target_rows // max(H, 1)))
    nb = min(nb, max(1, N // 2))      # >= 2 "parallel" grid steps when N >= 2 (v7x: 2 TCs)
    while N % nb:
        nb -= 1
    return nb


@jax.jit
def resblock_lane_dense(x_flat, bw1, s1t, b1t, bw2, s2t, b2t):
    """Forward on lane-dense activations (N, H, W*C) -> (N, H, W*C).

    Keep activations in this layout when chaining ResBlocks; only convert NCHW at
    network entry/exit.
    """
    N, H, WC = x_flat.shape
    nb = _pick_nb(N, H)
    blk = (nb, H, WC)
    wshape = bw1.shape                                   # (3*WC, WC)
    wspec = pl.BlockSpec(wshape, lambda n: (0, 0))       # grid-invariant weights
    vspec = pl.BlockSpec((1, WC), lambda n: (0, 0))      # grid-invariant affines

    return pl.pallas_call(
        resblock_kernel,
        out_shape=jax.ShapeDtypeStruct((N, H, WC), jnp.float32),
        grid_spec=pltpu.PrefetchScalarGridSpec(
            num_scalar_prefetch=0,
            grid=(N // nb,),
            in_specs=[
                pl.BlockSpec(blk, lambda n: (n, 0, 0)),  # x (lane-dense, Nb images/step)
                wspec, vspec, vspec,                     # fused banded conv1 + BN1 affine
                wspec, vspec, vspec,                     # fused banded conv2 + BN2 affine
            ],
            out_specs=pl.BlockSpec(blk, lambda n: (n, 0, 0)),
        ),
        compiler_params=pltpu.CompilerParams(
            dimension_semantics=("parallel",),           # batch axis -> 2 TCs on v7x
            vmem_limit_bytes=32 * 1024 * 1024,           # headroom for v5e's 16 MiB default
        ),
    )(x_flat, bw1, s1t, b1t, bw2, s2t, b2t)


@jax.jit
def resblock_forward_nchw(x_nchw, bw1, s1t, b1t, bw2, s2t, b2t):
    """x_nchw: (N, C, H, W) float32 (PyTorch layout). Returns (N, C, H, W)."""
    N, C, H, W = x_nchw.shape
    x_flat = jnp.transpose(x_nchw, (0, 2, 3, 1)).reshape(N, H, W * C)
    out_flat = resblock_lane_dense(x_flat, bw1, s1t, b1t, bw2, s2t, b2t)
    return jnp.transpose(out_flat.reshape(N, H, W, C), (0, 3, 1, 2))


# -----------------------------------------------------------------------------
# Synthetic parameters + pure-JAX reference
# -----------------------------------------------------------------------------
def init_params(key, C, eps=1e-5):
    """Deterministic synthetic parameters mimicking ResBlock(num_hidden=C)."""
    ks = jax.random.split(key, 12)
    raw = {
        # nn.Conv2d weights in OIHW, bias (C,)
        "w1": 0.05 * jax.random.normal(ks[0], (C, C, 3, 3), jnp.float32),
        "cb1": 0.05 * jax.random.normal(ks[1], (C,), jnp.float32),
        "w2": 0.05 * jax.random.normal(ks[2], (C, C, 3, 3), jnp.float32),
        "cb2": 0.05 * jax.random.normal(ks[3], (C,), jnp.float32),
        # BatchNorm2d params + running stats (eval mode)
        "g1": 1.0 + 0.1 * jax.random.normal(ks[4], (C,), jnp.float32),
        "be1": 0.1 * jax.random.normal(ks[5], (C,), jnp.float32),
        "rm1": 0.1 * jax.random.normal(ks[6], (C,), jnp.float32),
        "rv1": 0.5 + jnp.abs(jax.random.normal(ks[7], (C,), jnp.float32)),
        "g2": 1.0 + 0.1 * jax.random.normal(ks[8], (C,), jnp.float32),
        "be2": 0.1 * jax.random.normal(ks[9], (C,), jnp.float32),
        "rm2": 0.1 * jax.random.normal(ks[10], (C,), jnp.float32),
        "rv2": 0.5 + jnp.abs(jax.random.normal(ks[11], (C,), jnp.float32)),
        "eps": eps,
    }

    def fold(w_oihw, cb, g, be, rm, rv):
        scale = g / jnp.sqrt(rv + eps)                      # (C,)
        bias = (cb - rm) * scale + be                       # conv bias folded in
        w_hwio = jnp.transpose(w_oihw, (2, 3, 1, 0))        # OIHW -> HWIO
        return w_hwio, scale, bias

    w1, s1, b1 = fold(raw["w1"], raw["cb1"], raw["g1"], raw["be1"], raw["rm1"], raw["rv1"])
    w2, s2, b2 = fold(raw["w2"], raw["cb2"], raw["g2"], raw["be2"], raw["rm2"], raw["rv2"])
    return raw, (w1, s1, b1, w2, s2, b2)


def ref_forward(x, p):
    """Pure-JAX reference matching the PyTorch forward (BN in eval mode)."""
    def conv(x, w, b):
        y = jax.lax.conv_general_dilated(
            x, w, window_strides=(1, 1), padding=((1, 1), (1, 1)),
            dimension_numbers=("NCHW", "OIHW", "NCHW"),
            precision=jax.lax.Precision.HIGHEST)
        return y + b[None, :, None, None]

    def bn(x, g, be, rm, rv):
        inv = g / jnp.sqrt(rv + p["eps"])
        return (x - rm[None, :, None, None]) * inv[None, :, None, None] \
            + be[None, :, None, None]

    h = jax.nn.relu(bn(conv(x, p["w1"], p["cb1"]), p["g1"], p["be1"], p["rm1"], p["rv1"]))
    h = bn(conv(h, p["w2"], p["cb2"]), p["g2"], p["be2"], p["rm2"], p["rv2"])
    return jax.nn.relu(h + x)


if __name__ == "__main__":
    N, C, H, W = 2, 32, 16, 16
    key = jax.random.PRNGKey(0)
    kx, kp = jax.random.split(key)
    x = jax.random.normal(kx, (N, C, H, W), jnp.float32)
    raw, folded = init_params(kp, C)

    # One-time parameter prep (banded weights + lane-tiled affines), then jitted forward.
    prepped = prepare_resblock_params(folded, W)
    out = resblock_forward_nchw(x, *prepped)
    out = jax.block_until_ready(out)

    ref = ref_forward(x, raw)
    # bf16 MXU operands (accumulation, BN affine and residual stay f32) -> looser tolerance
    # than a pure-f32 implementation.
    np.testing.assert_allclose(np.asarray(out), np.asarray(ref), rtol=2e-2, atol=5e-2)
    print("KERNEL_OK")
</pallas_src>

<mosaic_0001>
module attributes {stable_mosaic.version = 11 : i64} {
  func.func @resblock_kernel(%arg0: i32, %arg1: memref<1x16x512xf32, #tpu.memory_space<vmem>>, %arg2: memref<1536x512xbf16, #tpu.memory_space<vmem>>, %arg3: memref<1x512xf32, #tpu.memory_space<vmem>>, %arg4: memref<1x512xf32, #tpu.memory_space<vmem>>, %arg5: memref<1536x512xbf16, #tpu.memory_space<vmem>>, %arg6: memref<1x512xf32, #tpu.memory_space<vmem>>, %arg7: memref<1x512xf32, #tpu.memory_space<vmem>>, %arg8: memref<1x16x512xf32, #tpu.memory_space<vmem>>) attributes {dimension_semantics = [#tpu.dimension_semantics<parallel>], iteration_bounds = array<i64: 2>, scalar_prefetch = 0 : i64, scratch_operands = 0 : i64, tpu.core_type = #tpu.core_type<tc>, window_params = [{transform_indices = @transform_0, window_bounds = array<i64: 1, 16, 512>}, {pipeline_mode = #tpu.pipeline_mode<synchronous>, transform_indices = @transform_1, window_bounds = array<i64: 1536, 512>}, {pipeline_mode = #tpu.pipeline_mode<synchronous>, transform_indices = @transform_2, window_bounds = array<i64: 1, 512>}, {pipeline_mode = #tpu.pipeline_mode<synchronous>, transform_indices = @transform_3, window_bounds = array<i64: 1, 512>}, {pipeline_mode = #tpu.pipeline_mode<synchronous>, transform_indices = @transform_4, window_bounds = array<i64: 1536, 512>}, {pipeline_mode = #tpu.pipeline_mode<synchronous>, transform_indices = @transform_5, window_bounds = array<i64: 1, 512>}, {pipeline_mode = #tpu.pipeline_mode<synchronous>, transform_indices = @transform_6, window_bounds = array<i64: 1, 512>}, {transform_indices = @transform_7, window_bounds = array<i64: 1, 16, 512>}]} {
    %c0 = arith.constant 0 : index
    %c0_0 = arith.constant 0 : index
    %c0_1 = arith.constant 0 : index
    %0 = vector.load %arg1[%c0, %c0_0, %c0_1] : memref<1x16x512xf32, #tpu.memory_space<vmem>>, vector<1x16x512xf32>
    %1 = vector.shape_cast %0 : vector<1x16x512xf32> to vector<16x512xf32>
    %2 = tpu.iota {dimensions = array<i32: 0>} : vector<16x1xi32>
    %c16_i32 = arith.constant 16 : i32
    %3 = vector.broadcast %c16_i32 : i32 to vector<16x1xi32>
    %4 = arith.remsi %2, %3 : vector<16x1xi32>
    %c0_i32 = arith.constant 0 : i32
    %5 = vector.broadcast %c0_i32 : i32 to vector<16x1xi32>
    %6 = arith.cmpi ne, %4, %5 : vector<16x1xi32>
    %c15_i32 = arith.constant 15 : i32
    %7 = vector.broadcast %c15_i32 : i32 to vector<16x1xi32>
    %8 = arith.cmpi ne, %4, %7 : vector<16x1xi32>
    %c1_i32 = arith.constant 1 : i32
    %9 = tpu.dynamic_rotate %1 by %c1_i32 dim 0 : vector<16x512xf32>, i32 -> vector<16x512xf32>
    %cst = arith.constant 0.000000e+00 : f32
    %10 = vector.shape_cast %6 : vector<16x1xi1> to vector<16x1xi1>
    %11 = vector.broadcast %10 : vector<16x1xi1> to vector<16x512xi1>
    %12 = vector.broadcast %cst : f32 to vector<16x512xf32>
    %13 = arith.select %11, %9, %12 : vector<16x512xi1>, vector<16x512xf32>
    %c15_i32_2 = arith.constant 15 : i32
    %14 = tpu.dynamic_rotate %1 by %c15_i32_2 dim 0 : vector<16x512xf32>, i32 -> vector<16x512xf32>
    %cst_3 = arith.constant 0.000000e+00 : f32
    %15 = vector.shape_cast %8 : vector<16x1xi1> to vector<16x1xi1>
    %16 = vector.broadcast %15 : vector<16x1xi1> to vector<16x512xi1>
    %17 = vector.broadcast %cst_3 : f32 to vector<16x512xf32>
    %18 = arith.select %16, %14, %17 : vector<16x512xi1>, vector<16x512xf32>
    %19 = tpu.concatenate %13, %1, %18 in 1 : vector<16x512xf32>, vector<16x512xf32>, vector<16x512xf32> -> vector<16x1536xf32>
    %20 = arith.truncf %19 : vector<16x1536xf32> to vector<16x1536xbf16>
    %c0_4 = arith.constant 0 : index
    %c0_5 = arith.constant 0 : index
    %21 = vector.load %arg2[%c0_4, %c0_5] : memref<1536x512xbf16, #tpu.memory_space<vmem>>, vector<1536x512xbf16>
    %cst_6 = arith.constant dense<0.000000e+00> : vector<16x512xf32>
    %22 = tpu.matmul %20, %21, %cst_6 {dimension_numbers = #tpu.dot_dimension_numbers<[1], [0], [0], [1], [0, 0, 1, 1], [], []>} : vector<16x1536xbf16>, vector<1536x512xbf16>, vector<16x512xf32> -> vector<16x512xf32>
    %c0_7 = arith.constant 0 : index
    %c0_8 = arith.constant 0 : index
    %23 = vector.load %arg3[%c0_7, %c0_8] : memref<1x512xf32, #tpu.memory_space<vmem>>, vector<1x512xf32>
    %24 = vector.broadcast %23 : vector<1x512xf32> to vector<16x512xf32>
    %25 = arith.mulf %22, %24 : vector<16x512xf32>
    %c0_9 = arith.constant 0 : index
    %c0_10 = arith.constant 0 : index
    %26 = vector.load %arg4[%c0_9, %c0_10] : memref<1x512xf32, #tpu.memory_space<vmem>>, vector<1x512xf32>
    %27 = vector.broadcast %26 : vector<1x512xf32> to vector<16x512xf32>
    %28 = arith.addf %25, %27 : vector<16x512xf32>
    %cst_11 = arith.constant 0.000000e+00 : f32
    %29 = vector.broadcast %cst_11 : f32 to vector<16x512xf32>
    %30 = arith.maximumf %28, %29 : vector<16x512xf32>
    %c1_i32_12 = arith.constant 1 : i32
    %31 = tpu.dynamic_rotate %30 by %c1_i32_12 dim 0 : vector<16x512xf32>, i32 -> vector<16x512xf32>
    %cst_13 = arith.constant 0.000000e+00 : f32
    %32 = vector.shape_cast %6 : vector<16x1xi1> to vector<16x1xi1>
    %33 = vector.broadcast %32 : vector<16x1xi1> to vector<16x512xi1>
    %34 = vector.broadcast %cst_13 : f32 to vector<16x512xf32>
    %35 = arith.select %33, %31, %34 : vector<16x512xi1>, vector<16x512xf32>
    %c15_i32_14 = arith.constant 15 : i32
    %36 = tpu.dynamic_rotate %30 by %c15_i32_14 dim 0 : vector<16x512xf32>, i32 -> vector<16x512xf32>
    %cst_15 = arith.constant 0.000000e+00 : f32
    %37 = vector.shape_cast %8 : vector<16x1xi1> to vector<16x1xi1>
    %38 = vector.broadcast %37 : vector<16x1xi1> to vector<16x512xi1>
    %39 = vector.broadcast %cst_15 : f32 to vector<16x512xf32>
    %40 = arith.select %38, %36, %39 : vector<16x512xi1>, vector<16x512xf32>
    %41 = tpu.concatenate %35, %30, %40 in 1 : vector<16x512xf32>, vector<16x512xf32>, vector<16x512xf32> -> vector<16x1536xf32>
    %42 = arith.truncf %41 : vector<16x1536xf32> to vector<16x1536xbf16>
    %c0_16 = arith.constant 0 : index
    %c0_17 = arith.constant 0 : index
    %43 = vector.load %arg5[%c0_16, %c0_17] : memref<1536x512xbf16, #tpu.memory_space<vmem>>, vector<1536x512xbf16>
    %cst_18 = arith.constant dense<0.000000e+00> : vector<16x512xf32>
    %44 = tpu.matmul %42, %43, %cst_18 {dimension_numbers = #tpu.dot_dimension_numbers<[1], [0], [0], [1], [0, 0, 1, 1], [], []>} : vector<16x1536xbf16>, vector<1536x512xbf16>, vector<16x512xf32> -> vector<16x512xf32>
    %c0_19 = arith.constant 0 : index
    %c0_20 = arith.constant 0 : index
    %45 = vector.load %arg6[%c0_19, %c0_20] : memref<1x512xf32, #tpu.memory_space<vmem>>, vector<1x512xf32>
    %46 = vector.broadcast %45 : vector<1x512xf32> to vector<16x512xf32>
    %47 = arith.mulf %44, %46 : vector<16x512xf32>
    %c0_21 = arith.constant 0 : index
    %c0_22 = arith.constant 0 : index
    %48 = vector.load %arg7[%c0_21, %c0_22] : memref<1x512xf32, #tpu.memory_space<vmem>>, vector<1x512xf32>
    %49 = vector.broadcast %48 : vector<1x512xf32> to vector<16x512xf32>
    %50 = arith.addf %47, %49 : vector<16x512xf32>
    %51 = arith.addf %50, %1 : vector<16x512xf32>
    %cst_23 = arith.constant 0.000000e+00 : f32
    %52 = vector.broadcast %cst_23 : f32 to vector<16x512xf32>
    %53 = arith.maximumf %51, %52 : vector<16x512xf32>
    %54 = vector.shape_cast %53 : vector<16x512xf32> to vector<1x16x512xf32>
    %c0_24 = arith.constant 0 : index
    %c0_25 = arith.constant 0 : index
    %c0_26 = arith.constant 0 : index
    %55 = vector.load %arg8[%c0_24, %c0_25, %c0_26] : memref<1x16x512xf32, #tpu.memory_space<vmem>>, vector<1x16x512xf32>
    tpu.vector_store %arg8[%c0_24, %c0_25, %c0_26], %54 {strides = array<i32>} : memref<1x16x512xf32, #tpu.memory_space<vmem>>, vector<1x16x512xf32>,
    return
  }
  func.func @transform_0(%arg0: i32) -> (i32, i32, i32) {
    %c0_i32 = arith.constant 0 : i32
    %c0_i32_0 = arith.constant 0 : i32
    %c0_i32_1 = arith.constant 0 : i32
    return %arg0, %c0_i32, %c0_i32_0 : i32, i32, i32
  }
  func.func @transform_1(%arg0: i32) -> (i32, i32) {
    %c0_i32 = arith.constant 0 : i32
    %c0_i32_0 = arith.constant 0 : i32
    %c0_i32_1 = arith.constant 0 : i32
    return %c0_i32, %c0_i32_0 : i32, i32
  }
  func.func @transform_2(%arg0: i32) -> (i32, i32) {
    %c0_i32 = arith.constant 0 : i32
    %c0_i32_0 = arith.constant 0 : i32
    %c0_i32_1 = arith.constant 0 : i32
    return %c0_i32, %c0_i32_0 : i32, i32
  }
  func.func @transform_3(%arg0: i32) -> (i32, i32) {
    %c0_i32 = arith.constant 0 : i32
    %c0_i32_0 = arith.constant 0 : i32
    %c0_i32_1 = arith.constant 0 : i32
    return %c0_i32, %c0_i32_0 : i32, i32
  }
  func.func @transform_4(%arg0: i32) -> (i32, i32) {
    %c0_i32 = arith.constant 0 : i32
    %c0_i32_0 = arith.constant 0 : i32
    %c0_i32_1 = arith.constant 0 : i32
    return %c0_i32, %c0_i32_0 : i32, i32
  }
  func.func @transform_5(%arg0: i32) -> (i32, i32) {
    %c0_i32 = arith.constant 0 : i32
    %c0_i32_0 = arith.constant 0 : i32
    %c0_i32_1 = arith.constant 0 : i32
    return %c0_i32, %c0_i32_0 : i32, i32
  }
  func.func @transform_6(%arg0: i32) -> (i32, i32) {
    %c0_i32 = arith.constant 0 : i32
    %c0_i32_0 = arith.constant 0 : i32
    %c0_i32_1 = arith.constant 0 : i32
    return %c0_i32, %c0_i32_0 : i32, i32
  }
  func.func @transform_7(%arg0: i32) -> (i32, i32, i32) {
    %c0_i32 = arith.constant 0 : i32
    %c0_i32_0 = arith.constant 0 : i32
    %c0_i32_1 = arith.constant 0 : i32
    return %arg0, %c0_i32, %c0_i32_0 : i32, i32, i32
  }
}

</mosaic_0001>

<llo_original>
// kernel: resblock_lane_dense.1
$region0: #{resblock_lane_dense.1}
  #allocation0 [shape = 'u32[]', space=smem, size = 0x4, offset = 0x4, fixed_abs, tag = 'smem constant byte address 0x4 - core index']
  #allocation1 [shape = 'u32[144,128]{1,0:T(1,128)}', space=vmem, size = 0x12000, scoped, tag = 'internal scratch']
  %s0 = inlined_call_operand.hbm [shape: f32[2,16,512], index: 0, kind: input, shape index: {}]
  %s1 = inlined_call_operand.hbm [shape: bf16[1536,512], index: 1, kind: input, shape index: {}]
  %s2 = inlined_call_operand.hbm [shape: f32[1,512], index: 2, kind: input, shape index: {}]
  %s3 = inlined_call_operand.hbm [shape: f32[1,512], index: 3, kind: input, shape index: {}]
  %s4 = inlined_call_operand.hbm [shape: bf16[1536,512], index: 4, kind: input, shape index: {}]
  %s5 = inlined_call_operand.hbm [shape: f32[1,512], index: 5, kind: input, shape index: {}]
  %s6 = inlined_call_operand.hbm [shape: f32[1,512], index: 6, kind: input, shape index: {}]
  %s7 = inlined_call_operand.hbm [shape: f32[2,16,512], index: 7, kind: output, shape index: {}]
  %s8 = sld [smem:[#allocation0]]
  $region89: #{resblock_lane_dense.1} parent=0
    _
  %s10 = ssub.s32 1, %s8
  %s11 = scalar_select 0, %s10, %s8
  $region1: #{resblock_lane_dense.1} parent=0
    #allocation2 [shape = 'u8[65536]{0}', space=vmem, size = 0x10000, scoped, tag = 'input window, operand 0']
    #allocation3 [shape = 's32[2]{0}', space=sflag, size = 0x8, scoped, tag = 'scoped memory for resblock_lane_dense.1']
    #allocation4 [shape = 's32[2]{0}', space=sflag, size = 0x8, scoped, tag = 'scoped memory for resblock_lane_dense.1']
    #allocation5 [shape = 'u8[1572864]{0}', space=vmem, size = 0x180000, scoped, tag = 'input window, operand 1, single buffered']
    #allocation6 [shape = 's32[1]{0}', space=sflag, size = 0x4, scoped, tag = 'scoped memory for resblock_lane_dense.1']
    #allocation7 [shape = 'u8[2048]{0}', space=vmem, size = 0x800, scoped, tag = 'input window, operand 2, single buffered']
    #allocation8 [shape = 'u8[2048]{0}', space=vmem, size = 0x800, scoped, tag = 'input window, operand 3, single buffered']
    #allocation9 [shape = 's32[1]{0}', space=sflag, size = 0x4, scoped, tag = 'scoped memory for resblock_lane_dense.1']
    #allocation10 [shape = 'u8[1572864]{0}', space=vmem, size = 0x180000, scoped, tag = 'input window, operand 4, single buffered']
    #allocation11 [shape = 'u8[2048]{0}', space=vmem, size = 0x800, scoped, tag = 'input window, operand 5, single buffered']
    #allocation12 [shape = 's32[1]{0}', space=sflag, size = 0x4, scoped, tag = 'scoped memory for resblock_lane_dense.1']
    #allocation13 [shape = 'u8[2048]{0}', space=vmem, size = 0x800, scoped, tag = 'input window, operand 6, single buffered']
    #allocation14 [shape = 'u8[65536]{0}', space=vmem, size = 0x10000, scoped, tag = 'output window, operand 0']
    %12 = vsyncpa [#allocation3], 0
    %s13 = scalar_lea.sflag [#allocation3], 1
    %14 = vsyncpa %s13, 0
    %15 = vsyncpa [#allocation6], 0
    %16 = vsyncpa [#allocation9], 0
    %17 = vsyncpa [#allocation12], 0
    %18 = vsyncpa [#allocation4], 0
    %s19 = scalar_lea.sflag [#allocation4], 1
    %20 = vsyncpa %s19, 0
    loop: start=0, step=1, limit=4
    $region2: #{resblock_lane_dense.1} parent=1 // loop_pre_header
      _
    $region3: #{resblock_lane_dense.1} parent=1 // loop_header
      %s22 = sphi 0, %s26
      %p23 = scmp.ge.s32.totalorder %s22, 4
      %s32 = sphi 0, %s34
      %s35 = sphi 0, %s32
      %s36 = sphi 0, %s35
      %s52 = sphi 0, %s36
      %s56 = sphi 0, %s56
      %s58 = sphi 0, %s56
      %s59 = sphi 0, %s58
      %s73 = sphi 0, %s59
      %s77 = sphi 0, %s77
      %s79 = sphi 0, %s77
      %s80 = sphi 0, %s79
      %s94 = sphi 0, %s80
      %s98 = sphi 0, %s98
      %s100 = sphi 0, %s98
      %s101 = sphi 0, %s100
      %s115 = sphi 0, %s101
      %s119 = sphi 0, %s119
      %s121 = sphi 0, %s119
      %s122 = sphi 0, %s121
      %s136 = sphi 0, %s122
      %s140 = sphi 0, %s140
      %s142 = sphi 0, %s140
      %s143 = sphi 0, %s142
      %s157 = sphi 0, %s143
      %s161 = sphi 0, %s161
      %s163 = sphi 0, %s161
      %s164 = sphi 0, %s163
      %s178 = sphi 0, %s164
      %s184 = sphi 0, %s186
      %s187 = sphi 0, %s184
      %s188 = sphi 0, %s187
      %s204 = sphi 0, %s188
    $region4: #{resblock_lane_dense.1} parent=1 // loop_header_branch
      %25 = sbr.rel (%p23) target = $region8
    $region5: #{resblock_lane_dense.1} parent=1 // loop_body
      %s27 = ssub.s32 %s22, 1
      %s28 = ssub.s32 %s22, 2
      %s29 = sadd.s32 %s22, 1
      %s30 = ssub.s32 %s22, %s29
      %p31 = scmp.eq.s32.totalorder %s30, 0
      %s33 = sadd.s32 %s32, 1
      %s34 = scalar_select %p31, %s32, %s33
      %p37 = pneg %p31
      %p38 = scmp.eq.s32.totalorder %s22, 1
      %p39 = por %p37, %p38
      %p40 = scmp.ne.s32.totalorder %s32, %s35
      %p41 = scmp.eq.s32.totalorder %s22, 0
      %p42 = por %p40, %p41
      %p43 = scmp.ne.s32.totalorder %s32, %s35
      %p44 = scmp.eq.s32.totalorder %s27, 1
      %p45 = por %p43, %p44
      %p46 = scmp.ne.s32.totalorder %s35, %s36
      %p47 = scmp.eq.s32.totalorder %s27, 0
      %p48 = por %p46, %p47
      %p49 = scmp.ne.s32.totalorder %s35, %s36
      %p50 = scmp.eq.s32.totalorder %s28, 1
      %p51 = por %p49, %p50
      %p53 = scmp.ne.s32.totalorder %s36, %s52
      %p54 = scmp.eq.s32.totalorder %s28, 0
      %p55 = por %p53, %p54
      %s57 = sadd.s32 %s56, 1
      %p60 = scmp.eq.s32.totalorder %s22, 1
      %p61 = scmp.ne.s32.totalorder %s56, %s58
      %p62 = scmp.eq.s32.totalorder %s22, 0
      %p63 = por %p61, %p62
      %p64 = scmp.ne.s32.totalorder %s56, %s58
      %p65 = scmp.eq.s32.totalorder %s27, 1
      %p66 = por %p64, %p65
      %p67 = scmp.ne.s32.totalorder %s58, %s59
      %p68 = scmp.eq.s32.totalorder %s27, 0
      %p69 = por %p67, %p68
      %p70 = scmp.ne.s32.totalorder %s58, %s59
      %p71 = scmp.eq.s32.totalorder %s28, 1
      %p72 = por %p70, %p71
      %p74 = scmp.ne.s32.totalorder %s59, %s73
      %p75 = scmp.eq.s32.totalorder %s28, 0
      %p76 = por %p74, %p75
      %s78 = sadd.s32 %s77, 1
      %p81 = scmp.eq.s32.totalorder %s22, 1
      %p82 = scmp.ne.s32.totalorder %s77, %s79
      %p83 = scmp.eq.s32.totalorder %s22, 0
      %p84 = por %p82, %p83
      %p85 = scmp.ne.s32.totalorder %s77, %s79
      %p86 = scmp.eq.s32.totalorder %s27, 1
      %p87 = por %p85, %p86
      %p88 = scmp.ne.s32.totalorder %s79, %s80
      %p89 = scmp.eq.s32.totalorder %s27, 0
      %p90 = por %p88, %p89
      %p91 = scmp.ne.s32.totalorder %s79, %s80
      %p92 = scmp.eq.s32.totalorder %s28, 1
      %p93 = por %p91, %p92
      %p95 = scmp.ne.s32.totalorder %s80, %s94
      %p96 = scmp.eq.s32.totalorder %s28, 0
      %p97 = por %p95, %p96
      %s99 = sadd.s32 %s98, 1
      %p102 = scmp.eq.s32.totalorder %s22, 1
      %p103 = scmp.ne.s32.totalorder %s98, %s100
      %p104 = scmp.eq.s32.totalorder %s22, 0
      %p105 = por %p103, %p104
      %p106 = scmp.ne.s32.totalorder %s98, %s100
      %p107 = scmp.eq.s32.totalorder %s27, 1
      %p108 = por %p106, %p107
      %p109 = scmp.ne.s32.totalorder %s100, %s101
      %p110 = scmp.eq.s32.totalorder %s27, 0
      %p111 = por %p109, %p110
      %p112 = scmp.ne.s32.totalorder %s100, %s101
      %p113 = scmp.eq.s32.totalorder %s28, 1
      %p114 = por %p112, %p113
      %p116 = scmp.ne.s32.totalorder %s101, %s115
      %p117 = scmp.eq.s32.totalorder %s28, 0
      %p118 = por %p116, %p117
      %s120 = sadd.s32 %s119, 1
      %p123 = scmp.eq.s32.totalorder %s22, 1
      %p124 = scmp.ne.s32.totalorder %s119, %s121
      %p125 = scmp.eq.s32.totalorder %s22, 0
      %p126 = por %p124, %p125
      %p127 = scmp.ne.s32.totalorder %s119, %s121
      %p128 = scmp.eq.s32.totalorder %s27, 1
      %p129 = por %p127, %p128
      %p130 = scmp.ne.s32.totalorder %s121, %s122
      %p131 = scmp.eq.s32.totalorder %s27, 0
      %p132 = por %p130, %p131
      %p133 = scmp.ne.s32.totalorder %s121, %s122
      %p134 = scmp.eq.s32.totalorder %s28, 1
      %p135 = por %p133, %p134
      %p137 = scmp.ne.s32.totalorder %s122, %s136
      %p138 = scmp.eq.s32.totalorder %s28, 0
      %p139 = por %p137, %p138
      %s141 = sadd.s32 %s140, 1
      %p144 = scmp.eq.s32.totalorder %s22, 1
      %p145 = scmp.ne.s32.totalorder %s140, %s142
      %p146 = scmp.eq.s32.totalorder %s22, 0
      %p147 = por %p145, %p146
      %p148 = scmp.ne.s32.totalorder %s140, %s142
      %p149 = scmp.eq.s32.totalorder %s27, 1
      %p150 = por %p148, %p149
      %p151 = scmp.ne.s32.totalorder %s142, %s143
      %p152 = scmp.eq.s32.totalorder %s27, 0
      %p153 = por %p151, %p152
      %p154 = scmp.ne.s32.totalorder %s142, %s143
      %p155 = scmp.eq.s32.totalorder %s28, 1
      %p156 = por %p154, %p155
      %p158 = scmp.ne.s32.totalorder %s143, %s157
      %p159 = scmp.eq.s32.totalorder %s28, 0
      %p160 = por %p158, %p159
      %s162 = sadd.s32 %s161, 1
      %p165 = scmp.eq.s32.totalorder %s22, 1
      %p166 = scmp.ne.s32.totalorder %s161, %s163
      %p167 = scmp.eq.s32.totalorder %s22, 0
      %p168 = por %p166, %p167
      %p169 = scmp.ne.s32.totalorder %s161, %s163
      %p170 = scmp.eq.s32.totalorder %s27, 1
      %p171 = por %p169, %p170
      %p172 = scmp.ne.s32.totalorder %s163, %s164
      %p173 = scmp.eq.s32.totalorder %s27, 0
      %p174 = por %p172, %p173
      %p175 = scmp.ne.s32.totalorder %s163, %s164
      %p176 = scmp.eq.s32.totalorder %s28, 1
      %p177 = por %p175, %p176
      %p179 = scmp.ne.s32.totalorder %s164, %s178
      %p180 = scmp.eq.s32.totalorder %s28, 0
      %p181 = por %p179, %p180
      %s182 = ssub.s32 %s22, %s29
      %p183 = scmp.eq.s32.totalorder %s182, 0
      %s185 = sadd.s32 %s184, 1
      %s186 = scalar_select %p183, %s184, %s185
      %p189 = pneg %p183
      %p190 = scmp.eq.s32.totalorder %s22, 1
      %p191 = por %p189, %p190
      %p192 = scmp.ne.s32.totalorder %s184, %s187
      %p193 = scmp.eq.s32.totalorder %s22, 0
      %p194 = por %p192, %p193
      %p195 = scmp.ne.s32.totalorder %s184, %s187
      %p196 = scmp.eq.s32.totalorder %s27, 1
      %p197 = por %p195, %p196
      %p198 = scmp.ne.s32.totalorder %s187, %s188
      %p199 = scmp.eq.s32.totalorder %s27, 0
      %p200 = por %p198, %p199
      %p201 = scmp.ne.s32.totalorder %s187, %s188
      %p202 = scmp.eq.s32.totalorder %s28, 1
      %p203 = por %p201, %p202
      %p205 = scmp.ne.s32.totalorder %s188, %s204
      %p206 = scmp.eq.s32.totalorder %s28, 0
      %p207 = por %p205, %p206
      %p208 = scmp.le.s32.totalorder 1, %s22
      %p209 = scmp.lt.s32.totalorder %s22, 3
      %p210 = pnand %p208, %p209
      %p211 = pneg %p210
      // Predicated region
      $region9: #{resblock_lane_dense.1} parent=5 // pred_check
        _
      $region10: #{resblock_lane_dense.1} parent=5 // pred_check_branch
        %213 = sbr.rel (%p210) target = $region12
      $region11: #{resblock_lane_dense.1} parent=5 // pred_region
        %s214 = ssub.s32 %s22, 1
        // Predicated region
        $region13: #{resblock_lane_dense.1} parent=11 // pred_check
          %p215 = pneg %p69
        $region14: #{resblock_lane_dense.1} parent=11 // pred_check_branch
          %217 = sbr.rel (%p215) target = $region16
        $region15: #{resblock_lane_dense.1} parent=11 // pred_region
          %s219 = ssub.s32 49152, 49152
          %220 = vsyncadd [#allocation6], %s219
          %s221 = sshll.u32 [#allocation5], 4
          %s222 = int_to_ptr.vmem [resolvable:$true] %s221
          %227 = dma.hbm_to_vmem [thread:$0]  %s1, 49152, %s222, [#allocation6], 256, 256, 16
        $region16: #{resblock_lane_dense.1} parent=11 // pred_fallthru
          _
        // Predicated region
        $region17: #{resblock_lane_dense.1} parent=11 // pred_check
          %p228 = pneg %p90
        $region18: #{resblock_lane_dense.1} parent=11 // pred_check_branch
          %230 = sbr.rel (%p228) target = $region20
        $region19: #{resblock_lane_dense.1} parent=11 // pred_region
          %s232 = ssub.s32 64, 64
          %233 = vsyncadd [#allocation6], %s232
          %s235 = sshll.u32 [#allocation7], 4
          %s236 = int_to_ptr.vmem [resolvable:$true] %s235
          %238 = dma.hbm_to_vmem [thread:$0]  %s2, 64, %s236, [#allocation6]
        $region20: #{resblock_lane_dense.1} parent=11 // pred_fallthru
          _
        // Predicated region
        $region21: #{resblock_lane_dense.1} parent=11 // pred_check
          %p239 = pneg %p111
        $region22: #{resblock_lane_dense.1} parent=11 // pred_check_branch
          %241 = sbr.rel (%p239) target = $region24
        $region23: #{resblock_lane_dense.1} parent=11 // pred_region
          %s243 = ssub.s32 64, 64
          %244 = vsyncadd [#allocation9], %s243
          %s246 = sshll.u32 [#allocation8], 4
          %s247 = int_to_ptr.vmem [resolvable:$true] %s246
          %249 = dma.hbm_to_vmem [thread:$0]  %s3, 64, %s247, [#allocation9]
        $region24: #{resblock_lane_dense.1} parent=11 // pred_fallthru
          _
        // Predicated region
        $region25: #{resblock_lane_dense.1} parent=11 // pred_check
          %p250 = pneg %p132
        $region26: #{resblock_lane_dense.1} parent=11 // pred_check_branch
          %252 = sbr.rel (%p250) target = $region28
        $region27: #{resblock_lane_dense.1} parent=11 // pred_region
          %s254 = ssub.s32 49152, 49152
          %255 = vsyncadd [#allocation9], %s254
          %s256 = sshll.u32 [#allocation10], 4
          %s257 = int_to_ptr.vmem [resolvable:$true] %s256
          %262 = dma.hbm_to_vmem [thread:$0]  %s4, 49152, %s257, [#allocation9], 256, 256, 16
        $region28: #{resblock_lane_dense.1} parent=11 // pred_fallthru
          _
        // Predicated region
        $region29: #{resblock_lane_dense.1} parent=11 // pred_check
          %p263 = pneg %p153
        $region30: #{resblock_lane_dense.1} parent=11 // pred_check_branch
          %265 = sbr.rel (%p263) target = $region32
        $region31: #{resblock_lane_dense.1} parent=11 // pred_region
          %s267 = ssub.s32 64, 64
          %268 = vsyncadd [#allocation12], %s267
          %s270 = sshll.u32 [#allocation11], 4
          %s271 = int_to_ptr.vmem [resolvable:$true] %s270
          %273 = dma.hbm_to_vmem [thread:$0]  %s5, 64, %s271, [#allocation12]
        $region32: #{resblock_lane_dense.1} parent=11 // pred_fallthru
          _
        // Predicated region
        $region33: #{resblock_lane_dense.1} parent=11 // pred_check
          %p274 = pneg %p174
        $region34: #{resblock_lane_dense.1} parent=11 // pred_check_branch
          %276 = sbr.rel (%p274) target = $region36
        $region35: #{resblock_lane_dense.1} parent=11 // pred_region
          %s278 = ssub.s32 64, 64
          %279 = vsyncadd [#allocation12], %s278
          %s281 = sshll.u32 [#allocation13], 4
          %s282 = int_to_ptr.vmem [resolvable:$true] %s281
          %284 = dma.hbm_to_vmem [thread:$0]  %s6, 64, %s282, [#allocation12]
        $region36: #{resblock_lane_dense.1} parent=11 // pred_fallthru
          _
      $region12: #{resblock_lane_dense.1} parent=5 // pred_fallthru
        _
      %p285 = scmp.lt.s32.totalorder %s22, 2
      // Predicated region
      $region37: #{resblock_lane_dense.1} parent=5 // pred_check
        %p286 = pneg %p285
      $region38: #{resblock_lane_dense.1} parent=5 // pred_check_branch
        %288 = sbr.rel (%p286) target = $region40
      $region39: #{resblock_lane_dense.1} parent=5 // pred_region
        // Predicated region
        $region41: #{resblock_lane_dense.1} parent=39 // pred_check
          %p289 = pneg %p42
        $region42: #{resblock_lane_dense.1} parent=39 // pred_check_branch
          %291 = sbr.rel (%p289) target = $region44
        $region43: #{resblock_lane_dense.1} parent=39 // pred_region
          %s292 = sand.u32 %s32, 1
          %s293 = scalar_lea.sflag [#allocation3], %s292
          %s294 = sand.u32 %s32, 1
          %s295 = smul.addr %s294, 64
          %s296 = scalar_lea.vmem [#allocation2], %s295
          %s298 = ssub.s32 1024, 1024
          %299 = vsyncadd %s293, %s298
          %s300 = smul.addr %s22, 8
          %s301 = smul.addr %s300, 128
          %s302 = scalar_lea.hbm %s0, %s301
          %s303 = sshll.u32 %s296, 4
          %s304 = int_to_ptr.vmem [resolvable:$true] %s303
          %309 = dma.hbm_to_vmem [thread:$0]  %s302, 1024, %s304, %s293, 512, 512, 32
        $region44: #{resblock_lane_dense.1} parent=39 // pred_fallthru
          _
      $region40: #{resblock_lane_dense.1} parent=5 // pred_fallthru
        _
      %p310 = scmp.le.s32.totalorder 1, %s22
      %p311 = scmp.lt.s32.totalorder %s22, 3
      %p312 = pnand %p310, %p311
      %p313 = pneg %p312
      // Predicated region
      $region45: #{resblock_lane_dense.1} parent=5 // pred_check
        _
      $region46: #{resblock_lane_dense.1} parent=5 // pred_check_branch
        %315 = sbr.rel (%p312) target = $region48
      $region47: #{resblock_lane_dense.1} parent=5 // pred_region
        %s316 = ssub.s32 %s22, 1
        %s317 = sand.u32 %s35, 1
        %s318 = scalar_lea.sflag [#allocation3], %s317
        %s319 = sand.u32 %s35, 1
        %s320 = smul.addr %s319, 64
        %s321 = scalar_lea.vmem [#allocation2], %s320
        // Predicated region
        $region49: #{resblock_lane_dense.1} parent=47 // pred_check
          %p322 = pneg %p48
        $region50: #{resblock_lane_dense.1} parent=47 // pred_check_branch
          %324 = sbr.rel (%p322) target = $region52
        $region51: #{resblock_lane_dense.1} parent=47 // pred_region
          %325 = dma.done %s318, 1024
        $region52: #{resblock_lane_dense.1} parent=47 // pred_fallthru
          _
        // Predicated region
        $region53: #{resblock_lane_dense.1} parent=47 // pred_check
          %p326 = pneg %p69
        $region54: #{resblock_lane_dense.1} parent=47 // pred_check_branch
          %328 = sbr.rel (%p326) target = $region56
        $region55: #{resblock_lane_dense.1} parent=47 // pred_region
          %329 = dma.done [#allocation6], 49152
        $region56: #{resblock_lane_dense.1} parent=47 // pred_fallthru
          _
        // Predicated region
        $region57: #{resblock_lane_dense.1} parent=47 // pred_check
          %p330 = pneg %p90
        $region58: #{resblock_lane_dense.1} parent=47 // pred_check_branch
          %332 = sbr.rel (%p330) target = $region60
        $region59: #{resblock_lane_dense.1} parent=47 // pred_region
          %333 = dma.done [#allocation6], 64
        $region60: #{resblock_lane_dense.1} parent=47 // pred_fallthru
          _
        // Predicated region
        $region61: #{resblock_lane_dense.1} parent=47 // pred_check
          %p334 = pneg %p111
        $region62: #{resblock_lane_dense.1} parent=47 // pred_check_branch
          %336 = sbr.rel (%p334) target = $region64
        $region63: #{resblock_lane_dense.1} parent=47 // pred_region
          %337 = dma.done [#allocation9], 64
        $region64: #{resblock_lane_dense.1} parent=47 // pred_fallthru
          _
        // Predicated region
        $region65: #{resblock_lane_dense.1} parent=47 // pred_check
          %p338 = pneg %p132
        $region66: #{resblock_lane_dense.1} parent=47 // pred_check_branch
          %340 = sbr.rel (%p338) target = $region68
        $region67: #{resblock_lane_dense.1} parent=47 // pred_region
          %341 = dma.done [#allocation9], 49152
        $region68: #{resblock_lane_dense.1} parent=47 // pred_fallthru
          _
        // Predicated region
        $region69: #{resblock_lane_dense.1} parent=47 // pred_check
          %p342 = pneg %p153
        $region70: #{resblock_lane_dense.1} parent=47 // pred_check_branch
          %344 = sbr.rel (%p342) target = $region72
        $region71: #{resblock_lane_dense.1} parent=47 // pred_region
          %345 = dma.done [#allocation12], 64
        $region72: #{resblock_lane_dense.1} parent=47 // pred_fallthru
          _
        // Predicated region
        $region73: #{resblock_lane_dense.1} parent=47 // pred_check
          %p346 = pneg %p174
        $region74: #{resblock_lane_dense.1} parent=47 // pred_check_branch
          %348 = sbr.rel (%p346) target = $region76
        $region75: #{resblock_lane_dense.1} parent=47 // pred_region
          %349 = dma.done [#allocation12], 64
        $region76: #{resblock_lane_dense.1} parent=47 // pred_fallthru
          _
        %s350 = sand.u32 %s35, 1
        %s351 = scalar_lea.sflag [#allocation3], %s350
        %s352 = sand.u32 %s35, 1
        %s353 = smul.addr %s352, 64
        %s354 = scalar_lea.vmem [#allocation2], %s353
        %p355 = pneg %p48
        %p356 = pneg %p45
        %p357 = pneg %p69
        %p358 = pneg %p66
        %p359 = pneg %p90
        %p360 = pneg %p87
        %p361 = pneg %p111
        %p362 = pneg %p108
        %p363 = pneg %p132
        %p364 = pneg %p129
        %p365 = pneg %p153
        %p366 = pneg %p150
        %p367 = pneg %p174
        %p368 = pneg %p171
        %p369 = pneg %p200
        %p370 = pneg %p197
        %s371 = sand.u32 %s187, 1
        %s372 = scalar_lea.sflag [#allocation4], %s371
        %s373 = sand.u32 %s187, 1
        %s374 = smul.addr %s373, 64
        %s375 = scalar_lea.vmem [#allocation14], %s374
        %v376 = vld [vmem:[%s321] sm:$0xff]
        %v377 = vld [vmem:[%s321 + $0x8] sm:$0xff]
        %v378 = vld [vmem:[%s321 + $0x10] sm:$0xff]
        %v379 = vld [vmem:[%s321 + $0x18] sm:$0xff]
        %v380 = vld [vmem:[%s321 + $0x20] sm:$0xff]
        %v381 = vld [vmem:[%s321 + $0x28] sm:$0xff]
        %v382 = vld [vmem:[%s321 + $0x30] sm:$0xff]
        %v383 = vld [vmem:[%s321 + $0x38] sm:$0xff]
        %v384 = vlaneseq
        %v385 = vshrl.u32 %v384, 7
        %v386 = vadd.s32 %v385, 8
        %vm387 = vcmp.lt.s32.totalorder %v385, 0
        %v388 = vsub.s32 0, %v385
        %v389 = vsel %vm387, %v388, %v385
        %v390 = vshrl.u32 %v389, 4
        %v391 = vand.u32 %v389, 15
        %v392 = vsub.s32 0, %v391
        %v393 = vsel %vm387, %v392, %v391
        %vm394 = vcmp.lt.s32.totalorder %v386, 0
        %v395 = vsub.s32 0, %v386
        %v396 = vsel %vm394, %v395, %v386
        %v397 = vshrl.u32 %v396, 4
        %v398 = vand.u32 %v396, 15
        %v399 = vsub.s32 0, %v398
        %v400 = vsel %vm394, %v399, %v398
        %vm401 = vcmp.ne.s32.totalorder %v393, 0
        %vm402 = vcmp.ne.s32.totalorder %v400, 0
        %vm403 = vcmp.ne.s32.totalorder %v393, 15
        %vm404 = vcmp.ne.s32.totalorder %v400, 15
        %v405 = vrot.slane %v376, 7
        %v406 = vrot.slane %v377, 7
        %v407 = vrot.slane %v378, 7
        %v408 = vrot.slane %v379, 7
        %v409 = vrot.slane %v380, 7
        %v410 = vrot.slane %v381, 7
        %v411 = vrot.slane %v382, 7
        %v412 = vrot.slane %v383, 7
        %vm413 = vcmp.lt.s32.totalorder %v385, 1
        %v414 = vsel %vm413, %v405, %v409
        %v415 = vsel %vm413, %v406, %v410
        %v416 = vsel %vm413, %v407, %v411
        %v417 = vsel %vm413, %v408, %v412
        %v418 = vsel %vm413, %v409, %v405
        %v419 = vsel %vm413, %v410, %v406
        %v420 = vsel %vm413, %v411, %v407
        %v421 = vsel %vm413, %v412, %v408
        %v422 = vsel %vm401, 1, 0
        %v423 = vsel %vm402, 1, 0
        %vm424 = vcmp.eq.s32.totalorder %v422, 1
        %vm425 = vcmp.eq.s32.totalorder %v423, 1
        %v426 = vsel %vm424, %v418, 0.0
        %v427 = vsel %vm424, %v419, 0.0
        %v428 = vsel %vm424, %v420, 0.0
        %v429 = vsel %vm424, %v421, 0.0
        %v430 = vsel %vm425, %v414, 0.0
        %v431 = vsel %vm425, %v415, 0.0
        %v432 = vsel %vm425, %v416, 0.0
        %v433 = vsel %vm425, %v417, 0.0
        %v434 = vrot.slane %v376, 1
        %v435 = vrot.slane %v377, 1
        %v436 = vrot.slane %v378, 1
        %v437 = vrot.slane %v379, 1
        %v438 = vrot.slane %v380, 1
        %v439 = vrot.slane %v381, 1
        %v440 = vrot.slane %v382, 1
        %v441 = vrot.slane %v383, 1
        %vm442 = vcmp.lt.s32.totalorder %v385, 7
        %v443 = vsel %vm442, %v434, %v438
        %v444 = vsel %vm442, %v435, %v439
        %v445 = vsel %vm442, %v436, %v440
        %v446 = vsel %vm442, %v437, %v441
        %v447 = vsel %vm442, %v438, %v434
        %v448 = vsel %vm442, %v439, %v435
        %v449 = vsel %vm442, %v440, %v436
        %v450 = vsel %vm442, %v441, %v437
        %v451 = vsel %vm403, 1, 0
        %v452 = vsel %vm404, 1, 0
        %vm453 = vcmp.eq.s32.totalorder %v451, 1
        %vm454 = vcmp.eq.s32.totalorder %v452, 1
        %v455 = vsel %vm453, %v443, 0.0
        %v456 = vsel %vm453, %v444, 0.0
        %v457 = vsel %vm453, %v445, 0.0
        %v458 = vsel %vm453, %v446, 0.0
        %v459 = vsel %vm454, %v447, 0.0
        %v460 = vsel %vm454, %v448, 0.0
        %v461 = vsel %vm454, %v449, 0.0
        %v462 = vsel %vm454, %v450, 0.0
        %v463 = vpack.c.bf16 %v430, %v426
        %v464 = vpack.c.bf16 %v431, %v427
        %v465 = vpack.c.bf16 %v432, %v428
        %v466 = vpack.c.bf16 %v433, %v429
        %v467 = vpack.c.bf16 %v380, %v376
        %v468 = vpack.c.bf16 %v381, %v377
        %v469 = vpack.c.bf16 %v382, %v378
        %v470 = vpack.c.bf16 %v383, %v379
        %v471 = vpack.c.bf16 %v459, %v455
        %v472 = vpack.c.bf16 %v460, %v456
        %v473 = vpack.c.bf16 %v461, %v457
        %v474 = vpack.c.bf16 %v462, %v458
        %v475 = vld [vmem:[#allocation5] sm:$0xff]
        %v476 = vld [vmem:[#allocation5 + $0x8] sm:$0xff]
        %v477 = vld [vmem:[#allocation5 + $0x10] sm:$0xff]
        %v478 = vld [vmem:[#allocation5 + $0x18] sm:$0xff]
        %v479 = vld [vmem:[#allocation5 + $0x20] sm:$0xff]
        %v480 = vld [vmem:[#allocation5 + $0x28] sm:$0xff]
        %v481 = vld [vmem:[#allocation5 + $0x30] sm:$0xff]
        %v482 = vld [vmem:[#allocation5 + $0x38] sm:$0xff]
        %v483 = vld [vmem:[#allocation5 + $0x40] sm:$0xff]
        %v484 = vld [vmem:[#allocation5 + $0x48] sm:$0xff]
        %v485 = vld [vmem:[#allocation5 + $0x50] sm:$0xff]
        %v486 = vld [vmem:[#allocation5 + $0x58] sm:$0xff]
        %v487 = vld [vmem:[#allocation5 + $0x60] sm:$0xff]
        %v488 = vld [vmem:[#allocation5 + $0x68] sm:$0xff]
        %v489 = vld [vmem:[#allocation5 + $0x70] sm:$0xff]
        %v490 = vld [vmem:[#allocation5 + $0x78] sm:$0xff]
        %v491 = vld [vmem:[#allocation5 + $0x80] sm:$0xff]
        %v492 = vld [vmem:[#allocation5 + $0x88] sm:$0xff]
        %v493 = vld [vmem:[#allocation5 + $0x90] sm:$0xff]
        %v494 = vld [vmem:[#allocation5 + $0x98] sm:$0xff]
        %v495 = vld [vmem:[#allocation5 + $0xa0] sm:$0xff]
        %v496 = vld [vmem:[#allocation5 + $0xa8] sm:$0xff]
        %v497 = vld [vmem:[#allocation5 + $0xb0] sm:$0xff]
        %v498 = vld [vmem:[#allocation5 + $0xb8] sm:$0xff]
        %v499 = vld [vmem:[#allocation5 + $0xc0] sm:$0xff]
        %v500 = vld [vmem:[#allocation5 + $0xc8] sm:$0xff]
        %v501 = vld [vmem:[#allocation5 + $0xd0] sm:$0xff]
        %v502 = vld [vmem:[#allocation5 + $0xd8] sm:$0xff]
        %v503 = vld [vmem:[#allocation5 + $0xe0] sm:$0xff]
        %v504 = vld [vmem:[#allocation5 + $0xe8] sm:$0xff]
        %v505 = vld [vmem:[#allocation5 + $0xf0] sm:$0xff]
        %v506 = vld [vmem:[#allocation5 + $0xf8] sm:$0xff]
        %v507 = vld [vmem:[#allocation5 + $0x100] sm:$0xff]
        %v508 = vld [vmem:[#allocation5 + $0x108] sm:$0xff]
        %v509 = vld [vmem:[#allocation5 + $0x110] sm:$0xff]
        %v510 = vld [vmem:[#allocation5 + $0x118] sm:$0xff]
        %v511 = vld [vmem:[#allocation5 + $0x120] sm:$0xff]
        %v512 = vld [vmem:[#allocation5 + $0x128] sm:$0xff]
        %v513 = vld [vmem:[#allocation5 + $0x130] sm:$0xff]
        %v514 = vld [vmem:[#allocation5 + $0x138] sm:$0xff]
        %v515 = vld [vmem:[#allocation5 + $0x140] sm:$0xff]
        %v516 = vld [vmem:[#allocation5 + $0x148] sm:$0xff]
        %v517 = vld [vmem:[#allocation5 + $0x150] sm:$0xff]
        %v518 = vld [vmem:[#allocation5 + $0x158] sm:$0xff]
        %v519 = vld [vmem:[#allocation5 + $0x160] sm:$0xff]
        %v520 = vld [vmem:[#allocation5 + $0x168] sm:$0xff]
        %v521 = vld [vmem:[#allocation5 + $0x170] sm:$0xff]
        %v522 = vld [vmem:[#allocation5 + $0x178] sm:$0xff]
        %v523 = vld [vmem:[#allocation5 + $0x180] sm:$0xff]
        %v524 = vld [vmem:[#allocation5 + $0x188] sm:$0xff]
        %v525 = vld [vmem:[#allocation5 + $0x190] sm:$0xff]
        %v526 = vld [vmem:[#allocation5 + $0x198] sm:$0xff]
        %v527 = vld [vmem:[#allocation5 + $0x1a0] sm:$0xff]
        %v528 = vld [vmem:[#allocation5 + $0x1a8] sm:$0xff]
        %v529 = vld [vmem:[#allocation5 + $0x1b0] sm:$0xff]
        %v530 = vld [vmem:[#allocation5 + $0x1b8] sm:$0xff]
        %v531 = vld [vmem:[#allocation5 + $0x1c0] sm:$0xff]
        %v532 = vld [vmem:[#allocation5 + $0x1c8] sm:$0xff]
        %v533 = vld [vmem:[#allocation5 + $0x1d0] sm:$0xff]
        %v534 = vld [vmem:[#allocation5 + $0x1d8] sm:$0xff]
        %v535 = vld [vmem:[#allocation5 + $0x1e0] sm:$0xff]
        %v536 = vld [vmem:[#allocation5 + $0x1e8] sm:$0xff]
        %v537 = vld [vmem:[#allocation5 + $0x1f0] sm:$0xff]
        %v538 = vld [vmem:[#allocation5 + $0x1f8] sm:$0xff]
        %v539 = vld [vmem:[#allocation5 + $0x200] sm:$0xff]
        %v540 = vld [vmem:[#allocation5 + $0x208] sm:$0xff]
        %v541 = vld [vmem:[#allocation5 + $0x210] sm:$0xff]
        %v542 = vld [vmem:[#allocation5 + $0x218] sm:$0xff]
        %v543 = vld [vmem:[#allocation5 + $0x220] sm:$0xff]
        %v544 = vld [vmem:[#allocation5 + $0x228] sm:$0xff]
        %v545 = vld [vmem:[#allocation5 + $0x230] sm:$0xff]
        %v546 = vld [vmem:[#allocation5 + $0x238] sm:$0xff]
        %v547 = vld [vmem:[#allocation5 + $0x240] sm:$0xff]
        %v548 = vld [vmem:[#allocation5 + $0x248] sm:$0xff]
        %v549 = vld [vmem:[#allocation5 + $0x250] sm:$0xff]
        %v550 = vld [vmem:[#allocation5 + $0x258] sm:$0xff]
        %v551 = vld [vmem:[#allocation5 + $0x260] sm:$0xff]
        %v552 = vld [vmem:[#allocation5 + $0x268] sm:$0xff]
        %v553 = vld [vmem:[#allocation5 + $0x270] sm:$0xff]
        %v554 = vld [vmem:[#allocation5 + $0x278] sm:$0xff]
        %v555 = vld [vmem:[#allocation5 + $0x280] sm:$0xff]
        %v556 = vld [vmem:[#allocation5 + $0x288] sm:$0xff]
        %v557 = vld [vmem:[#allocation5 + $0x290] sm:$0xff]
        %v558 = vld [vmem:[#allocation5 + $0x298] sm:$0xff]
        %v559 = vld [vmem:[#allocation5 + $0x2a0] sm:$0xff]
        %v560 = vld [vmem:[#allocation5 + $0x2a8] sm:$0xff]
        %v561 = vld [vmem:[#allocation5 + $0x2b0] sm:$0xff]
        %v562 = vld [vmem:[#allocation5 + $0x2b8] sm:$0xff]
        %v563 = vld [vmem:[#allocation5 + $0x2c0] sm:$0xff]
        %v564 = vld [vmem:[#allocation5 + $0x2c8] sm:$0xff]
        %v565 = vld [vmem:[#allocation5 + $0x2d0] sm:$0xff]
        %v566 = vld [vmem:[#allocation5 + $0x2d8] sm:$0xff]
        %v567 = vld [vmem:[#allocation5 + $0x2e0] sm:$0xff]
        %v568 = vld [vmem:[#allocation5 + $0x2e8] sm:$0xff]
        %v569 = vld [vmem:[#allocation5 + $0x2f0] sm:$0xff]
        %v570 = vld [vmem:[#allocation5 + $0x2f8] sm:$0xff]
        %v571 = vld [vmem:[#allocation5 + $0x300] sm:$0xff]
        %v572 = vld [vmem:[#allocation5 + $0x308] sm:$0xff]
        %v573 = vld [vmem:[#allocation5 + $0x310] sm:$0xff]
        %v574 = vld [vmem:[#allocation5 + $0x318] sm:$0xff]
        %v575 = vld [vmem:[#allocation5 + $0x320] sm:$0xff]
        %v576 = vld [vmem:[#allocation5 + $0x328] sm:$0xff]
        %v577 = vld [vmem:[#allocation5 + $0x330] sm:$0xff]
        %v578 = vld [vmem:[#allocation5 + $0x338] sm:$0xff]
        %v579 = vld [vmem:[#allocation5 + $0x340] sm:$0xff]
        %v580 = vld [vmem:[#allocation5 + $0x348] sm:$0xff]
        %v581 = vld [vmem:[#allocation5 + $0x350] sm:$0xff]
        %v582 = vld [vmem:[#allocation5 + $0x358] sm:$0xff]
        %v583 = vld [vmem:[#allocation5 + $0x360] sm:$0xff]
        %v584 = vld [vmem:[#allocation5 + $0x368] sm:$0xff]
        %v585 = vld [vmem:[#allocation5 + $0x370] sm:$0xff]
        %v586 = vld [vmem:[#allocation5 + $0x378] sm:$0xff]
        %v587 = vld [vmem:[#allocation5 + $0x380] sm:$0xff]
        %v588 = vld [vmem:[#allocation5 + $0x388] sm:$0xff]
        %v589 = vld [vmem:[#allocation5 + $0x390] sm:$0xff]
        %v590 = vld [vmem:[#allocation5 + $0x398] sm:$0xff]
        %v591 = vld [vmem:[#allocation5 + $0x3a0] sm:$0xff]
        %v592 = vld [vmem:[#allocation5 + $0x3a8] sm:$0xff]
        %v593 = vld [vmem:[#allocation5 + $0x3b0] sm:$0xff]
        %v594 = vld [vmem:[#allocation5 + $0x3b8] sm:$0xff]
        %v595 = vld [vmem:[#allocation5 + $0x3c0] sm:$0xff]
        %v596 = vld [vmem:[#allocation5 + $0x3c8] sm:$0xff]
        %v597 = vld [vmem:[#allocation5 + $0x3d0] sm:$0xff]
        %v598 = vld [vmem:[#allocation5 + $0x3d8] sm:$0xff]
        %v599 = vld [vmem:[#allocation5 + $0x3e0] sm:$0xff]
        %v600 = vld [vmem:[#allocation5 + $0x3e8] sm:$0xff]
        %v601 = vld [vmem:[#allocation5 + $0x3f0] sm:$0xff]
        %v602 = vld [vmem:[#allocation5 + $0x3f8] sm:$0xff]
        %v603 = vld [vmem:[#allocation5 + $0x400] sm:$0xff]
        %v604 = vld [vmem:[#allocation5 + $0x408] sm:$0xff]
        %v605 = vld [vmem:[#allocation5 + $0x410] sm:$0xff]
        %v606 = vld [vmem:[#allocation5 + $0x418] sm:$0xff]
        %v607 = vld [vmem:[#allocation5 + $0x420] sm:$0xff]
        %v608 = vld [vmem:[#allocation5 + $0x428] sm:$0xff]
        %v609 = vld [vmem:[#allocation5 + $0x430] sm:$0xff]
        %v610 = vld [vmem:[#allocation5 + $0x438] sm:$0xff]
        %v611 = vld [vmem:[#allocation5 + $0x440] sm:$0xff]
        %v612 = vld [vmem:[#allocation5 + $0x448] sm:$0xff]
        %v613 = vld [vmem:[#allocation5 + $0x450] sm:$0xff]
        %v614 = vld [vmem:[#allocation5 + $0x458] sm:$0xff]
        %v615 = vld [vmem:[#allocation5 + $0x460] sm:$0xff]
        %v616 = vld [vmem:[#allocation5 + $0x468] sm:$0xff]
        %v617 = vld [vmem:[#allocation5 + $0x470] sm:$0xff]
        %v618 = vld [vmem:[#allocation5 + $0x478] sm:$0xff]
        %v619 = vld [vmem:[#allocation5 + $0x480] sm:$0xff]
        %v620 = vld [vmem:[#allocation5 + $0x488] sm:$0xff]
        %v621 = vld [vmem:[#allocation5 + $0x490] sm:$0xff]
        %v622 = vld [vmem:[#allocation5 + $0x498] sm:$0xff]
        %v623 = vld [vmem:[#allocation5 + $0x4a0] sm:$0xff]
        %v624 = vld [vmem:[#allocation5 + $0x4a8] sm:$0xff]
        %v625 = vld [vmem:[#allocation5 + $0x4b0] sm:$0xff]
        %v626 = vld [vmem:[#allocation5 + $0x4b8] sm:$0xff]
        %v627 = vld [vmem:[#allocation5 + $0x4c0] sm:$0xff]
        %v628 = vld [vmem:[#allocation5 + $0x4c8] sm:$0xff]
        %v629 = vld [vmem:[#allocation5 + $0x4d0] sm:$0xff]
        %v630 = vld [vmem:[#allocation5 + $0x4d8] sm:$0xff]
        %v631 = vld [vmem:[#allocation5 + $0x4e0] sm:$0xff]
        %v632 = vld [vmem:[#allocation5 + $0x4e8] sm:$0xff]
        %v633 = vld [vmem:[#allocation5 + $0x4f0] sm:$0xff]
        %v634 = vld [vmem:[#allocation5 + $0x4f8] sm:$0xff]
        %v635 = vld [vmem:[#allocation5 + $0x500] sm:$0xff]
        %v636 = vld [vmem:[#allocation5 + $0x508] sm:$0xff]
        %v637 = vld [vmem:[#allocation5 + $0x510] sm:$0xff]
        %v638 = vld [vmem:[#allocation5 + $0x518] sm:$0xff]
        %v639 = vld [vmem:[#allocation5 + $0x520] sm:$0xff]
        %v640 = vld [vmem:[#allocation5 + $0x528] sm:$0xff]
        %v641 = vld [vmem:[#allocation5 + $0x530] sm:$0xff]
        %v642 = vld [vmem:[#allocation5 + $0x538] sm:$0xff]
        %v643 = vld [vmem:[#allocation5 + $0x540] sm:$0xff]
        %v644 = vld [vmem:[#allocation5 + $0x548] sm:$0xff]
        %v645 = vld [vmem:[#allocation5 + $0x550] sm:$0xff]
        %v646 = vld [vmem:[#allocation5 + $0x558] sm:$0xff]
        %v647 = vld [vmem:[#allocation5 + $0x560] sm:$0xff]
        %v648 = vld [vmem:[#allocation5 + $0x568] sm:$0xff]
        %v649 = vld [vmem:[#allocation5 + $0x570] sm:$0xff]
        %v650 = vld [vmem:[#allocation5 + $0x578] sm:$0xff]
        %v651 = vld [vmem:[#allocation5 + $0x580] sm:$0xff]
        %v652 = vld [vmem:[#allocation5 + $0x588] sm:$0xff]
        %v653 = vld [vmem:[#allocation5 + $0x590] sm:$0xff]
        %v654 = vld [vmem:[#allocation5 + $0x598] sm:$0xff]
        %v655 = vld [vmem:[#allocation5 + $0x5a0] sm:$0xff]
        %v656 = vld [vmem:[#allocation5 + $0x5a8] sm:$0xff]
        %v657 = vld [vmem:[#allocation5 + $0x5b0] sm:$0xff]
        %v658 = vld [vmem:[#allocation5 + $0x5b8] sm:$0xff]
        %v659 = vld [vmem:[#allocation5 + $0x5c0] sm:$0xff]
        %v660 = vld [vmem:[#allocation5 + $0x5c8] sm:$0xff]
        %v661 = vld [vmem:[#allocation5 + $0x5d0] sm:$0xff]
        %v662 = vld [vmem:[#allocation5 + $0x5d8] sm:$0xff]
        %v663 = vld [vmem:[#allocation5 + $0x5e0] sm:$0xff]
        %v664 = vld [vmem:[#allocation5 + $0x5e8] sm:$0xff]
        %v665 = vld [vmem:[#allocation5 + $0x5f0] sm:$0xff]
        %v666 = vld [vmem:[#allocation5 + $0x5f8] sm:$0xff]
        %v667 = vld [vmem:[#allocation5 + $0x600] sm:$0xff]
        %v668 = vld [vmem:[#allocation5 + $0x608] sm:$0xff]
        %v669 = vld [vmem:[#allocation5 + $0x610] sm:$0xff]
        %v670 = vld [vmem:[#allocation5 + $0x618] sm:$0xff]
        %v671 = vld [vmem:[#allocation5 + $0x620] sm:$0xff]
        %v672 = vld [vmem:[#allocation5 + $0x628] sm:$0xff]
        %v673 = vld [vmem:[#allocation5 + $0x630] sm:$0xff]
        %v674 = vld [vmem:[#allocation5 + $0x638] sm:$0xff]
        %v675 = vld [vmem:[#allocation5 + $0x640] sm:$0xff]
        %v676 = vld [vmem:[#allocation5 + $0x648] sm:$0xff]
        %v677 = vld [vmem:[#allocation5 + $0x650] sm:$0xff]
        %v678 = vld [vmem:[#allocation5 + $0x658] sm:$0xff]
        %v679 = vld [vmem:[#allocation5 + $0x660] sm:$0xff]
        %v680 = vld [vmem:[#allocation5 + $0x668] sm:$0xff]
        %v681 = vld [vmem:[#allocation5 + $0x670] sm:$0xff]
        %v682 = vld [vmem:[#allocation5 + $0x678] sm:$0xff]
        %v683 = vld [vmem:[#allocation5 + $0x680] sm:$0xff]
        %v684 = vld [vmem:[#allocation5 + $0x688] sm:$0xff]
        %v685 = vld [vmem:[#allocation5 + $0x690] sm:$0xff]
        %v686 = vld [vmem:[#allocation5 + $0x698] sm:$0xff]
        %v687 = vld [vmem:[#allocation5 + $0x6a0] sm:$0xff]
        %v688 = vld [vmem:[#allocation5 + $0x6a8] sm:$0xff]
        %v689 = vld [vmem:[#allocation5 + $0x6b0] sm:$0xff]
        %v690 = vld [vmem:[#allocation5 + $0x6b8] sm:$0xff]
        %v691 = vld [vmem:[#allocation5 + $0x6c0] sm:$0xff]
        %v692 = vld [vmem:[#allocation5 + $0x6c8] sm:$0xff]
        %v693 = vld [vmem:[#allocation5 + $0x6d0] sm:$0xff]
        %v694 = vld [vmem:[#allocation5 + $0x6d8] sm:$0xff]
        %v695 = vld [vmem:[#allocation5 + $0x6e0] sm:$0xff]
        %v696 = vld [vmem:[#allocation5 + $0x6e8] sm:$0xff]
        %v697 = vld [vmem:[#allocation5 + $0x6f0] sm:$0xff]
        %v698 = vld [vmem:[#allocation5 + $0x6f8] sm:$0xff]
        %v699 = vld [vmem:[#allocation5 + $0x700] sm:$0xff]
        %v700 = vld [vmem:[#allocation5 + $0x708] sm:$0xff]
        %v701 = vld [vmem:[#allocation5 + $0x710] sm:$0xff]
        %v702 = vld [vmem:[#allocation5 + $0x718] sm:$0xff]
        %v703 = vld [vmem:[#allocation5 + $0x720] sm:$0xff]
        %v704 = vld [vmem:[#allocation5 + $0x728] sm:$0xff]
        %v705 = vld [vmem:[#allocation5 + $0x730] sm:$0xff]
        %v706 = vld [vmem:[#allocation5 + $0x738] sm:$0xff]
        %v707 = vld [vmem:[#allocation5 + $0x740] sm:$0xff]
        %v708 = vld [vmem:[#allocation5 + $0x748] sm:$0xff]
        %v709 = vld [vmem:[#allocation5 + $0x750] sm:$0xff]
        %v710 = vld [vmem:[#allocation5 + $0x758] sm:$0xff]
        %v711 = vld [vmem:[#allocation5 + $0x760] sm:$0xff]
        %v712 = vld [vmem:[#allocation5 + $0x768] sm:$0xff]
        %v713 = vld [vmem:[#allocation5 + $0x770] sm:$0xff]
        %v714 = vld [vmem:[#allocation5 + $0x778] sm:$0xff]
        %v715 = vld [vmem:[#allocation5 + $0x780] sm:$0xff]
        %v716 = vld [vmem:[#allocation5 + $0x788] sm:$0xff]
        %v717 = vld [vmem:[#allocation5 + $0x790] sm:$0xff]
        %v718 = vld [vmem:[#allocation5 + $0x798] sm:$0xff]
        %v719 = vld [vmem:[#allocation5 + $0x7a0] sm:$0xff]
        %v720 = vld [vmem:[#allocation5 + $0x7a8] sm:$0xff]
        %v721 = vld [vmem:[#allocation5 + $0x7b0] sm:$0xff]
        %v722 = vld [vmem:[#allocation5 + $0x7b8] sm:$0xff]
        %v723 = vld [vmem:[#allocation5 + $0x7c0] sm:$0xff]
        %v724 = vld [vmem:[#allocation5 + $0x7c8] sm:$0xff]
        %v725 = vld [vmem:[#allocation5 + $0x7d0] sm:$0xff]
        %v726 = vld [vmem:[#allocation5 + $0x7d8] sm:$0xff]
        %v727 = vld [vmem:[#allocation5 + $0x7e0] sm:$0xff]
        %v728 = vld [vmem:[#allocation5 + $0x7e8] sm:$0xff]
        %v729 = vld [vmem:[#allocation5 + $0x7f0] sm:$0xff]
        %v730 = vld [vmem:[#allocation5 + $0x7f8] sm:$0xff]
        %v731 = vld [vmem:[#allocation5 + $0x800] sm:$0xff]
        %v732 = vld [vmem:[#allocation5 + $0x808] sm:$0xff]
        %v733 = vld [vmem:[#allocation5 + $0x810] sm:$0xff]
        %v734 = vld [vmem:[#allocation5 + $0x818] sm:$0xff]
        %v735 = vld [vmem:[#allocation5 + $0x820] sm:$0xff]
        %v736 = vld [vmem:[#allocation5 + $0x828] sm:$0xff]
        %v737 = vld [vmem:[#allocation5 + $0x830] sm:$0xff]
        %v738 = vld [vmem:[#allocation5 + $0x838] sm:$0xff]
        %v739 = vld [vmem:[#allocation5 + $0x840] sm:$0xff]
        %v740 = vld [vmem:[#allocation5 + $0x848] sm:$0xff]
        %v741 = vld [vmem:[#allocation5 + $0x850] sm:$0xff]
        %v742 = vld [vmem:[#allocation5 + $0x858] sm:$0xff]
        %v743 = vld [vmem:[#allocation5 + $0x860] sm:$0xff]
        %v744 = vld [vmem:[#allocation5 + $0x868] sm:$0xff]
        %v745 = vld [vmem:[#allocation5 + $0x870] sm:$0xff]
        %v746 = vld [vmem:[#allocation5 + $0x878] sm:$0xff]
        %v747 = vld [vmem:[#allocation5 + $0x880] sm:$0xff]
        %v748 = vld [vmem:[#allocation5 + $0x888] sm:$0xff]
        %v749 = vld [vmem:[#allocation5 + $0x890] sm:$0xff]
        %v750 = vld [vmem:[#allocation5 + $0x898] sm:$0xff]
        %v751 = vld [vmem:[#allocation5 + $0x8a0] sm:$0xff]
        %v752 = vld [vmem:[#allocation5 + $0x8a8] sm:$0xff]
        %v753 = vld [vmem:[#allocation5 + $0x8b0] sm:$0xff]
        %v754 = vld [vmem:[#allocation5 + $0x8b8] sm:$0xff]
        %v755 = vld [vmem:[#allocation5 + $0x8c0] sm:$0xff]
        %v756 = vld [vmem:[#allocation5 + $0x8c8] sm:$0xff]
        %v757 = vld [vmem:[#allocation5 + $0x8d0] sm:$0xff]
        %v758 = vld [vmem:[#allocation5 + $0x8d8] sm:$0xff]
        %v759 = vld [vmem:[#allocation5 + $0x8e0] sm:$0xff]
        %v760 = vld [vmem:[#allocation5 + $0x8e8] sm:$0xff]
        %v761 = vld [vmem:[#allocation5 + $0x8f0] sm:$0xff]
        %v762 = vld [vmem:[#allocation5 + $0x8f8] sm:$0xff]
        %v763 = vld [vmem:[#allocation5 + $0x900] sm:$0xff]
        %v764 = vld [vmem:[#allocation5 + $0x908] sm:$0xff]
        %v765 = vld [vmem:[#allocation5 + $0x910] sm:$0xff]
        %v766 = vld [vmem:[#allocation5 + $0x918] sm:$0xff]
        %v767 = vld [vmem:[#allocation5 + $0x920] sm:$0xff]
        %v768 = vld [vmem:[#allocation5 + $0x928] sm:$0xff]
        %v769 = vld [vmem:[#allocation5 + $0x930] sm:$0xff]
        %v770 = vld [vmem:[#allocation5 + $0x938] sm:$0xff]
        %v771 = vld [vmem:[#allocation5 + $0x940] sm:$0xff]
        %v772 = vld [vmem:[#allocation5 + $0x948] sm:$0xff]
        %v773 = vld [vmem:[#allocation5 + $0x950] sm:$0xff]
        %v774 = vld [vmem:[#allocation5 + $0x958] sm:$0xff]
        %v775 = vld [vmem:[#allocation5 + $0x960] sm:$0xff]
        %v776 = vld [vmem:[#allocation5 + $0x968] sm:$0xff]
        %v777 = vld [vmem:[#allocation5 + $0x970] sm:$0xff]
        %v778 = vld [vmem:[#allocation5 + $0x978] sm:$0xff]
        %v779 = vld [vmem:[#allocation5 + $0x980] sm:$0xff]
        %v780 = vld [vmem:[#allocation5 + $0x988] sm:$0xff]
        %v781 = vld [vmem:[#allocation5 + $0x990] sm:$0xff]
        %v782 = vld [vmem:[#allocation5 + $0x998] sm:$0xff]
        %v783 = vld [vmem:[#allocation5 + $0x9a0] sm:$0xff]
        %v784 = vld [vmem:[#allocation5 + $0x9a8] sm:$0xff]
        %v785 = vld [vmem:[#allocation5 + $0x9b0] sm:$0xff]
        %v786 = vld [vmem:[#allocation5 + $0x9b8] sm:$0xff]
        %v787 = vld [vmem:[#allocation5 + $0x9c0] sm:$0xff]
        %v788 = vld [vmem:[#allocation5 + $0x9c8] sm:$0xff]
        %v789 = vld [vmem:[#allocation5 + $0x9d0] sm:$0xff]
        %v790 = vld [vmem:[#allocation5 + $0x9d8] sm:$0xff]
        %v791 = vld [vmem:[#allocation5 + $0x9e0] sm:$0xff]
        %v792 = vld [vmem:[#allocation5 + $0x9e8] sm:$0xff]
        %v793 = vld [vmem:[#allocation5 + $0x9f0] sm:$0xff]
        %v794 = vld [vmem:[#allocation5 + $0x9f8] sm:$0xff]
        %v795 = vld [vmem:[#allocation5 + $0xa00] sm:$0xff]
        %v796 = vld [vmem:[#allocation5 + $0xa08] sm:$0xff]
        %v797 = vld [vmem:[#allocation5 + $0xa10] sm:$0xff]
        %v798 = vld [vmem:[#allocation5 + $0xa18] sm:$0xff]
        %v799 = vld [vmem:[#allocation5 + $0xa20] sm:$0xff]
        %v800 = vld [vmem:[#allocation5 + $0xa28] sm:$0xff]
        %v801 = vld [vmem:[#allocation5 + $0xa30] sm:$0xff]
        %v802 = vld [vmem:[#allocation5 + $0xa38] sm:$0xff]
        %v803 = vld [vmem:[#allocation5 + $0xa40] sm:$0xff]
        %v804 = vld [vmem:[#allocation5 + $0xa48] sm:$0xff]
        %v805 = vld [vmem:[#allocation5 + $0xa50] sm:$0xff]
        %v806 = vld [vmem:[#allocation5 + $0xa58] sm:$0xff]
        %v807 = vld [vmem:[#allocation5 + $0xa60] sm:$0xff]
        %v808 = vld [vmem:[#allocation5 + $0xa68] sm:$0xff]
        %v809 = vld [vmem:[#allocation5 + $0xa70] sm:$0xff]
        %v810 = vld [vmem:[#allocation5 + $0xa78] sm:$0xff]
        %v811 = vld [vmem:[#allocation5 + $0xa80] sm:$0xff]
        %v812 = vld [vmem:[#allocation5 + $0xa88] sm:$0xff]
        %v813 = vld [vmem:[#allocation5 + $0xa90] sm:$0xff]
        %v814 = vld [vmem:[#allocation5 + $0xa98] sm:$0xff]
        %v815 = vld [vmem:[#allocation5 + $0xaa0] sm:$0xff]
        %v816 = vld [vmem:[#allocation5 + $0xaa8] sm:$0xff]
        %v817 = vld [vmem:[#allocation5 + $0xab0] sm:$0xff]
        %v818 = vld [vmem:[#allocation5 + $0xab8] sm:$0xff]
        %v819 = vld [vmem:[#allocation5 + $0xac0] sm:$0xff]
        %v820 = vld [vmem:[#allocation5 + $0xac8] sm:$0xff]
        %v821 = vld [vmem:[#allocation5 + $0xad0] sm:$0xff]
        %v822 = vld [vmem:[#allocation5 + $0xad8] sm:$0xff]
        %v823 = vld [vmem:[#allocation5 + $0xae0] sm:$0xff]
        %v824 = vld [vmem:[#allocation5 + $0xae8] sm:$0xff]
        %v825 = vld [vmem:[#allocation5 + $0xaf0] sm:$0xff]
        %v826 = vld [vmem:[#allocation5 + $0xaf8] sm:$0xff]
        %v827 = vld [vmem:[#allocation5 + $0xb00] sm:$0xff]
        %v828 = vld [vmem:[#allocation5 + $0xb08] sm:$0xff]
        %v829 = vld [vmem:[#allocation5 + $0xb10] sm:$0xff]
        %v830 = vld [vmem:[#allocation5 + $0xb18] sm:$0xff]
        %v831 = vld [vmem:[#allocation5 + $0xb20] sm:$0xff]
        %v832 = vld [vmem:[#allocation5 + $0xb28] sm:$0xff]
        %v833 = vld [vmem:[#allocation5 + $0xb30] sm:$0xff]
        %v834 = vld [vmem:[#allocation5 + $0xb38] sm:$0xff]
        %v835 = vld [vmem:[#allocation5 + $0xb40] sm:$0xff]
        %v836 = vld [vmem:[#allocation5 + $0xb48] sm:$0xff]
        %v837 = vld [vmem:[#allocation5 + $0xb50] sm:$0xff]
        %v838 = vld [vmem:[#allocation5 + $0xb58] sm:$0xff]
        %v839 = vld [vmem:[#allocation5 + $0xb60] sm:$0xff]
        %v840 = vld [vmem:[#allocation5 + $0xb68] sm:$0xff]
        %v841 = vld [vmem:[#allocation5 + $0xb70] sm:$0xff]
        %v842 = vld [vmem:[#allocation5 + $0xb78] sm:$0xff]
        %v843 = vld [vmem:[#allocation5 + $0xb80] sm:$0xff]
        %v844 = vld [vmem:[#allocation5 + $0xb88] sm:$0xff]
        %v845 = vld [vmem:[#allocation5 + $0xb90] sm:$0xff]
        %v846 = vld [vmem:[#allocation5 + $0xb98] sm:$0xff]
        %v847 = vld [vmem:[#allocation5 + $0xba0] sm:$0xff]
        %v848 = vld [vmem:[#allocation5 + $0xba8] sm:$0xff]
        %v849 = vld [vmem:[#allocation5 + $0xbb0] sm:$0xff]
        %v850 = vld [vmem:[#allocation5 + $0xbb8] sm:$0xff]
        %v851 = vld [vmem:[#allocation5 + $0xbc0] sm:$0xff]
        %v852 = vld [vmem:[#allocation5 + $0xbc8] sm:$0xff]
        %v853 = vld [vmem:[#allocation5 + $0xbd0] sm:$0xff]
        %v854 = vld [vmem:[#allocation5 + $0xbd8] sm:$0xff]
        %v855 = vld [vmem:[#allocation5 + $0xbe0] sm:$0xff]
        %v856 = vld [vmem:[#allocation5 + $0xbe8] sm:$0xff]
        %v857 = vld [vmem:[#allocation5 + $0xbf0] sm:$0xff]
        %v858 = vld [vmem:[#allocation5 + $0xbf8] sm:$0xff]
        %v1243 = vunpack.c.l.b16 %v475
        %v1244 = vunpack.c.h.b16 %v475
        %v1245 = vunpack.c.l.b16 %v476
        %v1246 = vunpack.c.h.b16 %v476
        %v1247 = vunpack.c.l.b16 %v477
        %v1248 = vunpack.c.h.b16 %v477
        %v1249 = vunpack.c.l.b16 %v478
        %v1250 = vunpack.c.h.b16 %v478
        %v1251 = vunpack.c.l.b16 %v479
        %v1252 = vunpack.c.h.b16 %v479
        %v1253 = vunpack.c.l.b16 %v480
        %v1254 = vunpack.c.h.b16 %v480
        %v1255 = vunpack.c.l.b16 %v481
        %v1256 = vunpack.c.h.b16 %v481
        %v1257 = vunpack.c.l.b16 %v482
        %v1258 = vunpack.c.h.b16 %v482
        %v1259 = vunpack.c.l.b16 %v483
        %v1260 = vunpack.c.h.b16 %v483
        %v1261 = vunpack.c.l.b16 %v484
        %v1262 = vunpack.c.h.b16 %v484
        %v1263 = vunpack.c.l.b16 %v485
        %v1264 = vunpack.c.h.b16 %v485
        %v1265 = vunpack.c.l.b16 %v486
        %v1266 = vunpack.c.h.b16 %v486
        %v1267 = vunpack.c.l.b16 %v487
        %v1268 = vunpack.c.h.b16 %v487
        %v1269 = vunpack.c.l.b16 %v488
        %v1270 = vunpack.c.h.b16 %v488
        %v1271 = vunpack.c.l.b16 %v489
        %v1272 = vunpack.c.h.b16 %v489
        %v1273 = vunpack.c.l.b16 %v490
        %v1274 = vunpack.c.h.b16 %v490
        %v1275 = vunpack.c.l.b16 %v491
        %v1276 = vunpack.c.h.b16 %v491
        %v1277 = vunpack.c.l.b16 %v492
        %v1278 = vunpack.c.h.b16 %v492
        %v1279 = vunpack.c.l.b16 %v493
        %v1280 = vunpack.c.h.b16 %v493
        %v1281 = vunpack.c.l.b16 %v494
        %v1282 = vunpack.c.h.b16 %v494
        %v1283 = vunpack.c.l.b16 %v495
        %v1284 = vunpack.c.h.b16 %v495
        %v1285 = vunpack.c.l.b16 %v496
        %v1286 = vunpack.c.h.b16 %v496
        %v1287 = vunpack.c.l.b16 %v497
        %v1288 = vunpack.c.h.b16 %v497
        %v1289 = vunpack.c.l.b16 %v498
        %v1290 = vunpack.c.h.b16 %v498
        %v1291 = vunpack.c.l.b16 %v499
        %v1292 = vunpack.c.h.b16 %v499
        %v1293 = vunpack.c.l.b16 %v500
        %v1294 = vunpack.c.h.b16 %v500
        %v1295 = vunpack.c.l.b16 %v501
        %v1296 = vunpack.c.h.b16 %v501
        %v1297 = vunpack.c.l.b16 %v502
        %v1298 = vunpack.c.h.b16 %v502
        %v1299 = vunpack.c.l.b16 %v503
        %v1300 = vunpack.c.h.b16 %v503
        %v1301 = vunpack.c.l.b16 %v504
        %v1302 = vunpack.c.h.b16 %v504
        %v1303 = vunpack.c.l.b16 %v505
        %v1304 = vunpack.c.h.b16 %v505
        %v1305 = vunpack.c.l.b16 %v506
        %v1306 = vunpack.c.h.b16 %v506
        %v1307 = vunpack.c.l.b16 %v507
        %v1308 = vunpack.c.h.b16 %v507
        %v1309 = vunpack.c.l.b16 %v508
        %v1310 = vunpack.c.h.b16 %v508
        %v1311 = vunpack.c.l.b16 %v509
        %v1312 = vunpack.c.h.b16 %v509
        %v1313 = vunpack.c.l.b16 %v510
        %v1314 = vunpack.c.h.b16 %v510
        %v1315 = vunpack.c.l.b16 %v511
        %v1316 = vunpack.c.h.b16 %v511
        %v1317 = vunpack.c.l.b16 %v512
        %v1318 = vunpack.c.h.b16 %v512
        %v1319 = vunpack.c.l.b16 %v513
        %v1320 = vunpack.c.h.b16 %v513
        %v1321 = vunpack.c.l.b16 %v514
        %v1322 = vunpack.c.h.b16 %v514
        %v1323 = vunpack.c.l.b16 %v515
        %v1324 = vunpack.c.h.b16 %v515
        %v1325 = vunpack.c.l.b16 %v516
        %v1326 = vunpack.c.h.b16 %v516
        %v1327 = vunpack.c.l.b16 %v517
        %v1328 = vunpack.c.h.b16 %v517
        %v1329 = vunpack.c.l.b16 %v518
        %v1330 = vunpack.c.h.b16 %v518
        %v1331 = vunpack.c.l.b16 %v519
        %v1332 = vunpack.c.h.b16 %v519
        %v1333 = vunpack.c.l.b16 %v520
        %v1334 = vunpack.c.h.b16 %v520
        %v1335 = vunpack.c.l.b16 %v521
        %v1336 = vunpack.c.h.b16 %v521
        %v1337 = vunpack.c.l.b16 %v522
        %v1338 = vunpack.c.h.b16 %v522
        %v1339 = vunpack.c.l.b16 %v523
        %v1340 = vunpack.c.h.b16 %v523
        %v1341 = vunpack.c.l.b16 %v524
        %v1342 = vunpack.c.h.b16 %v524
        %v1343 = vunpack.c.l.b16 %v525
        %v1344 = vunpack.c.h.b16 %v525
        %v1345 = vunpack.c.l.b16 %v526
        %v1346 = vunpack.c.h.b16 %v526
        %v1347 = vunpack.c.l.b16 %v527
        %v1348 = vunpack.c.h.b16 %v527
        %v1349 = vunpack.c.l.b16 %v528
        %v1350 = vunpack.c.h.b16 %v528
        %v1351 = vunpack.c.l.b16 %v529
        %v1352 = vunpack.c.h.b16 %v529
        %v1353 = vunpack.c.l.b16 %v530
        %v1354 = vunpack.c.h.b16 %v530
        %v1355 = vunpack.c.l.b16 %v531
        %v1356 = vunpack.c.h.b16 %v531
        %v1357 = vunpack.c.l.b16 %v532
        %v1358 = vunpack.c.h.b16 %v532
        %v1359 = vunpack.c.l.b16 %v533
        %v1360 = vunpack.c.h.b16 %v533
        %v1361 = vunpack.c.l.b16 %v534
        %v1362 = vunpack.c.h.b16 %v534
        %v1363 = vunpack.c.l.b16 %v535
        %v1364 = vunpack.c.h.b16 %v535
        %v1365 = vunpack.c.l.b16 %v536
        %v1366 = vunpack.c.h.b16 %v536
        %v1367 = vunpack.c.l.b16 %v537
        %v1368 = vunpack.c.h.b16 %v537
        %v1369 = vunpack.c.l.b16 %v538
        %v1370 = vunpack.c.h.b16 %v538
        %v1371 = vunpack.c.l.b16 %v539
        %v1372 = vunpack.c.h.b16 %v539
        %v1373 = vunpack.c.l.b16 %v540
        %v1374 = vunpack.c.h.b16 %v540
        %v1375 = vunpack.c.l.b16 %v541
        %v1376 = vunpack.c.h.b16 %v541
        %v1377 = vunpack.c.l.b16 %v542
        %v1378 = vunpack.c.h.b16 %v542
        %v1379 = vunpack.c.l.b16 %v543
        %v1380 = vunpack.c.h.b16 %v543
        %v1381 = vunpack.c.l.b16 %v544
        %v1382 = vunpack.c.h.b16 %v544
        %v1383 = vunpack.c.l.b16 %v545
        %v1384 = vunpack.c.h.b16 %v545
        %v1385 = vunpack.c.l.b16 %v546
        %v1386 = vunpack.c.h.b16 %v546
        %v1387 = vunpack.c.l.b16 %v547
        %v1388 = vunpack.c.h.b16 %v547
        %v1389 = vunpack.c.l.b16 %v548
        %v1390 = vunpack.c.h.b16 %v548
        %v1391 = vunpack.c.l.b16 %v549
        %v1392 = vunpack.c.h.b16 %v549
        %v1393 = vunpack.c.l.b16 %v550
        %v1394 = vunpack.c.h.b16 %v550
        %v1395 = vunpack.c.l.b16 %v551
        %v1396 = vunpack.c.h.b16 %v551
        %v1397 = vunpack.c.l.b16 %v552
        %v1398 = vunpack.c.h.b16 %v552
        %v1399 = vunpack.c.l.b16 %v553
        %v1400 = vunpack.c.h.b16 %v553
        %v1401 = vunpack.c.l.b16 %v554
        %v1402 = vunpack.c.h.b16 %v554
        %v1403 = vunpack.c.l.b16 %v555
        %v1404 = vunpack.c.h.b16 %v555
        %v1405 = vunpack.c.l.b16 %v556
        %v1406 = vunpack.c.h.b16 %v556
        %v1407 = vunpack.c.l.b16 %v557
        %v1408 = vunpack.c.h.b16 %v557
        %v1409 = vunpack.c.l.b16 %v558
        %v1410 = vunpack.c.h.b16 %v558
        %v1411 = vunpack.c.l.b16 %v559
        %v1412 = vunpack.c.h.b16 %v559
        %v1413 = vunpack.c.l.b16 %v560
        %v1414 = vunpack.c.h.b16 %v560
        %v1415 = vunpack.c.l.b16 %v561
        %v1416 = vunpack.c.h.b16 %v561
        %v1417 = vunpack.c.l.b16 %v562
        %v1418 = vunpack.c.h.b16 %v562
        %v1419 = vunpack.c.l.b16 %v563
        %v1420 = vunpack.c.h.b16 %v563
        %v1421 = vunpack.c.l.b16 %v564
        %v1422 = vunpack.c.h.b16 %v564
        %v1423 = vunpack.c.l.b16 %v565
        %v1424 = vunpack.c.h.b16 %v565
        %v1425 = vunpack.c.l.b16 %v566
        %v1426 = vunpack.c.h.b16 %v566
        %v1427 = vunpack.c.l.b16 %v567
        %v1428 = vunpack.c.h.b16 %v567
        %v1429 = vunpack.c.l.b16 %v568
        %v1430 = vunpack.c.h.b16 %v568
        %v1431 = vunpack.c.l.b16 %v569
        %v1432 = vunpack.c.h.b16 %v569
        %v1433 = vunpack.c.l.b16 %v570
        %v1434 = vunpack.c.h.b16 %v570
        %v1435 = vunpack.c.l.b16 %v571
        %v1436 = vunpack.c.h.b16 %v571
        %v1437 = vunpack.c.l.b16 %v572
        %v1438 = vunpack.c.h.b16 %v572
        %v1439 = vunpack.c.l.b16 %v573
        %v1440 = vunpack.c.h.b16 %v573
        %v1441 = vunpack.c.l.b16 %v574
        %v1442 = vunpack.c.h.b16 %v574
        %v1443 = vunpack.c.l.b16 %v575
        %v1444 = vunpack.c.h.b16 %v575
        %v1445 = vunpack.c.l.b16 %v576
        %v1446 = vunpack.c.h.b16 %v576
        %v1447 = vunpack.c.l.b16 %v577
        %v1448 = vunpack.c.h.b16 %v577
        %v1449 = vunpack.c.l.b16 %v578
        %v1450 = vunpack.c.h.b16 %v578
        %v1451 = vunpack.c.l.b16 %v579
        %v1452 = vunpack.c.h.b16 %v579
        %v1453 = vunpack.c.l.b16 %v580
        %v1454 = vunpack.c.h.b16 %v580
        %v1455 = vunpack.c.l.b16 %v581
        %v1456 = vunpack.c.h.b16 %v581
        %v1457 = vunpack.c.l.b16 %v582
        %v1458 = vunpack.c.h.b16 %v582
        %v1459 = vunpack.c.l.b16 %v583
        %v1460 = vunpack.c.h.b16 %v583
        %v1461 = vunpack.c.l.b16 %v584
        %v1462 = vunpack.c.h.b16 %v584
        %v1463 = vunpack.c.l.b16 %v585
        %v1464 = vunpack.c.h.b16 %v585
        %v1465 = vunpack.c.l.b16 %v586
        %v1466 = vunpack.c.h.b16 %v586
        %v1467 = vunpack.c.l.b16 %v587
        %v1468 = vunpack.c.h.b16 %v587
        %v1469 = vunpack.c.l.b16 %v588
        %v1470 = vunpack.c.h.b16 %v588
        %v1471 = vunpack.c.l.b16 %v589
        %v1472 = vunpack.c.h.b16 %v589
        %v1473 = vunpack.c.l.b16 %v590
        %v1474 = vunpack.c.h.b16 %v590
        %v1475 = vunpack.c.l.b16 %v591
        %v1476 = vunpack.c.h.b16 %v591
        %v1477 = vunpack.c.l.b16 %v592
        %v1478 = vunpack.c.h.b16 %v592
        %v1479 = vunpack.c.l.b16 %v593
        %v1480 = vunpack.c.h.b16 %v593
        %v1481 = vunpack.c.l.b16 %v594
        %v1482 = vunpack.c.h.b16 %v594
        %v1483 = vunpack.c.l.b16 %v595
        %v1484 = vunpack.c.h.b16 %v595
        %v1485 = vunpack.c.l.b16 %v596
        %v1486 = vunpack.c.h.b16 %v596
        %v1487 = vunpack.c.l.b16 %v597
        %v1488 = vunpack.c.h.b16 %v597
        %v1489 = vunpack.c.l.b16 %v598
        %v1490 = vunpack.c.h.b16 %v598
        %v1491 = vunpack.c.l.b16 %v599
        %v1492 = vunpack.c.h.b16 %v599
        %v1493 = vunpack.c.l.b16 %v600
        %v1494 = vunpack.c.h.b16 %v600
        %v1495 = vunpack.c.l.b16 %v601
        %v1496 = vunpack.c.h.b16 %v601
        %v1497 = vunpack.c.l.b16 %v602
        %v1498 = vunpack.c.h.b16 %v602
        %v1499 = vunpack.c.l.b16 %v603
        %v1500 = vunpack.c.h.b16 %v603
        %v1501 = vunpack.c.l.b16 %v604
        %v1502 = vunpack.c.h.b16 %v604
        %v1503 = vunpack.c.l.b16 %v605
        %v1504 = vunpack.c.h.b16 %v605
        %v1505 = vunpack.c.l.b16 %v606
        %v1506 = vunpack.c.h.b16 %v606
        %v1507 = vunpack.c.l.b16 %v607
        %v1508 = vunpack.c.h.b16 %v607
        %v1509 = vunpack.c.l.b16 %v608
        %v1510 = vunpack.c.h.b16 %v608
        %v1511 = vunpack.c.l.b16 %v609
        %v1512 = vunpack.c.h.b16 %v609
        %v1513 = vunpack.c.l.b16 %v610
        %v1514 = vunpack.c.h.b16 %v610
        %v1515 = vunpack.c.l.b16 %v611
        %v1516 = vunpack.c.h.b16 %v611
        %v1517 = vunpack.c.l.b16 %v612
        %v1518 = vunpack.c.h.b16 %v612
        %v1519 = vunpack.c.l.b16 %v613
        %v1520 = vunpack.c.h.b16 %v613
        %v1521 = vunpack.c.l.b16 %v614
        %v1522 = vunpack.c.h.b16 %v614
        %v1523 = vunpack.c.l.b16 %v615
        %v1524 = vunpack.c.h.b16 %v615
        %v1525 = vunpack.c.l.b16 %v616
        %v1526 = vunpack.c.h.b16 %v616
        %v1527 = vunpack.c.l.b16 %v617
        %v1528 = vunpack.c.h.b16 %v617
        %v1529 = vunpack.c.l.b16 %v618
        %v1530 = vunpack.c.h.b16 %v618
        %v1531 = vunpack.c.l.b16 %v619
        %v1532 = vunpack.c.h.b16 %v619
        %v1533 = vunpack.c.l.b16 %v620
        %v1534 = vunpack.c.h.b16 %v620
        %v1535 = vunpack.c.l.b16 %v621
        %v1536 = vunpack.c.h.b16 %v621
        %v1537 = vunpack.c.l.b16 %v622
        %v1538 = vunpack.c.h.b16 %v622
        %v1539 = vunpack.c.l.b16 %v623
        %v1540 = vunpack.c.h.b16 %v623
        %v1541 = vunpack.c.l.b16 %v624
        %v1542 = vunpack.c.h.b16 %v624
        %v1543 = vunpack.c.l.b16 %v625
        %v1544 = vunpack.c.h.b16 %v625
        %v1545 = vunpack.c.l.b16 %v626
        %v1546 = vunpack.c.h.b16 %v626
        %v1547 = vunpack.c.l.b16 %v627
        %v1548 = vunpack.c.h.b16 %v627
        %v1549 = vunpack.c.l.b16 %v628
        %v1550 = vunpack.c.h.b16 %v628
        %v1551 = vunpack.c.l.b16 %v629
        %v1552 = vunpack.c.h.b16 %v629
        %v1553 = vunpack.c.l.b16 %v630
        %v1554 = vunpack.c.h.b16 %v630
        %v1555 = vunpack.c.l.b16 %v631
        %v1556 = vunpack.c.h.b16 %v631
        %v1557 = vunpack.c.l.b16 %v632
        %v1558 = vunpack.c.h.b16 %v632
        %v1559 = vunpack.c.l.b16 %v633
        %v1560 = vunpack.c.h.b16 %v633
        %v1561 = vunpack.c.l.b16 %v634
        %v1562 = vunpack.c.h.b16 %v634
        %v1563 = vunpack.c.l.b16 %v635
        %v1564 = vunpack.c.h.b16 %v635
        %v1565 = vunpack.c.l.b16 %v636
        %v1566 = vunpack.c.h.b16 %v636
        %v1567 = vunpack.c.l.b16 %v637
        %v1568 = vunpack.c.h.b16 %v637
        %v1569 = vunpack.c.l.b16 %v638
        %v1570 = vunpack.c.h.b16 %v638
        %v1571 = vunpack.c.l.b16 %v639
        %v1572 = vunpack.c.h.b16 %v639
        %v1573 = vunpack.c.l.b16 %v640
        %v1574 = vunpack.c.h.b16 %v640
        %v1575 = vunpack.c.l.b16 %v641
        %v1576 = vunpack.c.h.b16 %v641
        %v1577 = vunpack.c.l.b16 %v642
        %v1578 = vunpack.c.h.b16 %v642
        %v1579 = vunpack.c.l.b16 %v643
        %v1580 = vunpack.c.h.b16 %v643
        %v1581 = vunpack.c.l.b16 %v644
        %v1582 = vunpack.c.h.b16 %v644
        %v1583 = vunpack.c.l.b16 %v645
        %v1584 = vunpack.c.h.b16 %v645
        %v1585 = vunpack.c.l.b16 %v646
        %v1586 = vunpack.c.h.b16 %v646
        %v1587 = vunpack.c.l.b16 %v647
        %v1588 = vunpack.c.h.b16 %v647
        %v1589 = vunpack.c.l.b16 %v648
        %v1590 = vunpack.c.h.b16 %v648
        %v1591 = vunpack.c.l.b16 %v649
        %v1592 = vunpack.c.h.b16 %v649
        %v1593 = vunpack.c.l.b16 %v650
        %v1594 = vunpack.c.h.b16 %v650
        %v1595 = vunpack.c.l.b16 %v651
        %v1596 = vunpack.c.h.b16 %v651
        %v1597 = vunpack.c.l.b16 %v652
        %v1598 = vunpack.c.h.b16 %v652
        %v1599 = vunpack.c.l.b16 %v653
        %v1600 = vunpack.c.h.b16 %v653
        %v1601 = vunpack.c.l.b16 %v654
        %v1602 = vunpack.c.h.b16 %v654
        %v1603 = vunpack.c.l.b16 %v655
        %v1604 = vunpack.c.h.b16 %v655
        %v1605 = vunpack.c.l.b16 %v656
        %v1606 = vunpack.c.h.b16 %v656
        %v1607 = vunpack.c.l.b16 %v657
        %v1608 = vunpack.c.h.b16 %v657
        %v1609 = vunpack.c.l.b16 %v658
        %v1610 = vunpack.c.h.b16 %v658
        %v1611 = vunpack.c.l.b16 %v659
        %v1612 = vunpack.c.h.b16 %v659
        %v1613 = vunpack.c.l.b16 %v660
        %v1614 = vunpack.c.h.b16 %v660
        %v1615 = vunpack.c.l.b16 %v661
        %v1616 = vunpack.c.h.b16 %v661
        %v1617 = vunpack.c.l.b16 %v662
        %v1618 = vunpack.c.h.b16 %v662
        %v1619 = vunpack.c.l.b16 %v663
        %v1620 = vunpack.c.h.b16 %v663
        %v1621 = vunpack.c.l.b16 %v664
        %v1622 = vunpack.c.h.b16 %v664
        %v1623 = vunpack.c.l.b16 %v665
        %v1624 = vunpack.c.h.b16 %v665
        %v1625 = vunpack.c.l.b16 %v666
        %v1626 = vunpack.c.h.b16 %v666
        %v1627 = vunpack.c.l.b16 %v667
        %v1628 = vunpack.c.h.b16 %v667
        %v1629 = vunpack.c.l.b16 %v668
        %v1630 = vunpack.c.h.b16 %v668
        %v1631 = vunpack.c.l.b16 %v669
        %v1632 = vunpack.c.h.b16 %v669
        %v1633 = vunpack.c.l.b16 %v670
        %v1634 = vunpack.c.h.b16 %v670
        %v1635 = vunpack.c.l.b16 %v671
        %v1636 = vunpack.c.h.b16 %v671
        %v1637 = vunpack.c.l.b16 %v672
        %v1638 = vunpack.c.h.b16 %v672
        %v1639 = vunpack.c.l.b16 %v673
        %v1640 = vunpack.c.h.b16 %v673
        %v1641 = vunpack.c.l.b16 %v674
        %v1642 = vunpack.c.h.b16 %v674
        %v1643 = vunpack.c.l.b16 %v675
        %v1644 = vunpack.c.h.b16 %v675
        %v1645 = vunpack.c.l.b16 %v676
        %v1646 = vunpack.c.h.b16 %v676
        %v1647 = vunpack.c.l.b16 %v677
        %v1648 = vunpack.c.h.b16 %v677
        %v1649 = vunpack.c.l.b16 %v678
        %v1650 = vunpack.c.h.b16 %v678
        %v1651 = vunpack.c.l.b16 %v679
        %v1652 = vunpack.c.h.b16 %v679
        %v1653 = vunpack.c.l.b16 %v680
        %v1654 = vunpack.c.h.b16 %v680
        %v1655 = vunpack.c.l.b16 %v681
        %v1656 = vunpack.c.h.b16 %v681
        %v1657 = vunpack.c.l.b16 %v682
        %v1658 = vunpack.c.h.b16 %v682
        %v1659 = vunpack.c.l.b16 %v683
        %v1660 = vunpack.c.h.b16 %v683
        %v1661 = vunpack.c.l.b16 %v684
        %v1662 = vunpack.c.h.b16 %v684
        %v1663 = vunpack.c.l.b16 %v685
        %v1664 = vunpack.c.h.b16 %v685
        %v1665 = vunpack.c.l.b16 %v686
        %v1666 = vunpack.c.h.b16 %v686
        %v1667 = vunpack.c.l.b16 %v687
        %v1668 = vunpack.c.h.b16 %v687
        %v1669 = vunpack.c.l.b16 %v688
        %v1670 = vunpack.c.h.b16 %v688
        %v1671 = vunpack.c.l.b16 %v689
        %v1672 = vunpack.c.h.b16 %v689
        %v1673 = vunpack.c.l.b16 %v690
        %v1674 = vunpack.c.h.b16 %v690
        %v1675 = vunpack.c.l.b16 %v691
        %v1676 = vunpack.c.h.b16 %v691
        %v1677 = vunpack.c.l.b16 %v692
        %v1678 = vunpack.c.h.b16 %v692
        %v1679 = vunpack.c.l.b16 %v693
        %v1680 = vunpack.c.h.b16 %v693
        %v1681 = vunpack.c.l.b16 %v694
        %v1682 = vunpack.c.h.b16 %v694
        %v1683 = vunpack.c.l.b16 %v695
        %v1684 = vunpack.c.h.b16 %v695
        %v1685 = vunpack.c.l.b16 %v696
        %v1686 = vunpack.c.h.b16 %v696
        %v1687 = vunpack.c.l.b16 %v697
        %v1688 = vunpack.c.h.b16 %v697
        %v1689 = vunpack.c.l.b16 %v698
        %v1690 = vunpack.c.h.b16 %v698
        %v1691 = vunpack.c.l.b16 %v699
        %v1692 = vunpack.c.h.b16 %v699
        %v1693 = vunpack.c.l.b16 %v700
        %v1694 = vunpack.c.h.b16 %v700
        %v1695 = vunpack.c.l.b16 %v701
        %v1696 = vunpack.c.h.b16 %v701
        %v1697 = vunpack.c.l.b16 %v702
        %v1698 = vunpack.c.h.b16 %v702
        %v1699 = vunpack.c.l.b16 %v703
        %v1700 = vunpack.c.h.b16 %v703
        %v1701 = vunpack.c.l.b16 %v704
        %v1702 = vunpack.c.h.b16 %v704
        %v1703 = vunpack.c.l.b16 %v705
        %v1704 = vunpack.c.h.b16 %v705
        %v1705 = vunpack.c.l.b16 %v706
        %v1706 = vunpack.c.h.b16 %v706
        %v1707 = vunpack.c.l.b16 %v707
        %v1708 = vunpack.c.h.b16 %v707
        %v1709 = vunpack.c.l.b16 %v708
        %v1710 = vunpack.c.h.b16 %v708
        %v1711 = vunpack.c.l.b16 %v709
        %v1712 = vunpack.c.h.b16 %v709
        %v1713 = vunpack.c.l.b16 %v710
        %v1714 = vunpack.c.h.b16 %v710
        %v1715 = vunpack.c.l.b16 %v711
        %v1716 = vunpack.c.h.b16 %v711
        %v1717 = vunpack.c.l.b16 %v712
        %v1718 = vunpack.c.h.b16 %v712
        %v1719 = vunpack.c.l.b16 %v713
        %v1720 = vunpack.c.h.b16 %v713
        %v1721 = vunpack.c.l.b16 %v714
        %v1722 = vunpack.c.h.b16 %v714
        %v1723 = vunpack.c.l.b16 %v715
        %v1724 = vunpack.c.h.b16 %v715
        %v1725 = vunpack.c.l.b16 %v716
        %v1726 = vunpack.c.h.b16 %v716
        %v1727 = vunpack.c.l.b16 %v717
        %v1728 = vunpack.c.h.b16 %v717
        %v1729 = vunpack.c.l.b16 %v718
        %v1730 = vunpack.c.h.b16 %v718
        %v1731 = vunpack.c.l.b16 %v719
        %v1732 = vunpack.c.h.b16 %v719
        %v1733 = vunpack.c.l.b16 %v720
        %v1734 = vunpack.c.h.b16 %v720
        %v1735 = vunpack.c.l.b16 %v721
        %v1736 = vunpack.c.h.b16 %v721
        %v1737 = vunpack.c.l.b16 %v722
        %v1738 = vunpack.c.h.b16 %v722
        %v1739 = vunpack.c.l.b16 %v723
        %v1740 = vunpack.c.h.b16 %v723
        %v1741 = vunpack.c.l.b16 %v724
        %v1742 = vunpack.c.h.b16 %v724
        %v1743 = vunpack.c.l.b16 %v725
        %v1744 = vunpack.c.h.b16 %v725
        %v1745 = vunpack.c.l.b16 %v726
        %v1746 = vunpack.c.h.b16 %v726
        %v1747 = vunpack.c.l.b16 %v727
        %v1748 = vunpack.c.h.b16 %v727
        %v1749 = vunpack.c.l.b16 %v728
        %v1750 = vunpack.c.h.b16 %v728
        %v1751 = vunpack.c.l.b16 %v729
        %v1752 = vunpack.c.h.b16 %v729
        %v1753 = vunpack.c.l.b16 %v730
        %v1754 = vunpack.c.h.b16 %v730
        %v1755 = vunpack.c.l.b16 %v731
        %v1756 = vunpack.c.h.b16 %v731
        %v1757 = vunpack.c.l.b16 %v732
        %v1758 = vunpack.c.h.b16 %v732
        %v1759 = vunpack.c.l.b16 %v733
        %v1760 = vunpack.c.h.b16 %v733
        %v1761 = vunpack.c.l.b16 %v734
        %v1762 = vunpack.c.h.b16 %v734
        %v1763 = vunpack.c.l.b16 %v735
        %v1764 = vunpack.c.h.b16 %v735
        %v1765 = vunpack.c.l.b16 %v736
        %v1766 = vunpack.c.h.b16 %v736
        %v1767 = vunpack.c.l.b16 %v737
        %v1768 = vunpack.c.h.b16 %v737
        %v1769 = vunpack.c.l.b16 %v738
        %v1770 = vunpack.c.h.b16 %v738
        %v1771 = vunpack.c.l.b16 %v739
        %v1772 = vunpack.c.h.b16 %v739
        %v1773 = vunpack.c.l.b16 %v740
        %v1774 = vunpack.c.h.b16 %v740
        %v1775 = vunpack.c.l.b16 %v741
        %v1776 = vunpack.c.h.b16 %v741
        %v1777 = vunpack.c.l.b16 %v742
        %v1778 = vunpack.c.h.b16 %v742
        %v1779 = vunpack.c.l.b16 %v743
        %v1780 = vunpack.c.h.b16 %v743
        %v1781 = vunpack.c.l.b16 %v744
        %v1782 = vunpack.c.h.b16 %v744
        %v1783 = vunpack.c.l.b16 %v745
        %v1784 = vunpack.c.h.b16 %v745
        %v1785 = vunpack.c.l.b16 %v746
        %v1786 = vunpack.c.h.b16 %v746
        %v1787 = vunpack.c.l.b16 %v747
        %v1788 = vunpack.c.h.b16 %v747
        %v1789 = vunpack.c.l.b16 %v748
        %v1790 = vunpack.c.h.b16 %v748
        %v1791 = vunpack.c.l.b16 %v749
        %v1792 = vunpack.c.h.b16 %v749
        %v1793 = vunpack.c.l.b16 %v750
        %v1794 = vunpack.c.h.b16 %v750
        %v1795 = vunpack.c.l.b16 %v751
        %v1796 = vunpack.c.h.b16 %v751
        %v1797 = vunpack.c.l.b16 %v752
        %v1798 = vunpack.c.h.b16 %v752
        %v1799 = vunpack.c.l.b16 %v753
        %v1800 = vunpack.c.h.b16 %v753
        %v1801 = vunpack.c.l.b16 %v754
        %v1802 = vunpack.c.h.b16 %v754
        %v1803 = vunpack.c.l.b16 %v755
        %v1804 = vunpack.c.h.b16 %v755
        %v1805 = vunpack.c.l.b16 %v756
        %v1806 = vunpack.c.h.b16 %v756
        %v1807 = vunpack.c.l.b16 %v757
        %v1808 = vunpack.c.h.b16 %v757
        %v1809 = vunpack.c.l.b16 %v758
        %v1810 = vunpack.c.h.b16 %v758
        %v1811 = vunpack.c.l.b16 %v759
        %v1812 = vunpack.c.h.b16 %v759
        %v1813 = vunpack.c.l.b16 %v760
        %v1814 = vunpack.c.h.b16 %v760
        %v1815 = vunpack.c.l.b16 %v761
        %v1816 = vunpack.c.h.b16 %v761
        %v1817 = vunpack.c.l.b16 %v762
        %v1818 = vunpack.c.h.b16 %v762
        %v1819 = vunpack.c.l.b16 %v763
        %v1820 = vunpack.c.h.b16 %v763
        %v1821 = vunpack.c.l.b16 %v764
        %v1822 = vunpack.c.h.b16 %v764
        %v1823 = vunpack.c.l.b16 %v765
        %v1824 = vunpack.c.h.b16 %v765
        %v1825 = vunpack.c.l.b16 %v766
        %v1826 = vunpack.c.h.b16 %v766
        %v1827 = vunpack.c.l.b16 %v767
        %v1828 = vunpack.c.h.b16 %v767
        %v1829 = vunpack.c.l.b16 %v768
        %v1830 = vunpack.c.h.b16 %v768
        %v1831 = vunpack.c.l.b16 %v769
        %v1832 = vunpack.c.h.b16 %v769
        %v1833 = vunpack.c.l.b16 %v770
        %v1834 = vunpack.c.h.b16 %v770
        %v1835 = vunpack.c.l.b16 %v771
        %v1836 = vunpack.c.h.b16 %v771
        %v1837 = vunpack.c.l.b16 %v772
        %v1838 = vunpack.c.h.b16 %v772
        %v1839 = vunpack.c.l.b16 %v773
        %v1840 = vunpack.c.h.b16 %v773
        %v1841 = vunpack.c.l.b16 %v774
        %v1842 = vunpack.c.h.b16 %v774
        %v1843 = vunpack.c.l.b16 %v775
        %v1844 = vunpack.c.h.b16 %v775
        %v1845 = vunpack.c.l.b16 %v776
        %v1846 = vunpack.c.h.b16 %v776
        %v1847 = vunpack.c.l.b16 %v777
        %v1848 = vunpack.c.h.b16 %v777
        %v1849 = vunpack.c.l.b16 %v778
        %v1850 = vunpack.c.h.b16 %v778
        %v1851 = vunpack.c.l.b16 %v779
        %v1852 = vunpack.c.h.b16 %v779
        %v1853 = vunpack.c.l.b16 %v780
        %v1854 = vunpack.c.h.b16 %v780
        %v1855 = vunpack.c.l.b16 %v781
        %v1856 = vunpack.c.h.b16 %v781
        %v1857 = vunpack.c.l.b16 %v782
        %v1858 = vunpack.c.h.b16 %v782
        %v1859 = vunpack.c.l.b16 %v783
        %v1860 = vunpack.c.h.b16 %v783
        %v1861 = vunpack.c.l.b16 %v784
        %v1862 = vunpack.c.h.b16 %v784
        %v1863 = vunpack.c.l.b16 %v785
        %v1864 = vunpack.c.h.b16 %v785
        %v1865 = vunpack.c.l.b16 %v786
        %v1866 = vunpack.c.h.b16 %v786
        %v1867 = vunpack.c.l.b16 %v787
        %v1868 = vunpack.c.h.b16 %v787
        %v1869 = vunpack.c.l.b16 %v788
        %v1870 = vunpack.c.h.b16 %v788
        %v1871 = vunpack.c.l.b16 %v789
        %v1872 = vunpack.c.h.b16 %v789
        %v1873 = vunpack.c.l.b16 %v790
        %v1874 = vunpack.c.h.b16 %v790
        %v1875 = vunpack.c.l.b16 %v791
        %v1876 = vunpack.c.h.b16 %v791
        %v1877 = vunpack.c.l.b16 %v792
        %v1878 = vunpack.c.h.b16 %v792
        %v1879 = vunpack.c.l.b16 %v793
        %v1880 = vunpack.c.h.b16 %v793
        %v1881 = vunpack.c.l.b16 %v794
        %v1882 = vunpack.c.h.b16 %v794
        %v1883 = vunpack.c.l.b16 %v795
        %v1884 = vunpack.c.h.b16 %v795
        %v1885 = vunpack.c.l.b16 %v796
        %v1886 = vunpack.c.h.b16 %v796
        %v1887 = vunpack.c.l.b16 %v797
        %v1888 = vunpack.c.h.b16 %v797
        %v1889 = vunpack.c.l.b16 %v798
        %v1890 = vunpack.c.h.b16 %v798
        %v1891 = vunpack.c.l.b16 %v799
        %v1892 = vunpack.c.h.b16 %v799
        %v1893 = vunpack.c.l.b16 %v800
        %v1894 = vunpack.c.h.b16 %v800
        %v1895 = vunpack.c.l.b16 %v801
        %v1896 = vunpack.c.h.b16 %v801
        %v1897 = vunpack.c.l.b16 %v802
        %v1898 = vunpack.c.h.b16 %v802
        %v1899 = vunpack.c.l.b16 %v803
        %v1900 = vunpack.c.h.b16 %v803
        %v1901 = vunpack.c.l.b16 %v804
        %v1902 = vunpack.c.h.b16 %v804
        %v1903 = vunpack.c.l.b16 %v805
        %v1904 = vunpack.c.h.b16 %v805
        %v1905 = vunpack.c.l.b16 %v806
        %v1906 = vunpack.c.h.b16 %v806
        %v1907 = vunpack.c.l.b16 %v807
        %v1908 = vunpack.c.h.b16 %v807
        %v1909 = vunpack.c.l.b16 %v808
        %v1910 = vunpack.c.h.b16 %v808
        %v1911 = vunpack.c.l.b16 %v809
        %v1912 = vunpack.c.h.b16 %v809
        %v1913 = vunpack.c.l.b16 %v810
        %v1914 = vunpack.c.h.b16 %v810
        %v1915 = vunpack.c.l.b16 %v811
        %v1916 = vunpack.c.h.b16 %v811
        %v1917 = vunpack.c.l.b16 %v812
        %v1918 = vunpack.c.h.b16 %v812
        %v1919 = vunpack.c.l.b16 %v813
        %v1920 = vunpack.c.h.b16 %v813
        %v1921 = vunpack.c.l.b16 %v814
        %v1922 = vunpack.c.h.b16 %v814
        %v1923 = vunpack.c.l.b16 %v815
        %v1924 = vunpack.c.h.b16 %v815
        %v1925 = vunpack.c.l.b16 %v816
        %v1926 = vunpack.c.h.b16 %v816
        %v1927 = vunpack.c.l.b16 %v817
        %v1928 = vunpack.c.h.b16 %v817
        %v1929 = vunpack.c.l.b16 %v818
        %v1930 = vunpack.c.h.b16 %v818
        %v1931 = vunpack.c.l.b16 %v819
        %v1932 = vunpack.c.h.b16 %v819
        %v1933 = vunpack.c.l.b16 %v820
        %v1934 = vunpack.c.h.b16 %v820
        %v1935 = vunpack.c.l.b16 %v821
        %v1936 = vunpack.c.h.b16 %v821
        %v1937 = vunpack.c.l.b16 %v822
        %v1938 = vunpack.c.h.b16 %v822
        %v1939 = vunpack.c.l.b16 %v823
        %v1940 = vunpack.c.h.b16 %v823
        %v1941 = vunpack.c.l.b16 %v824
        %v1942 = vunpack.c.h.b16 %v824
        %v1943 = vunpack.c.l.b16 %v825
        %v1944 = vunpack.c.h.b16 %v825
        %v1945 = vunpack.c.l.b16 %v826
        %v1946 = vunpack.c.h.b16 %v826
        %v1947 = vunpack.c.l.b16 %v827
        %v1948 = vunpack.c.h.b16 %v827
        %v1949 = vunpack.c.l.b16 %v828
        %v1950 = vunpack.c.h.b16 %v828
        %v1951 = vunpack.c.l.b16 %v829
        %v1952 = vunpack.c.h.b16 %v829
        %v1953 = vunpack.c.l.b16 %v830
        %v1954 = vunpack.c.h.b16 %v830
        %v1955 = vunpack.c.l.b16 %v831
        %v1956 = vunpack.c.h.b16 %v831
        %v1957 = vunpack.c.l.b16 %v832
        %v1958 = vunpack.c.h.b16 %v832
        %v1959 = vunpack.c.l.b16 %v833
        %v1960 = vunpack.c.h.b16 %v833
        %v1961 = vunpack.c.l.b16 %v834
        %v1962 = vunpack.c.h.b16 %v834
        %v1963 = vunpack.c.l.b16 %v835
        %v1964 = vunpack.c.h.b16 %v835
        %v1965 = vunpack.c.l.b16 %v836
        %v1966 = vunpack.c.h.b16 %v836
        %v1967 = vunpack.c.l.b16 %v837
        %v1968 = vunpack.c.h.b16 %v837
        %v1969 = vunpack.c.l.b16 %v838
        %v1970 = vunpack.c.h.b16 %v838
        %v1971 = vunpack.c.l.b16 %v839
        %v1972 = vunpack.c.h.b16 %v839
        %v1973 = vunpack.c.l.b16 %v840
        %v1974 = vunpack.c.h.b16 %v840
        %v1975 = vunpack.c.l.b16 %v841
        %v1976 = vunpack.c.h.b16 %v841
        %v1977 = vunpack.c.l.b16 %v842
        %v1978 = vunpack.c.h.b16 %v842
        %v1979 = vunpack.c.l.b16 %v843
        %v1980 = vunpack.c.h.b16 %v843
        %v1981 = vunpack.c.l.b16 %v844
        %v1982 = vunpack.c.h.b16 %v844
        %v1983 = vunpack.c.l.b16 %v845
        %v1984 = vunpack.c.h.b16 %v845
        %v1985 = vunpack.c.l.b16 %v846
        %v1986 = vunpack.c.h.b16 %v846
        %v1987 = vunpack.c.l.b16 %v847
        %v1988 = vunpack.c.h.b16 %v847
        %v1989 = vunpack.c.l.b16 %v848
        %v1990 = vunpack.c.h.b16 %v848
        %v1991 = vunpack.c.l.b16 %v849
        %v1992 = vunpack.c.h.b16 %v849
        %v1993 = vunpack.c.l.b16 %v850
        %v1994 = vunpack.c.h.b16 %v850
        %v1995 = vunpack.c.l.b16 %v851
        %v1996 = vunpack.c.h.b16 %v851
        %v1997 = vunpack.c.l.b16 %v852
        %v1998 = vunpack.c.h.b16 %v852
        %v1999 = vunpack.c.l.b16 %v853
        %v2000 = vunpack.c.h.b16 %v853
        %v2001 = vunpack.c.l.b16 %v854
        %v2002 = vunpack.c.h.b16 %v854
        %v2003 = vunpack.c.l.b16 %v855
        %v2004 = vunpack.c.h.b16 %v855
        %v2005 = vunpack.c.l.b16 %v856
        %v2006 = vunpack.c.h.b16 %v856
        %v2007 = vunpack.c.l.b16 %v857
        %v2008 = vunpack.c.h.b16 %v857
        %v2009 = vunpack.c.l.b16 %v858
        %v2010 = vunpack.c.h.b16 %v858
        %v2011 = vpack.c.b16 %v1247, %v1243
        %v2012 = vpack.c.b16 %v1248, %v1244
        %v2013 = vpack.c.b16 %v1249, %v1245
        %v2014 = vpack.c.b16 %v1250, %v1246
        %v2015 = vpack.c.b16 %v1255, %v1251
        %v2016 = vpack.c.b16 %v1256, %v1252
        %v2017 = vpack.c.b16 %v1257, %v1253
        %v2018 = vpack.c.b16 %v1258, %v1254
        %v2019 = vpack.c.b16 %v1263, %v1259
        %v2020 = vpack.c.b16 %v1264, %v1260
        %v2021 = vpack.c.b16 %v1265, %v1261
        %v2022 = vpack.c.b16 %v1266, %v1262
        %v2023 = vpack.c.b16 %v1271, %v1267
        %v2024 = vpack.c.b16 %v1272, %v1268
        %v2025 = vpack.c.b16 %v1273, %v1269
        %v2026 = vpack.c.b16 %v1274, %v1270
        %v2027 = vpack.c.b16 %v1279, %v1275
        %v2028 = vpack.c.b16 %v1280, %v1276
        %v2029 = vpack.c.b16 %v1281, %v1277
        %v2030 = vpack.c.b16 %v1282, %v1278
        %v2031 = vpack.c.b16 %v1287, %v1283
        %v2032 = vpack.c.b16 %v1288, %v1284
        %v2033 = vpack.c.b16 %v1289, %v1285
        %v2034 = vpack.c.b16 %v1290, %v1286
        %v2035 = vpack.c.b16 %v1295, %v1291
        %v2036 = vpack.c.b16 %v1296, %v1292
        %v2037 = vpack.c.b16 %v1297, %v1293
        %v2038 = vpack.c.b16 %v1298, %v1294
        %v2039 = vpack.c.b16 %v1303, %v1299
        %v2040 = vpack.c.b16 %v1304, %v1300
        %v2041 = vpack.c.b16 %v1305, %v1301
        %v2042 = vpack.c.b16 %v1306, %v1302
        %v2043 = vpack.c.b16 %v1311, %v1307
        %v2044 = vpack.c.b16 %v1312, %v1308
        %v2045 = vpack.c.b16 %v1313, %v1309
        %v2046 = vpack.c.b16 %v1314, %v1310
        %v2047 = vpack.c.b16 %v1319, %v1315
        %v2048 = vpack.c.b16 %v1320, %v1316
        %v2049 = vpack.c.b16 %v1321, %v1317
        %v2050 = vpack.c.b16 %v1322, %v1318
        %v2051 = vpack.c.b16 %v1327, %v1323
        %v2052 = vpack.c.b16 %v1328, %v1324
        %v2053 = vpack.c.b16 %v1329, %v1325
        %v2054 = vpack.c.b16 %v1330, %v1326
        %v2055 = vpack.c.b16 %v1335, %v1331
        %v2056 = vpack.c.b16 %v1336, %v1332
        %v2057 = vpack.c.b16 %v1337, %v1333
        %v2058 = vpack.c.b16 %v1338, %v1334
        %v2059 = vpack.c.b16 %v1343, %v1339
        %v2060 = vpack.c.b16 %v1344, %v1340
        %v2061 = vpack.c.b16 %v1345, %v1341
        %v2062 = vpack.c.b16 %v1346, %v1342
        %v2063 = vpack.c.b16 %v1351, %v1347
        %v2064 = vpack.c.b16 %v1352, %v1348
        %v2065 = vpack.c.b16 %v1353, %v1349
        %v2066 = vpack.c.b16 %v1354, %v1350
        %v2067 = vpack.c.b16 %v1359, %v1355
        %v2068 = vpack.c.b16 %v1360, %v1356
        %v2069 = vpack.c.b16 %v1361, %v1357
        %v2070 = vpack.c.b16 %v1362, %v1358
        %v2071 = vpack.c.b16 %v1367, %v1363
        %v2072 = vpack.c.b16 %v1368, %v1364
        %v2073 = vpack.c.b16 %v1369, %v1365
        %v2074 = vpack.c.b16 %v1370, %v1366
        %v2075 = vpack.c.b16 %v1375, %v1371
        %v2076 = vpack.c.b16 %v1376, %v1372
        %v2077 = vpack.c.b16 %v1377, %v1373
        %v2078 = vpack.c.b16 %v1378, %v1374
        %v2079 = vpack.c.b16 %v1383, %v1379
        %v2080 = vpack.c.b16 %v1384, %v1380
        %v2081 = vpack.c.b16 %v1385, %v1381
        %v2082 = vpack.c.b16 %v1386, %v1382
        %v2083 = vpack.c.b16 %v1391, %v1387
        %v2084 = vpack.c.b16 %v1392, %v1388
        %v2085 = vpack.c.b16 %v1393, %v1389
        %v2086 = vpack.c.b16 %v1394, %v1390
        %v2087 = vpack.c.b16 %v1399, %v1395
        %v2088 = vpack.c.b16 %v1400, %v1396
        %v2089 = vpack.c.b16 %v1401, %v1397
        %v2090 = vpack.c.b16 %v1402, %v1398
        %v2091 = vpack.c.b16 %v1407, %v1403
        %v2092 = vpack.c.b16 %v1408, %v1404
        %v2093 = vpack.c.b16 %v1409, %v1405
        %v2094 = vpack.c.b16 %v1410, %v1406
        %v2095 = vpack.c.b16 %v1415, %v1411
        %v2096 = vpack.c.b16 %v1416, %v1412
        %v2097 = vpack.c.b16 %v1417, %v1413
        %v2098 = vpack.c.b16 %v1418, %v1414
        %v2099 = vpack.c.b16 %v1423, %v1419
        %v2100 = vpack.c.b16 %v1424, %v1420
        %v2101 = vpack.c.b16 %v1425, %v1421
        %v2102 = vpack.c.b16 %v1426, %v1422
        %v2103 = vpack.c.b16 %v1431, %v1427
        %v2104 = vpack.c.b16 %v1432, %v1428
        %v2105 = vpack.c.b16 %v1433, %v1429
        %v2106 = vpack.c.b16 %v1434, %v1430
        %v2107 = vpack.c.b16 %v1439, %v1435
        %v2108 = vpack.c.b16 %v1440, %v1436
        %v2109 = vpack.c.b16 %v1441, %v1437
        %v2110 = vpack.c.b16 %v1442, %v1438
        %v2111 = vpack.c.b16 %v1447, %v1443
        %v2112 = vpack.c.b16 %v1448, %v1444
        %v2113 = vpack.c.b16 %v1449, %v1445
        %v2114 = vpack.c.b16 %v1450, %v1446
        %v2115 = vpack.c.b16 %v1455, %v1451
        %v2116 = vpack.c.b16 %v1456, %v1452
        %v2117 = vpack.c.b16 %v1457, %v1453
        %v2118 = vpack.c.b16 %v1458, %v1454
        %v2119 = vpack.c.b16 %v1463, %v1459
        %v2120 = vpack.c.b16 %v1464, %v1460
        %v2121 = vpack.c.b16 %v1465, %v1461
        %v2122 = vpack.c.b16 %v1466, %v1462
        %v2123 = vpack.c.b16 %v1471, %v1467
        %v2124 = vpack.c.b16 %v1472, %v1468
        %v2125 = vpack.c.b16 %v1473, %v1469
        %v2126 = vpack.c.b16 %v1474, %v1470
        %v2127 = vpack.c.b16 %v1479, %v1475
        %v2128 = vpack.c.b16 %v1480, %v1476
        %v2129 = vpack.c.b16 %v1481, %v1477
        %v2130 = vpack.c.b16 %v1482, %v1478
        %v2131 = vpack.c.b16 %v1487, %v1483
        %v2132 = vpack.c.b16 %v1488, %v1484
        %v2133 = vpack.c.b16 %v1489, %v1485
        %v2134 = vpack.c.b16 %v1490, %v1486
        %v2135 = vpack.c.b16 %v1495, %v1491
        %v2136 = vpack.c.b16 %v1496, %v1492
        %v2137 = vpack.c.b16 %v1497, %v1493
        %v2138 = vpack.c.b16 %v1498, %v1494
        %v2139 = vpack.c.b16 %v1503, %v1499
        %v2140 = vpack.c.b16 %v1504, %v1500
        %v2141 = vpack.c.b16 %v1505, %v1501
        %v2142 = vpack.c.b16 %v1506, %v1502
        %v2143 = vpack.c.b16 %v1511, %v1507
        %v2144 = vpack.c.b16 %v1512, %v1508
        %v2145 = vpack.c.b16 %v1513, %v1509
        %v2146 = vpack.c.b16 %v1514, %v1510
        %v2147 = vpack.c.b16 %v1519, %v1515
        %v2148 = vpack.c.b16 %v1520, %v1516
        %v2149 = vpack.c.b16 %v1521, %v1517
        %v2150 = vpack.c.b16 %v1522, %v1518
        %v2151 = vpack.c.b16 %v1527, %v1523
        %v2152 = vpack.c.b16 %v1528, %v1524
        %v2153 = vpack.c.b16 %v1529, %v1525
        %v2154 = vpack.c.b16 %v1530, %v1526
        %v2155 = vpack.c.b16 %v1535, %v1531
        %v2156 = vpack.c.b16 %v1536, %v1532
        %v2157 = vpack.c.b16 %v1537, %v1533
        %v2158 = vpack.c.b16 %v1538, %v1534
        %v2159 = vpack.c.b16 %v1543, %v1539
        %v2160 = vpack.c.b16 %v1544, %v1540
        %v2161 = vpack.c.b16 %v1545, %v1541
        %v2162 = vpack.c.b16 %v1546, %v1542
        %v2163 = vpack.c.b16 %v1551, %v1547
        %v2164 = vpack.c.b16 %v1552, %v1548
        %v2165 = vpack.c.b16 %v1553, %v1549
        %v2166 = vpack.c.b16 %v1554, %v1550
        %v2167 = vpack.c.b16 %v1559, %v1555
        %v2168 = vpack.c.b16 %v1560, %v1556
        %v2169 = vpack.c.b16 %v1561, %v1557
        %v2170 = vpack.c.b16 %v1562, %v1558
        %v2171 = vpack.c.b16 %v1567, %v1563
        %v2172 = vpack.c.b16 %v1568, %v1564
        %v2173 = vpack.c.b16 %v1569, %v1565
        %v2174 = vpack.c.b16 %v1570, %v1566
        %v2175 = vpack.c.b16 %v1575, %v1571
        %v2176 = vpack.c.b16 %v1576, %v1572
        %v2177 = vpack.c.b16 %v1577, %v1573
        %v2178 = vpack.c.b16 %v1578, %v1574
        %v2179 = vpack.c.b16 %v1583, %v1579
        %v2180 = vpack.c.b16 %v1584, %v1580
        %v2181 = vpack.c.b16 %v1585, %v1581
        %v2182 = vpack.c.b16 %v1586, %v1582
        %v2183 = vpack.c.b16 %v1591, %v1587
        %v2184 = vpack.c.b16 %v1592, %v1588
        %v2185 = vpack.c.b16 %v1593, %v1589
        %v2186 = vpack.c.b16 %v1594, %v1590
        %v2187 = vpack.c.b16 %v1599, %v1595
        %v2188 = vpack.c.b16 %v1600, %v1596
        %v2189 = vpack.c.b16 %v1601, %v1597
        %v2190 = vpack.c.b16 %v1602, %v1598
        %v2191 = vpack.c.b16 %v1607, %v1603
        %v2192 = vpack.c.b16 %v1608, %v1604
        %v2193 = vpack.c.b16 %v1609, %v1605
        %v2194 = vpack.c.b16 %v1610, %v1606
        %v2195 = vpack.c.b16 %v1615, %v1611
        %v2196 = vpack.c.b16 %v1616, %v1612
        %v2197 = vpack.c.b16 %v1617, %v1613
        %v2198 = vpack.c.b16 %v1618, %v1614
        %v2199 = vpack.c.b16 %v1623, %v1619
        %v2200 = vpack.c.b16 %v1624, %v1620
        %v2201 = vpack.c.b16 %v1625, %v1621
        %v2202 = vpack.c.b16 %v1626, %v1622
        %v2203 = vpack.c.b16 %v1631, %v1627
        %v2204 = vpack.c.b16 %v1632, %v1628
        %v2205 = vpack.c.b16 %v1633, %v1629
        %v2206 = vpack.c.b16 %v1634, %v1630
        %v2207 = vpack.c.b16 %v1639, %v1635
        %v2208 = vpack.c.b16 %v1640, %v1636
        %v2209 = vpack.c.b16 %v1641, %v1637
        %v2210 = vpack.c.b16 %v1642, %v1638
        %v2211 = vpack.c.b16 %v1647, %v1643
        %v2212 = vpack.c.b16 %v1648, %v1644
        %v2213 = vpack.c.b16 %v1649, %v1645
        %v2214 = vpack.c.b16 %v1650, %v1646
        %v2215 = vpack.c.b16 %v1655, %v1651
        %v2216 = vpack.c.b16 %v1656, %v1652
        %v2217 = vpack.c.b16 %v1657, %v1653
        %v2218 = vpack.c.b16 %v1658, %v1654
        %v2219 = vpack.c.b16 %v1663, %v1659
        %v2220 = vpack.c.b16 %v1664, %v1660
        %v2221 = vpack.c.b16 %v1665, %v1661
        %v2222 = vpack.c.b16 %v1666, %v1662
        %v2223 = vpack.c.b16 %v1671, %v1667
        %v2224 = vpack.c.b16 %v1672, %v1668
        %v2225 = vpack.c.b16 %v1673, %v1669
        %v2226 = vpack.c.b16 %v1674, %v1670
        %v2227 = vpack.c.b16 %v1679, %v1675
        %v2228 = vpack.c.b16 %v1680, %v1676
        %v2229 = vpack.c.b16 %v1681, %v1677
        %v2230 = vpack.c.b16 %v1682, %v1678
        %v2231 = vpack.c.b16 %v1687, %v1683
        %v2232 = vpack.c.b16 %v1688, %v1684
        %v2233 = vpack.c.b16 %v1689, %v1685
        %v2234 = vpack.c.b16 %v1690, %v1686
        %v2235 = vpack.c.b16 %v1695, %v1691
        %v2236 = vpack.c.b16 %v1696, %v1692
        %v2237 = vpack.c.b16 %v1697, %v1693
        %v2238 = vpack.c.b16 %v1698, %v1694
        %v2239 = vpack.c.b16 %v1703, %v1699
        %v2240 = vpack.c.b16 %v1704, %v1700
        %v2241 = vpack.c.b16 %v1705, %v1701
        %v2242 = vpack.c.b16 %v1706, %v1702
        %v2243 = vpack.c.b16 %v1711, %v1707
        %v2244 = vpack.c.b16 %v1712, %v1708
        %v2245 = vpack.c.b16 %v1713, %v1709
        %v2246 = vpack.c.b16 %v1714, %v1710
        %v2247 = vpack.c.b16 %v1719, %v1715
        %v2248 = vpack.c.b16 %v1720, %v1716
        %v2249 = vpack.c.b16 %v1721, %v1717
        %v2250 = vpack.c.b16 %v1722, %v1718
        %v2251 = vpack.c.b16 %v1727, %v1723
        %v2252 = vpack.c.b16 %v1728, %v1724
        %v2253 = vpack.c.b16 %v1729, %v1725
        %v2254 = vpack.c.b16 %v1730, %v1726
        %v2255 = vpack.c.b16 %v1735, %v1731
        %v2256 = vpack.c.b16 %v1736, %v1732
        %v2257 = vpack.c.b16 %v1737, %v1733
        %v2258 = vpack.c.b16 %v1738, %v1734
        %v2259 = vpack.c.b16 %v1743, %v1739
        %v2260 = vpack.c.b16 %v1744, %v1740
        %v2261 = vpack.c.b16 %v1745, %v1741
        %v2262 = vpack.c.b16 %v1746, %v1742
        %v2263 = vpack.c.b16 %v1751, %v1747
        %v2264 = vpack.c.b16 %v1752, %v1748
        %v2265 = vpack.c.b16 %v1753, %v1749
        %v2266 = vpack.c.b16 %v1754, %v1750
        %v2267 = vpack.c.b16 %v1759, %v1755
        %v2268 = vpack.c.b16 %v1760, %v1756
        %v2269 = vpack.c.b16 %v1761, %v1757
        %v2270 = vpack.c.b16 %v1762, %v1758
        %v2271 = vpack.c.b16 %v1767, %v1763
        %v2272 = vpack.c.b16 %v1768, %v1764
        %v2273 = vpack.c.b16 %v1769, %v1765
        %v2274 = vpack.c.b16 %v1770, %v1766
        %v2275 = vpack.c.b16 %v1775, %v1771
        %v2276 = vpack.c.b16 %v1776, %v1772
        %v2277 = vpack.c.b16 %v1777, %v1773
        %v2278 = vpack.c.b16 %v1778, %v1774
        %v2279 = vpack.c.b16 %v1783, %v1779
        %v2280 = vpack.c.b16 %v1784, %v1780
        %v2281 = vpack.c.b16 %v1785, %v1781
        %v2282 = vpack.c.b16 %v1786, %v1782
        %v2283 = vpack.c.b16 %v1791, %v1787
        %v2284 = vpack.c.b16 %v1792, %v1788
        %v2285 = vpack.c.b16 %v1793, %v1789
        %v2286 = vpack.c.b16 %v1794, %v1790
        %v2287 = vpack.c.b16 %v1799, %v1795
        %v2288 = vpack.c.b16 %v1800, %v1796
        %v2289 = vpack.c.b16 %v1801, %v1797
        %v2290 = vpack.c.b16 %v1802, %v1798
        %v2291 = vpack.c.b16 %v1807, %v1803
        %v2292 = vpack.c.b16 %v1808, %v1804
        %v2293 = vpack.c.b16 %v1809, %v1805
        %v2294 = vpack.c.b16 %v1810, %v1806
        %v2295 = vpack.c.b16 %v1815, %v1811
        %v2296 = vpack.c.b16 %v1816, %v1812
        %v2297 = vpack.c.b16 %v1817, %v1813
        %v2298 = vpack.c.b16 %v1818, %v1814
        %v2299 = vpack.c.b16 %v1823, %v1819
        %v2300 = vpack.c.b16 %v1824, %v1820
        %v2301 = vpack.c.b16 %v1825, %v1821
        %v2302 = vpack.c.b16 %v1826, %v1822
        %v2303 = vpack.c.b16 %v1831, %v1827
        %v2304 = vpack.c.b16 %v1832, %v1828
        %v2305 = vpack.c.b16 %v1833, %v1829
        %v2306 = vpack.c.b16 %v1834, %v1830
        %v2307 = vpack.c.b16 %v1839, %v1835
        %v2308 = vpack.c.b16 %v1840, %v1836
        %v2309 = vpack.c.b16 %v1841, %v1837
        %v2310 = vpack.c.b16 %v1842, %v1838
        %v2311 = vpack.c.b16 %v1847, %v1843
        %v2312 = vpack.c.b16 %v1848, %v1844
        %v2313 = vpack.c.b16 %v1849, %v1845
        %v2314 = vpack.c.b16 %v1850, %v1846
        %v2315 = vpack.c.b16 %v1855, %v1851
        %v2316 = vpack.c.b16 %v1856, %v1852
        %v2317 = vpack.c.b16 %v1857, %v1853
        %v2318 = vpack.c.b16 %v1858, %v1854
        %v2319 = vpack.c.b16 %v1863, %v1859
        %v2320 = vpack.c.b16 %v1864, %v1860
        %v2321 = vpack.c.b16 %v1865, %v1861
        %v2322 = vpack.c.b16 %v1866, %v1862
        %v2323 = vpack.c.b16 %v1871, %v1867
        %v2324 = vpack.c.b16 %v1872, %v1868
        %v2325 = vpack.c.b16 %v1873, %v1869
        %v2326 = vpack.c.b16 %v1874, %v1870
        %v2327 = vpack.c.b16 %v1879, %v1875
        %v2328 = vpack.c.b16 %v1880, %v1876
        %v2329 = vpack.c.b16 %v1881, %v1877
        %v2330 = vpack.c.b16 %v1882, %v1878
        %v2331 = vpack.c.b16 %v1887, %v1883
        %v2332 = vpack.c.b16 %v1888, %v1884
        %v2333 = vpack.c.b16 %v1889, %v1885
        %v2334 = vpack.c.b16 %v1890, %v1886
        %v2335 = vpack.c.b16 %v1895, %v1891
        %v2336 = vpack.c.b16 %v1896, %v1892
        %v2337 = vpack.c.b16 %v1897, %v1893
        %v2338 = vpack.c.b16 %v1898, %v1894
        %v2339 = vpack.c.b16 %v1903, %v1899
        %v2340 = vpack.c.b16 %v1904, %v1900
        %v2341 = vpack.c.b16 %v1905, %v1901
        %v2342 = vpack.c.b16 %v1906, %v1902
        %v2343 = vpack.c.b16 %v1911, %v1907
        %v2344 = vpack.c.b16 %v1912, %v1908
        %v2345 = vpack.c.b16 %v1913, %v1909
        %v2346 = vpack.c.b16 %v1914, %v1910
        %v2347 = vpack.c.b16 %v1919, %v1915
        %v2348 = vpack.c.b16 %v1920, %v1916
        %v2349 = vpack.c.b16 %v1921, %v1917
        %v2350 = vpack.c.b16 %v1922, %v1918
        %v2351 = vpack.c.b16 %v1927, %v1923
        %v2352 = vpack.c.b16 %v1928, %v1924
        %v2353 = vpack.c.b16 %v1929, %v1925
        %v2354 = vpack.c.b16 %v1930, %v1926
        %v2355 = vpack.c.b16 %v1935, %v1931
        %v2356 = vpack.c.b16 %v1936, %v1932
        %v2357 = vpack.c.b16 %v1937, %v1933
        %v2358 = vpack.c.b16 %v1938, %v1934
        %v2359 = vpack.c.b16 %v1943, %v1939
        %v2360 = vpack.c.b16 %v1944, %v1940
        %v2361 = vpack.c.b16 %v1945, %v1941
        %v2362 = vpack.c.b16 %v1946, %v1942
        %v2363 = vpack.c.b16 %v1951, %v1947
        %v2364 = vpack.c.b16 %v1952, %v1948
        %v2365 = vpack.c.b16 %v1953, %v1949
        %v2366 = vpack.c.b16 %v1954, %v1950
        %v2367 = vpack.c.b16 %v1959, %v1955
        %v2368 = vpack.c.b16 %v1960, %v1956
        %v2369 = vpack.c.b16 %v1961, %v1957
        %v2370 = vpack.c.b16 %v1962, %v1958
        %v2371 = vpack.c.b16 %v1967, %v1963
        %v2372 = vpack.c.b16 %v1968, %v1964
        %v2373 = vpack.c.b16 %v1969, %v1965
        %v2374 = vpack.c.b16 %v1970, %v1966
        %v2375 = vpack.c.b16 %v1975, %v1971
        %v2376 = vpack.c.b16 %v1976, %v1972
        %v2377 = vpack.c.b16 %v1977, %v1973
        %v2378 = vpack.c.b16 %v1978, %v1974
        %v2379 = vpack.c.b16 %v1983, %v1979
        %v2380 = vpack.c.b16 %v1984, %v1980
        %v2381 = vpack.c.b16 %v1985, %v1981
        %v2382 = vpack.c.b16 %v1986, %v1982
        %v2383 = vpack.c.b16 %v1991, %v1987
        %v2384 = vpack.c.b16 %v1992, %v1988
        %v2385 = vpack.c.b16 %v1993, %v1989
        %v2386 = vpack.c.b16 %v1994, %v1990
        %v2387 = vpack.c.b16 %v1999, %v1995
        %v2388 = vpack.c.b16 %v2000, %v1996
        %v2389 = vpack.c.b16 %v2001, %v1997
        %v2390 = vpack.c.b16 %v2002, %v1998
        %v2391 = vpack.c.b16 %v2007, %v2003
        %v2392 = vpack.c.b16 %v2008, %v2004
        %v2393 = vpack.c.b16 %v2009, %v2005
        %v2394 = vpack.c.b16 %v2010, %v2006
        %2779 = vmatprep.subr.bf16.mxu0 %v2012
        %2780 = vmatpush1.bf16.msra.mxu0 %v2011
        %2781 = vmatprep.subr.bf16.mxu0 %v2016
        %2782 = vmatpush1.bf16.msra.mxu0 %v2015
        %2783 = vmatprep.subr.bf16.mxu0 %v2020
        %2784 = vmatpush1.bf16.msra.mxu0 %v2019
        %2785 = vmatprep.subr.bf16.mxu0 %v2024
        %2786 = vmatpush1.bf16.msra.mxu0 %v2023
        %2787 = vmatprep.subr.bf16.mxu0 %v2028
        %2788 = vmatpush1.bf16.msra.mxu0 %v2027
        %2789 = vmatprep.subr.bf16.mxu0 %v2032
        %2790 = vmatpush1.bf16.msra.mxu0 %v2031
        %2791 = vmatprep.subr.bf16.mxu0 %v2036
        %2792 = vmatpush1.bf16.msra.mxu0 %v2035
        %2793 = vmatprep.subr.bf16.mxu0 %v2040
        %2794 = vmatpush1.bf16.msra.mxu0 %v2039
        %2795 = vmatprep.subr.bf16.mxu0 %v2044
        %2796 = vmatpush1.bf16.msra.mxu0 %v2043
        %2797 = vmatprep.subr.bf16.mxu0 %v2048
        %2798 = vmatpush1.bf16.msra.mxu0 %v2047
        %2799 = vmatprep.subr.bf16.mxu0 %v2052
        %2800 = vmatpush1.bf16.msra.mxu0 %v2051
        %2801 = vmatprep.subr.bf16.mxu0 %v2056
        %2802 = vmatpush1.bf16.msra.mxu0 %v2055
        %2803 = vmatprep.subr.bf16.mxu0 %v2060
        %2804 = vmatpush1.bf16.msra.mxu0 %v2059
        %2805 = vmatprep.subr.bf16.mxu0 %v2064
        %2806 = vmatpush1.bf16.msra.mxu0 %v2063
        %2807 = vmatprep.subr.bf16.mxu0 %v2068
        %2808 = vmatpush1.bf16.msra.mxu0 %v2067
        %2809 = vmatprep.subr.bf16.mxu0 %v2072
        %2810 = vmatpush1.bf16.msra.mxu0 %v2071
        %2811 = vmatprep.mubr.bf16.mxu0 %v464
        %2812 = vmatmul.mubr.bf16.gmra.mrb[0].mxu0 %v463
        %v2813 = vpop.f32.mrb[0].mxu0
        %v2814 = vadd.f32 0.0, %v2813
        %v2815 = vpop.f32.mrb[0].mxu0
        %v2816 = vadd.f32 0.0, %v2815
        %v2817 = vpop.f32.mrb[0].mxu0
        %v2818 = vadd.f32 0.0, %v2817
        %v2819 = vpop.f32.mrb[0].mxu0
        %v2820 = vadd.f32 0.0, %v2819
        %2821 = vdwg.mxu0
        %2822 = vmatprep.subr.bf16.mxu0 %v2076
        %2823 = vmatpush1.bf16.msra.mxu0 %v2075
        %2824 = vmatprep.subr.bf16.mxu0 %v2080
        %2825 = vmatpush1.bf16.msra.mxu0 %v2079
        %2826 = vmatprep.subr.bf16.mxu0 %v2084
        %2827 = vmatpush1.bf16.msra.mxu0 %v2083
        %2828 = vmatprep.subr.bf16.mxu0 %v2088
        %2829 = vmatpush1.bf16.msra.mxu0 %v2087
        %2830 = vmatprep.subr.bf16.mxu0 %v2092
        %2831 = vmatpush1.bf16.msra.mxu0 %v2091
        %2832 = vmatprep.subr.bf16.mxu0 %v2096
        %2833 = vmatpush1.bf16.msra.mxu0 %v2095
        %2834 = vmatprep.subr.bf16.mxu0 %v2100
        %2835 = vmatpush1.bf16.msra.mxu0 %v2099
        %2836 = vmatprep.subr.bf16.mxu0 %v2104
        %2837 = vmatpush1.bf16.msra.mxu0 %v2103
        %2838 = vmatprep.subr.bf16.mxu0 %v2108
        %2839 = vmatpush1.bf16.msra.mxu0 %v2107
        %2840 = vmatprep.subr.bf16.mxu0 %v2112
        %2841 = vmatpush1.bf16.msra.mxu0 %v2111
        %2842 = vmatprep.subr.bf16.mxu0 %v2116
        %2843 = vmatpush1.bf16.msra.mxu0 %v2115
        %2844 = vmatprep.subr.bf16.mxu0 %v2120
        %2845 = vmatpush1.bf16.msra.mxu0 %v2119
        %2846 = vmatprep.subr.bf16.mxu0 %v2124
        %2847 = vmatpush1.bf16.msra.mxu0 %v2123
        %2848 = vmatprep.subr.bf16.mxu0 %v2128
        %2849 = vmatpush1.bf16.msra.mxu0 %v2127
        %2850 = vmatprep.subr.bf16.mxu0 %v2132
        %2851 = vmatpush1.bf16.msra.mxu0 %v2131
        %2852 = vmatprep.subr.bf16.mxu0 %v2136
        %2853 = vmatpush1.bf16.msra.mxu0 %v2135
        %2854 = vmatprep.mubr.bf16.mxu0 %v466
        %2855 = vmatmul.mubr.bf16.gmra.mrb[0].mxu0 %v465
        %v2856 = vpop.f32.mrb[0].mxu0
        %v2857 = vadd.f32 %v2814, %v2856
        %v2858 = vpop.f32.mrb[0].mxu0
        %v2859 = vadd.f32 %v2816, %v2858
        %v2860 = vpop.f32.mrb[0].mxu0
        %v2861 = vadd.f32 %v2818, %v2860
        %v2862 = vpop.f32.mrb[0].mxu0
        %v2863 = vadd.f32 %v2820, %v2862
        %2864 = vdwg.mxu0
        %2865 = vmatprep.subr.bf16.mxu0 %v2140
        %2866 = vmatpush1.bf16.msra.mxu0 %v2139
        %2867 = vmatprep.subr.bf16.mxu0 %v2144
        %2868 = vmatpush1.bf16.msra.mxu0 %v2143
        %2869 = vmatprep.subr.bf16.mxu0 %v2148
        %2870 = vmatpush1.bf16.msra.mxu0 %v2147
        %2871 = vmatprep.subr.bf16.mxu0 %v2152
        %2872 = vmatpush1.bf16.msra.mxu0 %v2151
        %2873 = vmatprep.subr.bf16.mxu0 %v2156
        %2874 = vmatpush1.bf16.msra.mxu0 %v2155
        %2875 = vmatprep.subr.bf16.mxu0 %v2160
        %2876 = vmatpush1.bf16.msra.mxu0 %v2159
        %2877 = vmatprep.subr.bf16.mxu0 %v2164
        %2878 = vmatpush1.bf16.msra.mxu0 %v2163
        %2879 = vmatprep.subr.bf16.mxu0 %v2168
        %2880 = vmatpush1.bf16.msra.mxu0 %v2167
        %2881 = vmatprep.subr.bf16.mxu0 %v2172
        %2882 = vmatpush1.bf16.msra.mxu0 %v2171
        %2883 = vmatprep.subr.bf16.mxu0 %v2176
        %2884 = vmatpush1.bf16.msra.mxu0 %v2175
        %2885 = vmatprep.subr.bf16.mxu0 %v2180
        %2886 = vmatpush1.bf16.msra.mxu0 %v2179
        %2887 = vmatprep.subr.bf16.mxu0 %v2184
        %2888 = vmatpush1.bf16.msra.mxu0 %v2183
        %2889 = vmatprep.subr.bf16.mxu0 %v2188
        %2890 = vmatpush1.bf16.msra.mxu0 %v2187
        %2891 = vmatprep.subr.bf16.mxu0 %v2192
        %2892 = vmatpush1.bf16.msra.mxu0 %v2191
        %2893 = vmatprep.subr.bf16.mxu0 %v2196
        %2894 = vmatpush1.bf16.msra.mxu0 %v2195
        %2895 = vmatprep.subr.bf16.mxu0 %v2200
        %2896 = vmatpush1.bf16.msra.mxu0 %v2199
        %2897 = vmatprep.mubr.bf16.mxu0 %v468
        %2898 = vmatmul.mubr.bf16.gmra.mrb[0].mxu0 %v467
        %v2899 = vpop.f32.mrb[0].mxu0
        %v2900 = vadd.f32 %v2857, %v2899
        %v2901 = vpop.f32.mrb[0].mxu0
        %v2902 = vadd.f32 %v2859, %v2901
        %v2903 = vpop.f32.mrb[0].mxu0
        %v2904 = vadd.f32 %v2861, %v2903
        %v2905 = vpop.f32.mrb[0].mxu0
        %v2906 = vadd.f32 %v2863, %v2905
        %2907 = vdwg.mxu0
        %2908 = vmatprep.subr.bf16.mxu0 %v2204
        %2909 = vmatpush1.bf16.msra.mxu0 %v2203
        %2910 = vmatprep.subr.bf16.mxu0 %v2208
        %2911 = vmatpush1.bf16.msra.mxu0 %v2207
        %2912 = vmatprep.subr.bf16.mxu0 %v2212
        %2913 = vmatpush1.bf16.msra.mxu0 %v2211
        %2914 = vmatprep.subr.bf16.mxu0 %v2216
        %2915 = vmatpush1.bf16.msra.mxu0 %v2215
        %2916 = vmatprep.subr.bf16.mxu0 %v2220
        %2917 = vmatpush1.bf16.msra.mxu0 %v2219
        %2918 = vmatprep.subr.bf16.mxu0 %v2224
        %2919 = vmatpush1.bf16.msra.mxu0 %v2223
        %2920 = vmatprep.subr.bf16.mxu0 %v2228
        %2921 = vmatpush1.bf16.msra.mxu0 %v2227
        %2922 = vmatprep.subr.bf16.mxu0 %v2232
        %2923 = vmatpush1.bf16.msra.mxu0 %v2231
        %2924 = vmatprep.subr.bf16.mxu0 %v2236
        %2925 = vmatpush1.bf16.msra.mxu0 %v2235
        %2926 = vmatprep.subr.bf16.mxu0 %v2240
        %2927 = vmatpush1.bf16.msra.mxu0 %v2239
        %2928 = vmatprep.subr.bf16.mxu0 %v2244
        %2929 = vmatpush1.bf16.msra.mxu0 %v2243
        %2930 = vmatprep.subr.bf16.mxu0 %v2248
        %2931 = vmatpush1.bf16.msra.mxu0 %v2247
        %2932 = vmatprep.subr.bf16.mxu0 %v2252
        %2933 = vmatpush1.bf16.msra.mxu0 %v2251
        %2934 = vmatprep.subr.bf16.mxu0 %v2256
        %2935 = vmatpush1.bf16.msra.mxu0 %v2255
        %2936 = vmatprep.subr.bf16.mxu0 %v2260
        %2937 = vmatpush1.bf16.msra.mxu0 %v2259
        %2938 = vmatprep.subr.bf16.mxu0 %v2264
        %2939 = vmatpush1.bf16.msra.mxu0 %v2263
        %2940 = vmatprep.mubr.bf16.mxu0 %v470
        %2941 = vmatmul.mubr.bf16.gmra.mrb[0].mxu0 %v469
        %v2942 = vpop.f32.mrb[0].mxu0
        %v2943 = vadd.f32 %v2900, %v2942
        %v2944 = vpop.f32.mrb[0].mxu0
        %v2945 = vadd.f32 %v2902, %v2944
        %v2946 = vpop.f32.mrb[0].mxu0
        %v2947 = vadd.f32 %v2904, %v2946
        %v2948 = vpop.f32.mrb[0].mxu0
        %v2949 = vadd.f32 %v2906, %v2948
        %2950 = vdwg.mxu0
        %2951 = vmatprep.subr.bf16.mxu0 %v2268
        %2952 = vmatpush1.bf16.msra.mxu0 %v2267
        %2953 = vmatprep.subr.bf16.mxu0 %v2272
        %2954 = vmatpush1.bf16.msra.mxu0 %v2271
        %2955 = vmatprep.subr.bf16.mxu0 %v2276
        %2956 = vmatpush1.bf16.msra.mxu0 %v2275
        %2957 = vmatprep.subr.bf16.mxu0 %v2280
        %2958 = vmatpush1.bf16.msra.mxu0 %v2279
        %2959 = vmatprep.subr.bf16.mxu0 %v2284
        %2960 = vmatpush1.bf16.msra.mxu0 %v2283
        %2961 = vmatprep.subr.bf16.mxu0 %v2288
        %2962 = vmatpush1.bf16.msra.mxu0 %v2287
        %2963 = vmatprep.subr.bf16.mxu0 %v2292
        %2964 = vmatpush1.bf16.msra.mxu0 %v2291
        %2965 = vmatprep.subr.bf16.mxu0 %v2296
        %2966 = vmatpush1.bf16.msra.mxu0 %v2295
        %2967 = vmatprep.subr.bf16.mxu0 %v2300
        %2968 = vmatpush1.bf16.msra.mxu0 %v2299
        %2969 = vmatprep.subr.bf16.mxu0 %v2304
        %2970 = vmatpush1.bf16.msra.mxu0 %v2303
        %2971 = vmatprep.subr.bf16.mxu0 %v2308
        %2972 = vmatpush1.bf16.msra.mxu0 %v2307
        %2973 = vmatprep.subr.bf16.mxu0 %v2312
        %2974 = vmatpush1.bf16.msra.mxu0 %v2311
        %2975 = vmatprep.subr.bf16.mxu0 %v2316
        %2976 = vmatpush1.bf16.msra.mxu0 %v2315
        %2977 = vmatprep.subr.bf16.mxu0 %v2320
        %2978 = vmatpush1.bf16.msra.mxu0 %v2319
        %2979 = vmatprep.subr.bf16.mxu0 %v2324
        %2980 = vmatpush1.bf16.msra.mxu0 %v2323
        %2981 = vmatprep.subr.bf16.mxu0 %v2328
        %2982 = vmatpush1.bf16.msra.mxu0 %v2327
        %2983 = vmatprep.mubr.bf16.mxu0 %v472
        %2984 = vmatmul.mubr.bf16.gmra.mrb[0].mxu0 %v471
        %v2985 = vpop.f32.mrb[0].mxu0
        %v2986 = vadd.f32 %v2943, %v2985
        %v2987 = vpop.f32.mrb[0].mxu0
        %v2988 = vadd.f32 %v2945, %v2987
        %v2989 = vpop.f32.mrb[0].mxu0
        %v2990 = vadd.f32 %v2947, %v2989
        %v2991 = vpop.f32.mrb[0].mxu0
        %v2992 = vadd.f32 %v2949, %v2991
        %2993 = vdwg.mxu0
        %2994 = vmatprep.subr.bf16.mxu0 %v2332
        %2995 = vmatpush1.bf16.msra.mxu0 %v2331
        %2996 = vmatprep.subr.bf16.mxu0 %v2336
        %2997 = vmatpush1.bf16.msra.mxu0 %v2335
        %2998 = vmatprep.subr.bf16.mxu0 %v2340
        %2999 = vmatpush1.bf16.msra.mxu0 %v2339
        %3000 = vmatprep.subr.bf16.mxu0 %v2344
        %3001 = vmatpush1.bf16.msra.mxu0 %v2343
        %3002 = vmatprep.subr.bf16.mxu0 %v2348
        %3003 = vmatpush1.bf16.msra.mxu0 %v2347
        %3004 = vmatprep.subr.bf16.mxu0 %v2352
        %3005 = vmatpush1.bf16.msra.mxu0 %v2351
        %3006 = vmatprep.subr.bf16.mxu0 %v2356
        %3007 = vmatpush1.bf16.msra.mxu0 %v2355
        %3008 = vmatprep.subr.bf16.mxu0 %v2360
        %3009 = vmatpush1.bf16.msra.mxu0 %v2359
        %3010 = vmatprep.subr.bf16.mxu0 %v2364
        %3011 = vmatpush1.bf16.msra.mxu0 %v2363
        %3012 = vmatprep.subr.bf16.mxu0 %v2368
        %3013 = vmatpush1.bf16.msra.mxu0 %v2367
        %3014 = vmatprep.subr.bf16.mxu0 %v2372
        %3015 = vmatpush1.bf16.msra.mxu0 %v2371
        %3016 = vmatprep.subr.bf16.mxu0 %v2376
        %3017 = vmatpush1.bf16.msra.mxu0 %v2375
        %3018 = vmatprep.subr.bf16.mxu0 %v2380
        %3019 = vmatpush1.bf16.msra.mxu0 %v2379
        %3020 = vmatprep.subr.bf16.mxu0 %v2384
        %3021 = vmatpush1.bf16.msra.mxu0 %v2383
        %3022 = vmatprep.subr.bf16.mxu0 %v2388
        %3023 = vmatpush1.bf16.msra.mxu0 %v2387
        %3024 = vmatprep.subr.bf16.mxu0 %v2392
        %3025 = vmatpush1.bf16.msra.mxu0 %v2391
        %3026 = vmatprep.mubr.bf16.mxu0 %v474
        %3027 = vmatmul.mubr.bf16.gmra.mrb[0].mxu0 %v473
        %v3028 = vpop.f32.mrb[0].mxu0
        %v3029 = vadd.f32 %v2986, %v3028
        %v3030 = vpop.f32.mrb[0].mxu0
        %v3031 = vadd.f32 %v2988, %v3030
        %v3032 = vpop.f32.mrb[0].mxu0
        %v3033 = vadd.f32 %v2990, %v3032
        %v3034 = vpop.f32.mrb[0].mxu0
        %v3035 = vadd.f32 %v2992, %v3034
        %3036 = vdwg.mxu0
        %3037 = vmatprep.subr.bf16.mxu0 %v2014
        %3038 = vmatpush1.bf16.msra.mxu0 %v2013
        %3039 = vmatprep.subr.bf16.mxu0 %v2018
        %3040 = vmatpush1.bf16.msra.mxu0 %v2017
        %3041 = vmatprep.subr.bf16.mxu0 %v2022
        %3042 = vmatpush1.bf16.msra.mxu0 %v2021
        %3043 = vmatprep.subr.bf16.mxu0 %v2026
        %3044 = vmatpush1.bf16.msra.mxu0 %v2025
        %3045 = vmatprep.subr.bf16.mxu0 %v2030
        %3046 = vmatpush1.bf16.msra.mxu0 %v2029
        %3047 = vmatprep.subr.bf16.mxu0 %v2034
        %3048 = vmatpush1.bf16.msra.mxu0 %v2033
        %3049 = vmatprep.subr.bf16.mxu0 %v2038
        %3050 = vmatpush1.bf16.msra.mxu0 %v2037
        %3051 = vmatprep.subr.bf16.mxu0 %v2042
        %3052 = vmatpush1.bf16.msra.mxu0 %v2041
        %3053 = vmatprep.subr.bf16.mxu0 %v2046
        %3054 = vmatpush1.bf16.msra.mxu0 %v2045
        %3055 = vmatprep.subr.bf16.mxu0 %v2050
        %3056 = vmatpush1.bf16.msra.mxu0 %v2049
        %3057 = vmatprep.subr.bf16.mxu0 %v2054
        %3058 = vmatpush1.bf16.msra.mxu0 %v2053
        %3059 = vmatprep.subr.bf16.mxu0 %v2058
        %3060 = vmatpush1.bf16.msra.mxu0 %v2057
        %3061 = vmatprep.subr.bf16.mxu0 %v2062
        %3062 = vmatpush1.bf16.msra.mxu0 %v2061
        %3063 = vmatprep.subr.bf16.mxu0 %v2066
        %3064 = vmatpush1.bf16.msra.mxu0 %v2065
        %3065 = vmatprep.subr.bf16.mxu0 %v2070
        %3066 = vmatpush1.bf16.msra.mxu0 %v2069
        %3067 = vmatprep.subr.bf16.mxu0 %v2074
        %3068 = vmatpush1.bf16.msra.mxu0 %v2073
        %3069 = vmatprep.mubr.bf16.mxu0 %v464
        %3070 = vmatmul.mubr.bf16.gmra.mrb[0].mxu0 %v463
        %v3071 = vpop.f32.mrb[0].mxu0
        %v3072 = vadd.f32 0.0, %v3071
        %v3073 = vpop.f32.mrb[0].mxu0
        %v3074 = vadd.f32 0.0, %v3073
        %v3075 = vpop.f32.mrb[0].mxu0
        %v3076 = vadd.f32 0.0, %v3075
        %v3077 = vpop.f32.mrb[0].mxu0
        %v3078 = vadd.f32 0.0, %v3077
        %3079 = vdwg.mxu0
        %3080 = vmatprep.subr.bf16.mxu0 %v2078
        %3081 = vmatpush1.bf16.msra.mxu0 %v2077
        %3082 = vmatprep.subr.bf16.mxu0 %v2082
        %3083 = vmatpush1.bf16.msra.mxu0 %v2081
        %3084 = vmatprep.subr.bf16.mxu0 %v2086
        %3085 = vmatpush1.bf16.msra.mxu0 %v2085
        %3086 = vmatprep.subr.bf16.mxu0 %v2090
        %3087 = vmatpush1.bf16.msra.mxu0 %v2089
        %3088 = vmatprep.subr.bf16.mxu0 %v2094
        %3089 = vmatpush1.bf16.msra.mxu0 %v2093
        %3090 = vmatprep.subr.bf16.mxu0 %v2098
        %3091 = vmatpush1.bf16.msra.mxu0 %v2097
        %3092 = vmatprep.subr.bf16.mxu0 %v2102
        %3093 = vmatpush1.bf16.msra.mxu0 %v2101
        %3094 = vmatprep.subr.bf16.mxu0 %v2106
        %3095 = vmatpush1.bf16.msra.mxu0 %v2105
        %3096 = vmatprep.subr.bf16.mxu0 %v2110
        %3097 = vmatpush1.bf16.msra.mxu0 %v2109
        %3098 = vmatprep.subr.bf16.mxu0 %v2114
        %3099 = vmatpush1.bf16.msra.mxu0 %v2113
        %3100 = vmatprep.subr.bf16.mxu0 %v2118
        %3101 = vmatpush1.bf16.msra.mxu0 %v2117
        %3102 = vmatprep.subr.bf16.mxu0 %v2122
        %3103 = vmatpush1.bf16.msra.mxu0 %v2121
        %3104 = vmatprep.subr.bf16.mxu0 %v2126
        %3105 = vmatpush1.bf16.msra.mxu0 %v2125
        %3106 = vmatprep.subr.bf16.mxu0 %v2130
        %3107 = vmatpush1.bf16.msra.mxu0 %v2129
        %3108 = vmatprep.subr.bf16.mxu0 %v2134
        %3109 = vmatpush1.bf16.msra.mxu0 %v2133
        %3110 = vmatprep.subr.bf16.mxu0 %v2138
        %3111 = vmatpush1.bf16.msra.mxu0 %v2137
        %3112 = vmatprep.mubr.bf16.mxu0 %v466
        %3113 = vmatmul.mubr.bf16.gmra.mrb[0].mxu0 %v465
        %v3114 = vpop.f32.mrb[0].mxu0
        %v3115 = vadd.f32 %v3072, %v3114
        %v3116 = vpop.f32.mrb[0].mxu0
        %v3117 = vadd.f32 %v3074, %v3116
        %v3118 = vpop.f32.mrb[0].mxu0
        %v3119 = vadd.f32 %v3076, %v3118
        %v3120 = vpop.f32.mrb[0].mxu0
        %v3121 = vadd.f32 %v3078, %v3120
        %3122 = vdwg.mxu0
        %3123 = vmatprep.subr.bf16.mxu0 %v2142
        %3124 = vmatpush1.bf16.msra.mxu0 %v2141
        %3125 = vmatprep.subr.bf16.mxu0 %v2146
        %3126 = vmatpush1.bf16.msra.mxu0 %v2145
        %3127 = vmatprep.subr.bf16.mxu0 %v2150
        %3128 = vmatpush1.bf16.msra.mxu0 %v2149
        %3129 = vmatprep.subr.bf16.mxu0 %v2154
        %3130 = vmatpush1.bf16.msra.mxu0 %v2153
        %3131 = vmatprep.subr.bf16.mxu0 %v2158
        %3132 = vmatpush1.bf16.msra.mxu0 %v2157
        %3133 = vmatprep.subr.bf16.mxu0 %v2162
        %3134 = vmatpush1.bf16.msra.mxu0 %v2161
        %3135 = vmatprep.subr.bf16.mxu0 %v2166
        %3136 = vmatpush1.bf16.msra.mxu0 %v2165
        %3137 = vmatprep.subr.bf16.mxu0 %v2170
        %3138 = vmatpush1.bf16.msra.mxu0 %v2169
        %3139 = vmatprep.subr.bf16.mxu0 %v2174
        %3140 = vmatpush1.bf16.msra.mxu0 %v2173
        %3141 = vmatprep.subr.bf16.mxu0 %v2178
        %3142 = vmatpush1.bf16.msra.mxu0 %v2177
        %3143 = vmatprep.subr.bf16.mxu0 %v2182
        %3144 = vmatpush1.bf16.msra.mxu0 %v2181
        %3145 = vmatprep.subr.bf16.mxu0 %v2186
        %3146 = vmatpush1.bf16.msra.mxu0 %v2185
        %3147 = vmatprep.subr.bf16.mxu0 %v2190
        %3148 = vmatpush1.bf16.msra.mxu0 %v2189
        %3149 = vmatprep.subr.bf16.mxu0 %v2194
        %3150 = vmatpush1.bf16.msra.mxu0 %v2193
        %3151 = vmatprep.subr.bf16.mxu0 %v2198
        %3152 = vmatpush1.bf16.msra.mxu0 %v2197
        %3153 = vmatprep.subr.bf16.mxu0 %v2202
        %3154 = vmatpush1.bf16.msra.mxu0 %v2201
        %3155 = vmatprep.mubr.bf16.mxu0 %v468
        %3156 = vmatmul.mubr.bf16.gmra.mrb[0].mxu0 %v467
        %v3157 = vpop.f32.mrb[0].mxu0
        %v3158 = vadd.f32 %v3115, %v3157
        %v3159 = vpop.f32.mrb[0].mxu0
        %v3160 = vadd.f32 %v3117, %v3159
        %v3161 = vpop.f32.mrb[0].mxu0
        %v3162 = vadd.f32 %v3119, %v3161
        %v3163 = vpop.f32.mrb[0].mxu0
        %v3164 = vadd.f32 %v3121, %v3163
        %3165 = vdwg.mxu0
        %3166 = vmatprep.subr.bf16.mxu0 %v2206
        %3167 = vmatpush1.bf16.msra.mxu0 %v2205
        %3168 = vmatprep.subr.bf16.mxu0 %v2210
        %3169 = vmatpush1.bf16.msra.mxu0 %v2209
        %3170 = vmatprep.subr.bf16.mxu0 %v2214
        %3171 = vmatpush1.bf16.msra.mxu0 %v2213
        %3172 = vmatprep.subr.bf16.mxu0 %v2218
        %3173 = vmatpush1.bf16.msra.mxu0 %v2217
        %3174 = vmatprep.subr.bf16.mxu0 %v2222
        %3175 = vmatpush1.bf16.msra.mxu0 %v2221
        %3176 = vmatprep.subr.bf16.mxu0 %v2226
        %3177 = vmatpush1.bf16.msra.mxu0 %v2225
        %3178 = vmatprep.subr.bf16.mxu0 %v2230
        %3179 = vmatpush1.bf16.msra.mxu0 %v2229
        %3180 = vmatprep.subr.bf16.mxu0 %v2234
        %3181 = vmatpush1.bf16.msra.mxu0 %v2233
        %3182 = vmatprep.subr.bf16.mxu0 %v2238
        %3183 = vmatpush1.bf16.msra.mxu0 %v2237
        %3184 = vmatprep.subr.bf16.mxu0 %v2242
        %3185 = vmatpush1.bf16.msra.mxu0 %v2241
        %3186 = vmatprep.subr.bf16.mxu0 %v2246
        %3187 = vmatpush1.bf16.msra.mxu0 %v2245
        %3188 = vmatprep.subr.bf16.mxu0 %v2250
        %3189 = vmatpush1.bf16.msra.mxu0 %v2249
        %3190 = vmatprep.subr.bf16.mxu0 %v2254
        %3191 = vmatpush1.bf16.msra.mxu0 %v2253
        %3192 = vmatprep.subr.bf16.mxu0 %v2258
        %3193 = vmatpush1.bf16.msra.mxu0 %v2257
        %3194 = vmatprep.subr.bf16.mxu0 %v2262
        %3195 = vmatpush1.bf16.msra.mxu0 %v2261
        %3196 = vmatprep.subr.bf16.mxu0 %v2266
        %3197 = vmatpush1.bf16.msra.mxu0 %v2265
        %3198 = vmatprep.mubr.bf16.mxu0 %v470
        %3199 = vmatmul.mubr.bf16.gmra.mrb[0].mxu0 %v469
        %v3200 = vpop.f32.mrb[0].mxu0
        %v3201 = vadd.f32 %v3158, %v3200
        %v3202 = vpop.f32.mrb[0].mxu0
        %v3203 = vadd.f32 %v3160, %v3202
        %v3204 = vpop.f32.mrb[0].mxu0
        %v3205 = vadd.f32 %v3162, %v3204
        %v3206 = vpop.f32.mrb[0].mxu0
        %v3207 = vadd.f32 %v3164, %v3206
        %3208 = vdwg.mxu0
        %3209 = vmatprep.subr.bf16.mxu0 %v2270
        %3210 = vmatpush1.bf16.msra.mxu0 %v2269
        %3211 = vmatprep.subr.bf16.mxu0 %v2274
        %3212 = vmatpush1.bf16.msra.mxu0 %v2273
        %3213 = vmatprep.subr.bf16.mxu0 %v2278
        %3214 = vmatpush1.bf16.msra.mxu0 %v2277
        %3215 = vmatprep.subr.bf16.mxu0 %v2282
        %3216 = vmatpush1.bf16.msra.mxu0 %v2281
        %3217 = vmatprep.subr.bf16.mxu0 %v2286
        %3218 = vmatpush1.bf16.msra.mxu0 %v2285
        %3219 = vmatprep.subr.bf16.mxu0 %v2290
        %3220 = vmatpush1.bf16.msra.mxu0 %v2289
        %3221 = vmatprep.subr.bf16.mxu0 %v2294
        %3222 = vmatpush1.bf16.msra.mxu0 %v2293
        %3223 = vmatprep.subr.bf16.mxu0 %v2298
        %3224 = vmatpush1.bf16.msra.mxu0 %v2297
        %3225 = vmatprep.subr.bf16.mxu0 %v2302
        %3226 = vmatpush1.bf16.msra.mxu0 %v2301
        %3227 = vmatprep.subr.bf16.mxu0 %v2306
        %3228 = vmatpush1.bf16.msra.mxu0 %v2305
        %3229 = vmatprep.subr.bf16.mxu0 %v2310
        %3230 = vmatpush1.bf16.msra.mxu0 %v2309
        %3231 = vmatprep.subr.bf16.mxu0 %v2314
        %3232 = vmatpush1.bf16.msra.mxu0 %v2313
        %3233 = vmatprep.subr.bf16.mxu0 %v2318
        %3234 = vmatpush1.bf16.msra.mxu0 %v2317
        %3235 = vmatprep.subr.bf16.mxu0 %v2322
        %3236 = vmatpush1.bf16.msra.mxu0 %v2321
        %3237 = vmatprep.subr.bf16.mxu0 %v2326
        %3238 = vmatpush1.bf16.msra.mxu0 %v2325
        %3239 = vmatprep.subr.bf16.mxu0 %v2330
        %3240 = vmatpush1.bf16.msra.mxu0 %v2329
        %3241 = vmatprep.mubr.bf16.mxu0 %v472
        %3242 = vmatmul.mubr.bf16.gmra.mrb[0].mxu0 %v471
        %v3243 = vpop.f32.mrb[0].mxu0
        %v3244 = vadd.f32 %v3201, %v3243
        %v3245 = vpop.f32.mrb[0].mxu0
        %v3246 = vadd.f32 %v3203, %v3245
        %v3247 = vpop.f32.mrb[0].mxu0
        %v3248 = vadd.f32 %v3205, %v3247
        %v3249 = vpop.f32.mrb[0].mxu0
        %v3250 = vadd.f32 %v3207, %v3249
        %3251 = vdwg.mxu0
        %3252 = vmatprep.subr.bf16.mxu0 %v2334
        %3253 = vmatpush1.bf16.msra.mxu0 %v2333
        %3254 = vmatprep.subr.bf16.mxu0 %v2338
        %3255 = vmatpush1.bf16.msra.mxu0 %v2337
        %3256 = vmatprep.subr.bf16.mxu0 %v2342
        %3257 = vmatpush1.bf16.msra.mxu0 %v2341
        %3258 = vmatprep.subr.bf16.mxu0 %v2346
        %3259 = vmatpush1.bf16.msra.mxu0 %v2345
        %3260 = vmatprep.subr.bf16.mxu0 %v2350
        %3261 = vmatpush1.bf16.msra.mxu0 %v2349
        %3262 = vmatprep.subr.bf16.mxu0 %v2354
        %3263 = vmatpush1.bf16.msra.mxu0 %v2353
        %3264 = vmatprep.subr.bf16.mxu0 %v2358
        %3265 = vmatpush1.bf16.msra.mxu0 %v2357
        %3266 = vmatprep.subr.bf16.mxu0 %v2362
        %3267 = vmatpush1.bf16.msra.mxu0 %v2361
        %3268 = vmatprep.subr.bf16.mxu0 %v2366
        %3269 = vmatpush1.bf16.msra.mxu0 %v2365
        %3270 = vmatprep.subr.bf16.mxu0 %v2370
        %3271 = vmatpush1.bf16.msra.mxu0 %v2369
        %3272 = vmatprep.subr.bf16.mxu0 %v2374
        %3273 = vmatpush1.bf16.msra.mxu0 %v2373
        %3274 = vmatprep.subr.bf16.mxu0 %v2378
        %3275 = vmatpush1.bf16.msra.mxu0 %v2377
        %3276 = vmatprep.subr.bf16.mxu0 %v2382
        %3277 = vmatpush1.bf16.msra.mxu0 %v2381
        %3278 = vmatprep.subr.bf16.mxu0 %v2386
        %3279 = vmatpush1.bf16.msra.mxu0 %v2385
        %3280 = vmatprep.subr.bf16.mxu0 %v2390
        %3281 = vmatpush1.bf16.msra.mxu0 %v2389
        %3282 = vmatprep.subr.bf16.mxu0 %v2394
        %3283 = vmatpush1.bf16.msra.mxu0 %v2393
        %3284 = vmatprep.mubr.bf16.mxu0 %v474
        %3285 = vmatmul.mubr.bf16.gmra.mrb[0].mxu0 %v473
        %v3286 = vpop.f32.mrb[0].mxu0
        %v3287 = vadd.f32 %v3244, %v3286
        %v3288 = vpop.f32.mrb[0].mxu0
        %v3289 = vadd.f32 %v3246, %v3288
        %v3290 = vpop.f32.mrb[0].mxu0
        %v3291 = vadd.f32 %v3248, %v3290
        %v3292 = vpop.f32.mrb[0].mxu0
        %v3293 = vadd.f32 %v3250, %v3292
        %3294 = vdwg.mxu0
        %v3295 = vld [vmem:[#allocation7] sm:$0xf]
        %v3297 = vlaneseq
        %v3298 = vshrl.u32 %v3297, 7
        %v3299 = vsub.s32 0, %v3298
        %v3300 = vrot.slane %v3295, %v3299
        %v3301 = vlaneseq
        %v3302 = vshrl.u32 %v3301, 7
        %v3303 = vsub.s32 1, %v3302
        %v3304 = vrot.slane %v3295, %v3303
        %v3305 = vlaneseq
        %v3306 = vshrl.u32 %v3305, 7
        %v3307 = vsub.s32 2, %v3306
        %v3308 = vrot.slane %v3295, %v3307
        %v3309 = vlaneseq
        %v3310 = vshrl.u32 %v3309, 7
        %v3311 = vsub.s32 3, %v3310
        %v3312 = vrot.slane %v3295, %v3311
        %v3317 = vmul.f32 %v3029, %v3300
        %v3318 = vmul.f32 %v3031, %v3304
        %v3319 = vmul.f32 %v3287, %v3308
        %v3320 = vmul.f32 %v3289, %v3312
        %v3321 = vmul.f32 %v3033, %v3300
        %v3322 = vmul.f32 %v3035, %v3304
        %v3323 = vmul.f32 %v3291, %v3308
        %v3324 = vmul.f32 %v3293, %v3312
        %v3325 = vld [vmem:[#allocation8] sm:$0xf]
        %v3327 = vlaneseq
        %v3328 = vshrl.u32 %v3327, 7
        %v3329 = vsub.s32 0, %v3328
        %v3330 = vrot.slane %v3325, %v3329
        %v3331 = vlaneseq
        %v3332 = vshrl.u32 %v3331, 7
        %v3333 = vsub.s32 1, %v3332
        %v3334 = vrot.slane %v3325, %v3333
        %v3335 = vlaneseq
        %v3336 = vshrl.u32 %v3335, 7
        %v3337 = vsub.s32 2, %v3336
        %v3338 = vrot.slane %v3325, %v3337
        %v3339 = vlaneseq
        %v3340 = vshrl.u32 %v3339, 7
        %v3341 = vsub.s32 3, %v3340
        %v3342 = vrot.slane %v3325, %v3341
        %v3347 = vadd.f32 %v3317, %v3330
        %v3348 = vadd.f32 %v3318, %v3334
        %v3349 = vadd.f32 %v3319, %v3338
        %v3350 = vadd.f32 %v3320, %v3342
        %v3351 = vadd.f32 %v3321, %v3330
        %v3352 = vadd.f32 %v3322, %v3334
        %v3353 = vadd.f32 %v3323, %v3338
        %v3354 = vadd.f32 %v3324, %v3342
        %v3355 = vmax.f32 %v3347, 0.0
        %v3356 = vmax.f32 %v3348, 0.0
        %v3357 = vmax.f32 %v3349, 0.0
        %v3358 = vmax.f32 %v3350, 0.0
        %v3359 = vmax.f32 %v3351, 0.0
        %v3360 = vmax.f32 %v3352, 0.0
        %v3361 = vmax.f32 %v3353, 0.0
        %v3362 = vmax.f32 %v3354, 0.0
        %v3363 = vrot.slane %v3355, 7
        %v3364 = vrot.slane %v3356, 7
        %v3365 = vrot.slane %v3357, 7
        %v3366 = vrot.slane %v3358, 7
        %v3367 = vrot.slane %v3359, 7
        %v3368 = vrot.slane %v3360, 7
        %v3369 = vrot.slane %v3361, 7
        %v3370 = vrot.slane %v3362, 7
        %v3371 = vsel %vm413, %v3363, %v3367
        %v3372 = vsel %vm413, %v3364, %v3368
        %v3373 = vsel %vm413, %v3365, %v3369
        %v3374 = vsel %vm413, %v3366, %v3370
        %v3375 = vsel %vm413, %v3367, %v3363
        %v3376 = vsel %vm413, %v3368, %v3364
        %v3377 = vsel %vm413, %v3369, %v3365
        %v3378 = vsel %vm413, %v3370, %v3366
        %v3379 = vsel %vm424, %v3375, 0.0
        %v3380 = vsel %vm424, %v3376, 0.0
        %v3381 = vsel %vm424, %v3377, 0.0
        %v3382 = vsel %vm424, %v3378, 0.0
        %v3383 = vsel %vm425, %v3371, 0.0
        %v3384 = vsel %vm425, %v3372, 0.0
        %v3385 = vsel %vm425, %v3373, 0.0
        %v3386 = vsel %vm425, %v3374, 0.0
        %v3387 = vrot.slane %v3355, 1
        %v3388 = vrot.slane %v3356, 1
        %v3389 = vrot.slane %v3357, 1
        %v3390 = vrot.slane %v3358, 1
        %v3391 = vrot.slane %v3359, 1
        %v3392 = vrot.slane %v3360, 1
        %v3393 = vrot.slane %v3361, 1
        %v3394 = vrot.slane %v3362, 1
        %v3395 = vsel %vm442, %v3387, %v3391
        %v3396 = vsel %vm442, %v3388, %v3392
        %v3397 = vsel %vm442, %v3389, %v3393
        %v3398 = vsel %vm442, %v3390, %v3394
        %v3399 = vsel %vm442, %v3391, %v3387
        %v3400 = vsel %vm442, %v3392, %v3388
        %v3401 = vsel %vm442, %v3393, %v3389
        %v3402 = vsel %vm442, %v3394, %v3390
        %v3403 = vsel %vm453, %v3395, 0.0
        %v3404 = vsel %vm453, %v3396, 0.0
        %v3405 = vsel %vm453, %v3397, 0.0
        %v3406 = vsel %vm453, %v3398, 0.0
        %v3407 = vsel %vm454, %v3399, 0.0
        %v3408 = vsel %vm454, %v3400, 0.0
        %v3409 = vsel %vm454, %v3401, 0.0
        %v3410 = vsel %vm454, %v3402, 0.0
        %v3411 = vpack.c.bf16 %v3383, %v3379
        %v3412 = vpack.c.bf16 %v3384, %v3380
        %v3413 = vpack.c.bf16 %v3385, %v3381
        %v3414 = vpack.c.bf16 %v3386, %v3382
        %v3415 = vpack.c.bf16 %v3359, %v3355
        %v3416 = vpack.c.bf16 %v3360, %v3356
        %v3417 = vpack.c.bf16 %v3361, %v3357
        %v3418 = vpack.c.bf16 %v3362, %v3358
        %v3419 = vpack.c.bf16 %v3407, %v3403
        %v3420 = vpack.c.bf16 %v3408, %v3404
        %v3421 = vpack.c.bf16 %v3409, %v3405
        %v3422 = vpack.c.bf16 %v3410, %v3406
        %v3423 = vld [vmem:[#allocation10] sm:$0xff]
        %v3424 = vld [vmem:[#allocation10 + $0x8] sm:$0xff]
        %v3425 = vld [vmem:[#allocation10 + $0x10] sm:$0xff]
        %v3426 = vld [vmem:[#allocation10 + $0x18] sm:$0xff]
        %v3427 = vld [vmem:[#allocation10 + $0x20] sm:$0xff]
        %v3428 = vld [vmem:[#allocation10 + $0x28] sm:$0xff]
        %v3429 = vld [vmem:[#allocation10 + $0x30] sm:$0xff]
        %v3430 = vld [vmem:[#allocation10 + $0x38] sm:$0xff]
        %v3431 = vld [vmem:[#allocation10 + $0x40] sm:$0xff]
        %v3432 = vld [vmem:[#allocation10 + $0x48] sm:$0xff]
        %v3433 = vld [vmem:[#allocation10 + $0x50] sm:$0xff]
        %v3434 = vld [vmem:[#allocation10 + $0x58] sm:$0xff]
        %v3435 = vld [vmem:[#allocation10 + $0x60] sm:$0xff]
        %v3436 = vld [vmem:[#allocation10 + $0x68] sm:$0xff]
        %v3437 = vld [vmem:[#allocation10 + $0x70] sm:$0xff]
        %v3438 = vld [vmem:[#allocation10 + $0x78] sm:$0xff]
        %v3439 = vld [vmem:[#allocation10 + $0x80] sm:$0xff]
        %v3440 = vld [vmem:[#allocation10 + $0x88] sm:$0xff]
        %v3441 = vld [vmem:[#allocation10 + $0x90] sm:$0xff]
        %v3442 = vld [vmem:[#allocation10 + $0x98] sm:$0xff]
        %v3443 = vld [vmem:[#allocation10 + $0xa0] sm:$0xff]
        %v3444 = vld [vmem:[#allocation10 + $0xa8] sm:$0xff]
        %v3445 = vld [vmem:[#allocation10 + $0xb0] sm:$0xff]
        %v3446 = vld [vmem:[#allocation10 + $0xb8] sm:$0xff]
        %v3447 = vld [vmem:[#allocation10 + $0xc0] sm:$0xff]
        %v3448 = vld [vmem:[#allocation10 + $0xc8] sm:$0xff]
        %v3449 = vld [vmem:[#allocation10 + $0xd0] sm:$0xff]
        %v3450 = vld [vmem:[#allocation10 + $0xd8] sm:$0xff]
        %v3451 = vld [vmem:[#allocation10 + $0xe0] sm:$0xff]
        %v3452 = vld [vmem:[#allocation10 + $0xe8] sm:$0xff]
        %v3453 = vld [vmem:[#allocation10 + $0xf0] sm:$0xff]
        %v3454 = vld [vmem:[#allocation10 + $0xf8] sm:$0xff]
        %v3455 = vld [vmem:[#allocation10 + $0x100] sm:$0xff]
        %v3456 = vld [vmem:[#allocation10 + $0x108] sm:$0xff]
        %v3457 = vld [vmem:[#allocation10 + $0x110] sm:$0xff]
        %v3458 = vld [vmem:[#allocation10 + $0x118] sm:$0xff]
        %v3459 = vld [vmem:[#allocation10 + $0x120] sm:$0xff]
        %v3460 = vld [vmem:[#allocation10 + $0x128] sm:$0xff]
        %v3461 = vld [vmem:[#allocation10 + $0x130] sm:$0xff]
        %v3462 = vld [vmem:[#allocation10 + $0x138] sm:$0xff]
        %v3463 = vld [vmem:[#allocation10 + $0x140] sm:$0xff]
        %v3464 = vld [vmem:[#allocation10 + $0x148] sm:$0xff]
        %v3465 = vld [vmem:[#allocation10 + $0x150] sm:$0xff]
        %v3466 = vld [vmem:[#allocation10 + $0x158] sm:$0xff]
        %v3467 = vld [vmem:[#allocation10 + $0x160] sm:$0xff]
        %v3468 = vld [vmem:[#allocation10 + $0x168] sm:$0xff]
        %v3469 = vld [vmem:[#allocation10 + $0x170] sm:$0xff]
        %v3470 = vld [vmem:[#allocation10 + $0x178] sm:$0xff]
        %v3471 = vld [vmem:[#allocation10 + $0x180] sm:$0xff]
        %v3472 = vld [vmem:[#allocation10 + $0x188] sm:$0xff]
        %v3473 = vld [vmem:[#allocation10 + $0x190] sm:$0xff]
        %v3474 = vld [vmem:[#allocation10 + $0x198] sm:$0xff]
        %v3475 = vld [vmem:[#allocation10 + $0x1a0] sm:$0xff]
        %v3476 = vld [vmem:[#allocation10 + $0x1a8] sm:$0xff]
        %v3477 = vld [vmem:[#allocation10 + $0x1b0] sm:$0xff]
        %v3478 = vld [vmem:[#allocation10 + $0x1b8] sm:$0xff]
        %v3479 = vld [vmem:[#allocation10 + $0x1c0] sm:$0xff]
        %v3480 = vld [vmem:[#allocation10 + $0x1c8] sm:$0xff]
        %v3481 = vld [vmem:[#allocation10 + $0x1d0] sm:$0xff]
        %v3482 = vld [vmem:[#allocation10 + $0x1d8] sm:$0xff]
        %v3483 = vld [vmem:[#allocation10 + $0x1e0] sm:$0xff]
        %v3484 = vld [vmem:[#allocation10 + $0x1e8] sm:$0xff]
        %v3485 = vld [vmem:[#allocation10 + $0x1f0] sm:$0xff]
        %v3486 = vld [vmem:[#allocation10 + $0x1f8] sm:$0xff]
        %v3487 = vld [vmem:[#allocation10 + $0x200] sm:$0xff]
        %v3488 = vld [vmem:[#allocation10 + $0x208] sm:$0xff]
        %v3489 = vld [vmem:[#allocation10 + $0x210] sm:$0xff]
        %v3490 = vld [vmem:[#allocation10 + $0x218] sm:$0xff]
        %v3491 = vld [vmem:[#allocation10 + $0x220] sm:$0xff]
        %v3492 = vld [vmem:[#allocation10 + $0x228] sm:$0xff]
        %v3493 = vld [vmem:[#allocation10 + $0x230] sm:$0xff]
        %v3494 = vld [vmem:[#allocation10 + $0x238] sm:$0xff]
        %v3495 = vld [vmem:[#allocation10 + $0x240] sm:$0xff]
        %v3496 = vld [vmem:[#allocation10 + $0x248] sm:$0xff]
        %v3497 = vld [vmem:[#allocation10 + $0x250] sm:$0xff]
        %v3498 = vld [vmem:[#allocation10 + $0x258] sm:$0xff]
        %v3499 = vld [vmem:[#allocation10 + $0x260] sm:$0xff]
        %v3500 = vld [vmem:[#allocation10 + $0x268] sm:$0xff]
        %v3501 = vld [vmem:[#allocation10 + $0x270] sm:$0xff]
        %v3502 = vld [vmem:[#allocation10 + $0x278] sm:$0xff]
        %v3503 = vld [vmem:[#allocation10 + $0x280] sm:$0xff]
        %v3504 = vld [vmem:[#allocation10 + $0x288] sm:$0xff]
        %v3505 = vld [vmem:[#allocation10 + $0x290] sm:$0xff]
        %v3506 = vld [vmem:[#allocation10 + $0x298] sm:$0xff]
        %v3507 = vld [vmem:[#allocation10 + $0x2a0] sm:$0xff]
        %v3508 = vld [vmem:[#allocation10 + $0x2a8] sm:$0xff]
        %v3509 = vld [vmem:[#allocation10 + $0x2b0] sm:$0xff]
        %v3510 = vld [vmem:[#allocation10 + $0x2b8] sm:$0xff]
        %v3511 = vld [vmem:[#allocation10 + $0x2c0] sm:$0xff]
        %v3512 = vld [vmem:[#allocation10 + $0x2c8] sm:$0xff]
        %v3513 = vld [vmem:[#allocation10 + $0x2d0] sm:$0xff]
        %v3514 = vld [vmem:[#allocation10 + $0x2d8] sm:$0xff]
        %v3515 = vld [vmem:[#allocation10 + $0x2e0] sm:$0xff]
        %v3516 = vld [vmem:[#allocation10 + $0x2e8] sm:$0xff]
        %v3517 = vld [vmem:[#allocation10 + $0x2f0] sm:$0xff]
        %v3518 = vld [vmem:[#allocation10 + $0x2f8] sm:$0xff]
        %v3519 = vld [vmem:[#allocation10 + $0x300] sm:$0xff]
        %v3520 = vld [vmem:[#allocation10 + $0x308] sm:$0xff]
        %v3521 = vld [vmem:[#allocation10 + $0x310] sm:$0xff]
        %v3522 = vld [vmem:[#allocation10 + $0x318] sm:$0xff]
        %v3523 = vld [vmem:[#allocation10 + $0x320] sm:$0xff]
        %v3524 = vld [vmem:[#allocation10 + $0x328] sm:$0xff]
        %v3525 = vld [vmem:[#allocation10 + $0x330] sm:$0xff]
        %v3526 = vld [vmem:[#allocation10 + $0x338] sm:$0xff]
        %v3527 = vld [vmem:[#allocation10 + $0x340] sm:$0xff]
        %v3528 = vld [vmem:[#allocation10 + $0x348] sm:$0xff]
        %v3529 = vld [vmem:[#allocation10 + $0x350] sm:$0xff]
        %v3530 = vld [vmem:[#allocation10 + $0x358] sm:$0xff]
        %v3531 = vld [vmem:[#allocation10 + $0x360] sm:$0xff]
        %v3532 = vld [vmem:[#allocation10 + $0x368] sm:$0xff]
        %v3533 = vld [vmem:[#allocation10 + $0x370] sm:$0xff]
        %v3534 = vld [vmem:[#allocation10 + $0x378] sm:$0xff]
        %v3535 = vld [vmem:[#allocation10 + $0x380] sm:$0xff]
        %v3536 = vld [vmem:[#allocation10 + $0x388] sm:$0xff]
        %v3537 = vld [vmem:[#allocation10 + $0x390] sm:$0xff]
        %v3538 = vld [vmem:[#allocation10 + $0x398] sm:$0xff]
        %v3539 = vld [vmem:[#allocation10 + $0x3a0] sm:$0xff]
        %v3540 = vld [vmem:[#allocation10 + $0x3a8] sm:$0xff]
        %v3541 = vld [vmem:[#allocation10 + $0x3b0] sm:$0xff]
        %v3542 = vld [vmem:[#allocation10 + $0x3b8] sm:$0xff]
        %v3543 = vld [vmem:[#allocation10 + $0x3c0] sm:$0xff]
        %v3544 = vld [vmem:[#allocation10 + $0x3c8] sm:$0xff]
        %v3545 = vld [vmem:[#allocation10 + $0x3d0] sm:$0xff]
        %v3546 = vld [vmem:[#allocation10 + $0x3d8] sm:$0xff]
        %v3547 = vld [vmem:[#allocation10 + $0x3e0] sm:$0xff]
        %v3548 = vld [vmem:[#allocation10 + $0x3e8] sm:$0xff]
        %v3549 = vld [vmem:[#allocation10 + $0x3f0] sm:$0xff]
        %v3550 = vld [vmem:[#allocation10 + $0x3f8] sm:$0xff]
        %v3551 = vld [vmem:[#allocation10 + $0x400] sm:$0xff]
        %v3552 = vld [vmem:[#allocation10 + $0x408] sm:$0xff]
        %v3553 = vld [vmem:[#allocation10 + $0x410] sm:$0xff]
        %v3554 = vld [vmem:[#allocation10 + $0x418] sm:$0xff]
        %v3555 = vld [vmem:[#allocation10 + $0x420] sm:$0xff]
        %v3556 = vld [vmem:[#allocation10 + $0x428] sm:$0xff]
        %v3557 = vld [vmem:[#allocation10 + $0x430] sm:$0xff]
        %v3558 = vld [vmem:[#allocation10 + $0x438] sm:$0xff]
        %v3559 = vld [vmem:[#allocation10 + $0x440] sm:$0xff]
        %v3560 = vld [vmem:[#allocation10 + $0x448] sm:$0xff]
        %v3561 = vld [vmem:[#allocation10 + $0x450] sm:$0xff]
        %v3562 = vld [vmem:[#allocation10 + $0x458] sm:$0xff]
        %v3563 = vld [vmem:[#allocation10 + $0x460] sm:$0xff]
        %v3564 = vld [vmem:[#allocation10 + $0x468] sm:$0xff]
        %v3565 = vld [vmem:[#allocation10 + $0x470] sm:$0xff]
        %v3566 = vld [vmem:[#allocation10 + $0x478] sm:$0xff]
        %v3567 = vld [vmem:[#allocation10 + $0x480] sm:$0xff]
        %v3568 = vld [vmem:[#allocation10 + $0x488] sm:$0xff]
        %v3569 = vld [vmem:[#allocation10 + $0x490] sm:$0xff]
        %v3570 = vld [vmem:[#allocation10 + $0x498] sm:$0xff]
        %v3571 = vld [vmem:[#allocation10 + $0x4a0] sm:$0xff]
        %v3572 = vld [vmem:[#allocation10 + $0x4a8] sm:$0xff]
        %v3573 = vld [vmem:[#allocation10 + $0x4b0] sm:$0xff]
        %v3574 = vld [vmem:[#allocation10 + $0x4b8] sm:$0xff]
        %v3575 = vld [vmem:[#allocation10 + $0x4c0] sm:$0xff]
        %v3576 = vld [vmem:[#allocation10 + $0x4c8] sm:$0xff]
        %v3577 = vld [vmem:[#allocation10 + $0x4d0] sm:$0xff]
        %v3578 = vld [vmem:[#allocation10 + $0x4d8] sm:$0xff]
        %v3579 = vld [vmem:[#allocation10 + $0x4e0] sm:$0xff]
        %v3580 = vld [vmem:[#allocation10 + $0x4e8] sm:$0xff]
        %v3581 = vld [vmem:[#allocation10 + $0x4f0] sm:$0xff]
        %v3582 = vld [vmem:[#allocation10 + $0x4f8] sm:$0xff]
        %v3583 = vld [vmem:[#allocation10 + $0x500] sm:$0xff]
        %v3584 = vld [vmem:[#allocation10 + $0x508] sm:$0xff]
        %v3585 = vld [vmem:[#allocation10 + $0x510] sm:$0xff]
        %v3586 = vld [vmem:[#allocation10 + $0x518] sm:$0xff]
        %v3587 = vld [vmem:[#allocation10 + $0x520] sm:$0xff]
        %v3588 = vld [vmem:[#allocation10 + $0x528] sm:$0xff]
        %v3589 = vld [vmem:[#allocation10 + $0x530] sm:$0xff]
        %v3590 = vld [vmem:[#allocation10 + $0x538] sm:$0xff]
        %v3591 = vld [vmem:[#allocation10 + $0x540] sm:$0xff]
        %v3592 = vld [vmem:[#allocation10 + $0x548] sm:$0xff]
        %v3593 = vld [vmem:[#allocation10 + $0x550] sm:$0xff]
        %v3594 = vld [vmem:[#allocation10 + $0x558] sm:$0xff]
        %v3595 = vld [vmem:[#allocation10 + $0x560] sm:$0xff]
        %v3596 = vld [vmem:[#allocation10 + $0x568] sm:$0xff]
        %v3597 = vld [vmem:[#allocation10 + $0x570] sm:$0xff]
        %v3598 = vld [vmem:[#allocation10 + $0x578] sm:$0xff]
        %v3599 = vld [vmem:[#allocation10 + $0x580] sm:$0xff]
        %v3600 = vld [vmem:[#allocation10 + $0x588] sm:$0xff]
        %v3601 = vld [vmem:[#allocation10 + $0x590] sm:$0xff]
        %v3602 = vld [vmem:[#allocation10 + $0x598] sm:$0xff]
        %v3603 = vld [vmem:[#allocation10 + $0x5a0] sm:$0xff]
        %v3604 = vld [vmem:[#allocation10 + $0x5a8] sm:$0xff]
        %v3605 = vld [vmem:[#allocation10 + $0x5b0] sm:$0xff]
        %v3606 = vld [vmem:[#allocation10 + $0x5b8] sm:$0xff]
        %v3607 = vld [vmem:[#allocation10 + $0x5c0] sm:$0xff]
        %v3608 = vld [vmem:[#allocation10 + $0x5c8] sm:$0xff]
        %v3609 = vld [vmem:[#allocation10 + $0x5d0] sm:$0xff]
        %v3610 = vld [vmem:[#allocation10 + $0x5d8] sm:$0xff]
        %v3611 = vld [vmem:[#allocation10 + $0x5e0] sm:$0xff]
        %v3612 = vld [vmem:[#allocation10 + $0x5e8] sm:$0xff]
        %v3613 = vld [vmem:[#allocation10 + $0x5f0] sm:$0xff]
        %v3614 = vld [vmem:[#allocation10 + $0x5f8] sm:$0xff]
        %v3615 = vld [vmem:[#allocation10 + $0x600] sm:$0xff]
        %v3616 = vld [vmem:[#allocation10 + $0x608] sm:$0xff]
        %v3617 = vld [vmem:[#allocation10 + $0x610] sm:$0xff]
        %v3618 = vld [vmem:[#allocation10 + $0x618] sm:$0xff]
        %v3619 = vld [vmem:[#allocation10 + $0x620] sm:$0xff]
        %v3620 = vld [vmem:[#allocation10 + $0x628] sm:$0xff]
        %v3621 = vld [vmem:[#allocation10 + $0x630] sm:$0xff]
        %v3622 = vld [vmem:[#allocation10 + $0x638] sm:$0xff]
        %v3623 = vld [vmem:[#allocation10 + $0x640] sm:$0xff]
        %v3624 = vld [vmem:[#allocation10 + $0x648] sm:$0xff]
        %v3625 = vld [vmem:[#allocation10 + $0x650] sm:$0xff]
        %v3626 = vld [vmem:[#allocation10 + $0x658] sm:$0xff]
        %v3627 = vld [vmem:[#allocation10 + $0x660] sm:$0xff]
        %v3628 = vld [vmem:[#allocation10 + $0x668] sm:$0xff]
        %v3629 = vld [vmem:[#allocation10 + $0x670] sm:$0xff]
        %v3630 = vld [vmem:[#allocation10 + $0x678] sm:$0xff]
        %v3631 = vld [vmem:[#allocation10 + $0x680] sm:$0xff]
        %v3632 = vld [vmem:[#allocation10 + $0x688] sm:$0xff]
        %v3633 = vld [vmem:[#allocation10 + $0x690] sm:$0xff]
        %v3634 = vld [vmem:[#allocation10 + $0x698] sm:$0xff]
        %v3635 = vld [vmem:[#allocation10 + $0x6a0] sm:$0xff]
        %v3636 = vld [vmem:[#allocation10 + $0x6a8] sm:$0xff]
        %v3637 = vld [vmem:[#allocation10 + $0x6b0] sm:$0xff]
        %v3638 = vld [vmem:[#allocation10 + $0x6b8] sm:$0xff]
        %v3639 = vld [vmem:[#allocation10 + $0x6c0] sm:$0xff]
        %v3640 = vld [vmem:[#allocation10 + $0x6c8] sm:$0xff]
        %v3641 = vld [vmem:[#allocation10 + $0x6d0] sm:$0xff]
        %v3642 = vld [vmem:[#allocation10 + $0x6d8] sm:$0xff]
        %v3643 = vld [vmem:[#allocation10 + $0x6e0] sm:$0xff]
        %v3644 = vld [vmem:[#allocation10 + $0x6e8] sm:$0xff]
        %v3645 = vld [vmem:[#allocation10 + $0x6f0] sm:$0xff]
        %v3646 = vld [vmem:[#allocation10 + $0x6f8] sm:$0xff]
        %v3647 = vld [vmem:[#allocation10 + $0x700] sm:$0xff]
        %v3648 = vld [vmem:[#allocation10 + $0x708] sm:$0xff]
        %v3649 = vld [vmem:[#allocation10 + $0x710] sm:$0xff]
        %v3650 = vld [vmem:[#allocation10 + $0x718] sm:$0xff]
        %v3651 = vld [vmem:[#allocation10 + $0x720] sm:$0xff]
        %v3652 = vld [vmem:[#allocation10 + $0x728] sm:$0xff]
        %v3653 = vld [vmem:[#allocation10 + $0x730] sm:$0xff]
        %v3654 = vld [vmem:[#allocation10 + $0x738] sm:$0xff]
        %v3655 = vld [vmem:[#allocation10 + $0x740] sm:$0xff]
        %v3656 = vld [vmem:[#allocation10 + $0x748] sm:$0xff]
        %v3657 = vld [vmem:[#allocation10 + $0x750] sm:$0xff]
        %v3658 = vld [vmem:[#allocation10 + $0x758] sm:$0xff]
        %v3659 = vld [vmem:[#allocation10 + $0x760] sm:$0xff]
        %v3660 = vld [vmem:[#allocation10 + $0x768] sm:$0xff]
        %v3661 = vld [vmem:[#allocation10 + $0x770] sm:$0xff]
        %v3662 = vld [vmem:[#allocation10 + $0x778] sm:$0xff]
        %v3663 = vld [vmem:[#allocation10 + $0x780] sm:$0xff]
        %v3664 = vld [vmem:[#allocation10 + $0x788] sm:$0xff]
        %v3665 = vld [vmem:[#allocation10 + $0x790] sm:$0xff]
        %v3666 = vld [vmem:[#allocation10 + $0x798] sm:$0xff]
        %v3667 = vld [vmem:[#allocation10 + $0x7a0] sm:$0xff]
        %v3668 = vld [vmem:[#allocation10 + $0x7a8] sm:$0xff]
        %v3669 = vld [vmem:[#allocation10 + $0x7b0] sm:$0xff]
        %v3670 = vld [vmem:[#allocation10 + $0x7b8] sm:$0xff]
        %v3671 = vld [vmem:[#allocation10 + $0x7c0] sm:$0xff]
        %v3672 = vld [vmem:[#allocation10 + $0x7c8] sm:$0xff]
        %v3673 = vld [vmem:[#allocation10 + $0x7d0] sm:$0xff]
        %v3674 = vld [vmem:[#allocation10 + $0x7d8] sm:$0xff]
        %v3675 = vld [vmem:[#allocation10 + $0x7e0] sm:$0xff]
        %v3676 = vld [vmem:[#allocation10 + $0x7e8] sm:$0xff]
        %v3677 = vld [vmem:[#allocation10 + $0x7f0] sm:$0xff]
        %v3678 = vld [vmem:[#allocation10 + $0x7f8] sm:$0xff]
        %v3679 = vld [vmem:[#allocation10 + $0x800] sm:$0xff]
        %v3680 = vld [vmem:[#allocation10 + $0x808] sm:$0xff]
        %v3681 = vld [vmem:[#allocation10 + $0x810] sm:$0xff]
        %v3682 = vld [vmem:[#allocation10 + $0x818] sm:$0xff]
        %v3683 = vld [vmem:[#allocation10 + $0x820] sm:$0xff]
        %v3684 = vld [vmem:[#allocation10 + $0x828] sm:$0xff]
        %v3685 = vld [vmem:[#allocation10 + $0x830] sm:$0xff]
        %v3686 = vld [vmem:[#allocation10 + $0x838] sm:$0xff]
        %v3687 = vld [vmem:[#allocation10 + $0x840] sm:$0xff]
        %v3688 = vld [vmem:[#allocation10 + $0x848] sm:$0xff]
        %v3689 = vld [vmem:[#allocation10 + $0x850] sm:$0xff]
        %v3690 = vld [vmem:[#allocation10 + $0x858] sm:$0xff]
        %v3691 = vld [vmem:[#allocation10 + $0x860] sm:$0xff]
        %v3692 = vld [vmem:[#allocation10 + $0x868] sm:$0xff]
        %v3693 = vld [vmem:[#allocation10 + $0x870] sm:$0xff]
        %v3694 = vld [vmem:[#allocation10 + $0x878] sm:$0xff]
        %v3695 = vld [vmem:[#allocation10 + $0x880] sm:$0xff]
        %v3696 = vld [vmem:[#allocation10 + $0x888] sm:$0xff]
        %v3697 = vld [vmem:[#allocation10 + $0x890] sm:$0xff]
        %v3698 = vld [vmem:[#allocation10 + $0x898] sm:$0xff]
        %v3699 = vld [vmem:[#allocation10 + $0x8a0] sm:$0xff]
        %v3700 = vld [vmem:[#allocation10 + $0x8a8] sm:$0xff]
        %v3701 = vld [vmem:[#allocation10 + $0x8b0] sm:$0xff]
        %v3702 = vld [vmem:[#allocation10 + $0x8b8] sm:$0xff]
        %v3703 = vld [vmem:[#allocation10 + $0x8c0] sm:$0xff]
        %v3704 = vld [vmem:[#allocation10 + $0x8c8] sm:$0xff]
        %v3705 = vld [vmem:[#allocation10 + $0x8d0] sm:$0xff]
        %v3706 = vld [vmem:[#allocation10 + $0x8d8] sm:$0xff]
        %v3707 = vld [vmem:[#allocation10 + $0x8e0] sm:$0xff]
        %v3708 = vld [vmem:[#allocation10 + $0x8e8] sm:$0xff]
        %v3709 = vld [vmem:[#allocation10 + $0x8f0] sm:$0xff]
        %v3710 = vld [vmem:[#allocation10 + $0x8f8] sm:$0xff]
        %v3711 = vld [vmem:[#allocation10 + $0x900] sm:$0xff]
        %v3712 = vld [vmem:[#allocation10 + $0x908] sm:$0xff]
        %v3713 = vld [vmem:[#allocation10 + $0x910] sm:$0xff]
        %v3714 = vld [vmem:[#allocation10 + $0x918] sm:$0xff]
        %v3715 = vld [vmem:[#allocation10 + $0x920] sm:$0xff]
        %v3716 = vld [vmem:[#allocation10 + $0x928] sm:$0xff]
        %v3717 = vld [vmem:[#allocation10 + $0x930] sm:$0xff]
        %v3718 = vld [vmem:[#allocation10 + $0x938] sm:$0xff]
        %v3719 = vld [vmem:[#allocation10 + $0x940] sm:$0xff]
        %v3720 = vld [vmem:[#allocation10 + $0x948] sm:$0xff]
        %v3721 = vld [vmem:[#allocation10 + $0x950] sm:$0xff]
        %v3722 = vld [vmem:[#allocation10 + $0x958] sm:$0xff]
        %v3723 = vld [vmem:[#allocation10 + $0x960] sm:$0xff]
        %v3724 = vld [vmem:[#allocation10 + $0x968] sm:$0xff]
        %v3725 = vld [vmem:[#allocation10 + $0x970] sm:$0xff]
        %v3726 = vld [vmem:[#allocation10 + $0x978] sm:$0xff]
        %v3727 = vld [vmem:[#allocation10 + $0x980] sm:$0xff]
        %v3728 = vld [vmem:[#allocation10 + $0x988] sm:$0xff]
        %v3729 = vld [vmem:[#allocation10 + $0x990] sm:$0xff]
        %v3730 = vld [vmem:[#allocation10 + $0x998] sm:$0xff]
        %v3731 = vld [vmem:[#allocation10 + $0x9a0] sm:$0xff]
        %v3732 = vld [vmem:[#allocation10 + $0x9a8] sm:$0xff]
        %v3733 = vld [vmem:[#allocation10 + $0x9b0] sm:$0xff]
        %v3734 = vld [vmem:[#allocation10 + $0x9b8] sm:$0xff]
        %v3735 = vld [vmem:[#allocation10 + $0x9c0] sm:$0xff]
        %v3736 = vld [vmem:[#allocation10 + $0x9c8] sm:$0xff]
        %v3737 = vld [vmem:[#allocation10 + $0x9d0] sm:$0xff]
        %v3738 = vld [vmem:[#allocation10 + $0x9d8] sm:$0xff]
        %v3739 = vld [vmem:[#allocation10 + $0x9e0] sm:$0xff]
        %v3740 = vld [vmem:[#allocation10 + $0x9e8] sm:$0xff]
        %v3741 = vld [vmem:[#allocation10 + $0x9f0] sm:$0xff]
        %v3742 = vld [vmem:[#allocation10 + $0x9f8] sm:$0xff]
        %v3743 = vld [vmem:[#allocation10 + $0xa00] sm:$0xff]
        %v3744 = vld [vmem:[#allocation10 + $0xa08] sm:$0xff]
        %v3745 = vld [vmem:[#allocation10 + $0xa10] sm:$0xff]
        %v3746 = vld [vmem:[#allocation10 + $0xa18] sm:$0xff]
        %v3747 = vld [vmem:[#allocation10 + $0xa20] sm:$0xff]
        %v3748 = vld [vmem:[#allocation10 + $0xa28] sm:$0xff]
        %v3749 = vld [vmem:[#allocation10 + $0xa30] sm:$0xff]
        %v3750 = vld [vmem:[#allocation10 + $0xa38] sm:$0xff]
        %v3751 = vld [vmem:[#allocation10 + $0xa40] sm:$0xff]
        %v3752 = vld [vmem:[#allocation10 + $0xa48] sm:$0xff]
        %v3753 = vld [vmem:[#allocation10 + $0xa50] sm:$0xff]
        %v3754 = vld [vmem:[#allocation10 + $0xa58] sm:$0xff]
        %v3755 = vld [vmem:[#allocation10 + $0xa60] sm:$0xff]
        %v3756 = vld [vmem:[#allocation10 + $0xa68] sm:$0xff]
        %v3757 = vld [vmem:[#allocation10 + $0xa70] sm:$0xff]
        %v3758 = vld [vmem:[#allocation10 + $0xa78] sm:$0xff]
        %v3759 = vld [vmem:[#allocation10 + $0xa80] sm:$0xff]
        %v3760 = vld [vmem:[#allocation10 + $0xa88] sm:$0xff]
        %v3761 = vld [vmem:[#allocation10 + $0xa90] sm:$0xff]
        %v3762 = vld [vmem:[#allocation10 + $0xa98] sm:$0xff]
        %v3763 = vld [vmem:[#allocation10 + $0xaa0] sm:$0xff]
        %v3764 = vld [vmem:[#allocation10 + $0xaa8] sm:$0xff]
        %v3765 = vld [vmem:[#allocation10 + $0xab0] sm:$0xff]
        %v3766 = vld [vmem:[#allocation10 + $0xab8] sm:$0xff]
        %v3767 = vld [vmem:[#allocation10 + $0xac0] sm:$0xff]
        %v3768 = vld [vmem:[#allocation10 + $0xac8] sm:$0xff]
        %v3769 = vld [vmem:[#allocation10 + $0xad0] sm:$0xff]
        %v3770 = vld [vmem:[#allocation10 + $0xad8] sm:$0xff]
        %v3771 = vld [vmem:[#allocation10 + $0xae0] sm:$0xff]
        %v3772 = vld [vmem:[#allocation10 + $0xae8] sm:$0xff]
        %v3773 = vld [vmem:[#allocation10 + $0xaf0] sm:$0xff]
        %v3774 = vld [vmem:[#allocation10 + $0xaf8] sm:$0xff]
        %v3775 = vld [vmem:[#allocation10 + $0xb00] sm:$0xff]
        %v3776 = vld [vmem:[#allocation10 + $0xb08] sm:$0xff]
        %v3777 = vld [vmem:[#allocation10 + $0xb10] sm:$0xff]
        %v3778 = vld [vmem:[#allocation10 + $0xb18] sm:$0xff]
        %v3779 = vld [vmem:[#allocation10 + $0xb20] sm:$0xff]
        %v3780 = vld [vmem:[#allocation10 + $0xb28] sm:$0xff]
        %v3781 = vld [vmem:[#allocation10 + $0xb30] sm:$0xff]
        %v3782 = vld [vmem:[#allocation10 + $0xb38] sm:$0xff]
        %v3783 = vld [vmem:[#allocation10 + $0xb40] sm:$0xff]
        %v3784 = vld [vmem:[#allocation10 + $0xb48] sm:$0xff]
        %v3785 = vld [vmem:[#allocation10 + $0xb50] sm:$0xff]
        %v3786 = vld [vmem:[#allocation10 + $0xb58] sm:$0xff]
        %v3787 = vld [vmem:[#allocation10 + $0xb60] sm:$0xff]
        %v3788 = vld [vmem:[#allocation10 + $0xb68] sm:$0xff]
        %v3789 = vld [vmem:[#allocation10 + $0xb70] sm:$0xff]
        %v3790 = vld [vmem:[#allocation10 + $0xb78] sm:$0xff]
        %v3791 = vld [vmem:[#allocation10 + $0xb80] sm:$0xff]
        %v3792 = vld [vmem:[#allocation10 + $0xb88] sm:$0xff]
        %v3793 = vld [vmem:[#allocation10 + $0xb90] sm:$0xff]
        %v3794 = vld [vmem:[#allocation10 + $0xb98] sm:$0xff]
        %v3795 = vld [vmem:[#allocation10 + $0xba0] sm:$0xff]
        %v3796 = vld [vmem:[#allocation10 + $0xba8] sm:$0xff]
        %v3797 = vld [vmem:[#allocation10 + $0xbb0] sm:$0xff]
        %v3798 = vld [vmem:[#allocation10 + $0xbb8] sm:$0xff]
        %v3799 = vld [vmem:[#allocation10 + $0xbc0] sm:$0xff]
        %v3800 = vld [vmem:[#allocation10 + $0xbc8] sm:$0xff]
        %v3801 = vld [vmem:[#allocation10 + $0xbd0] sm:$0xff]
        %v3802 = vld [vmem:[#allocation10 + $0xbd8] sm:$0xff]
        %v3803 = vld [vmem:[#allocation10 + $0xbe0] sm:$0xff]
        %v3804 = vld [vmem:[#allocation10 + $0xbe8] sm:$0xff]
        %v3805 = vld [vmem:[#allocation10 + $0xbf0] sm:$0xff]
        %v3806 = vld [vmem:[#allocation10 + $0xbf8] sm:$0xff]
        %v4191 = vunpack.c.l.b16 %v3423
        %v4192 = vunpack.c.h.b16 %v3423
        %v4193 = vunpack.c.l.b16 %v3424
        %v4194 = vunpack.c.h.b16 %v3424
        %v4195 = vunpack.c.l.b16 %v3425
        %v4196 = vunpack.c.h.b16 %v3425
        %v4197 = vunpack.c.l.b16 %v3426
        %v4198 = vunpack.c.h.b16 %v3426
        %v4199 = vunpack.c.l.b16 %v3427
        %v4200 = vunpack.c.h.b16 %v3427
        %v4201 = vunpack.c.l.b16 %v3428
        %v4202 = vunpack.c.h.b16 %v3428
        %v4203 = vunpack.c.l.b16 %v3429
        %v4204 = vunpack.c.h.b16 %v3429
        %v4205 = vunpack.c.l.b16 %v3430
        %v4206 = vunpack.c.h.b16 %v3430
        %v4207 = vunpack.c.l.b16 %v3431
        %v4208 = vunpack.c.h.b16 %v3431
        %v4209 = vunpack.c.l.b16 %v3432
        %v4210 = vunpack.c.h.b16 %v3432
        %v4211 = vunpack.c.l.b16 %v3433
        %v4212 = vunpack.c.h.b16 %v3433
        %v4213 = vunpack.c.l.b16 %v3434
        %v4214 = vunpack.c.h.b16 %v3434
        %v4215 = vunpack.c.l.b16 %v3435
        %v4216 = vunpack.c.h.b16 %v3435
        %v4217 = vunpack.c.l.b16 %v3436
        %v4218 = vunpack.c.h.b16 %v3436
        %v4219 = vunpack.c.l.b16 %v3437
        %v4220 = vunpack.c.h.b16 %v3437
        %v4221 = vunpack.c.l.b16 %v3438
        %v4222 = vunpack.c.h.b16 %v3438
        %v4223 = vunpack.c.l.b16 %v3439
        %v4224 = vunpack.c.h.b16 %v3439
        %v4225 = vunpack.c.l.b16 %v3440
        %v4226 = vunpack.c.h.b16 %v3440
        %v4227 = vunpack.c.l.b16 %v3441
        %v4228 = vunpack.c.h.b16 %v3441
        %v4229 = vunpack.c.l.b16 %v3442
        %v4230 = vunpack.c.h.b16 %v3442
        %v4231 = vunpack.c.l.b16 %v3443
        %v4232 = vunpack.c.h.b16 %v3443
        %v4233 = vunpack.c.l.b16 %v3444
        %v4234 = vunpack.c.h.b16 %v3444
        %v4235 = vunpack.c.l.b16 %v3445
        %v4236 = vunpack.c.h.b16 %v3445
        %v4237 = vunpack.c.l.b16 %v3446
        %v4238 = vunpack.c.h.b16 %v3446
        %v4239 = vunpack.c.l.b16 %v3447
        %v4240 = vunpack.c.h.b16 %v3447
        %v4241 = vunpack.c.l.b16 %v3448
        %v4242 = vunpack.c.h.b16 %v3448
        %v4243 = vunpack.c.l.b16 %v3449
        %v4244 = vunpack.c.h.b16 %v3449
        %v4245 = vunpack.c.l.b16 %v3450
        %v4246 = vunpack.c.h.b16 %v3450
        %v4247 = vunpack.c.l.b16 %v3451
        %v4248 = vunpack.c.h.b16 %v3451
        %v4249 = vunpack.c.l.b16 %v3452
        %v4250 = vunpack.c.h.b16 %v3452
        %v4251 = vunpack.c.l.b16 %v3453
        %v4252 = vunpack.c.h.b16 %v3453
        %v4253 = vunpack.c.l.b16 %v3454
        %v4254 = vunpack.c.h.b16 %v3454
        %v4255 = vunpack.c.l.b16 %v3455
        %v4256 = vunpack.c.h.b16 %v3455
        %v4257 = vunpack.c.l.b16 %v3456
        %v4258 = vunpack.c.h.b16 %v3456
        %v4259 = vunpack.c.l.b16 %v3457
        %v4260 = vunpack.c.h.b16 %v3457
        %v4261 = vunpack.c.l.b16 %v3458
        %v4262 = vunpack.c.h.b16 %v3458
        %v4263 = vunpack.c.l.b16 %v3459
        %v4264 = vunpack.c.h.b16 %v3459
        %v4265 = vunpack.c.l.b16 %v3460
        %v4266 = vunpack.c.h.b16 %v3460
        %v4267 = vunpack.c.l.b16 %v3461
        %v4268 = vunpack.c.h.b16 %v3461
        %v4269 = vunpack.c.l.b16 %v3462
        %v4270 = vunpack.c.h.b16 %v3462
        %v4271 = vunpack.c.l.b16 %v3463
        %v4272 = vunpack.c.h.b16 %v3463
        %v4273 = vunpack.c.l.b16 %v3464
        %v4274 = vunpack.c.h.b16 %v3464
        %v4275 = vunpack.c.l.b16 %v3465
        %v4276 = vunpack.c.h.b16 %v3465
        %v4277 = vunpack.c.l.b16 %v3466
        %v4278 = vunpack.c.h.b16 %v3466
        %v4279 = vunpack.c.l.b16 %v3467
        %v4280 = vunpack.c.h.b16 %v3467
        %v4281 = vunpack.c.l.b16 %v3468
        %v4282 = vunpack.c.h.b16 %v3468
        %v4283 = vunpack.c.l.b16 %v3469
        %v4284 = vunpack.c.h.b16 %v3469
        %v4285 = vunpack.c.l.b16 %v3470
        %v4286 = vunpack.c.h.b16 %v3470
        %v4287 = vunpack.c.l.b16 %v3471
        %v4288 = vunpack.c.h.b16 %v3471
        %v4289 = vunpack.c.l.b16 %v3472
        %v4290 = vunpack.c.h.b16 %v3472
        %v4291 = vunpack.c.l.b16 %v3473
        %v4292 = vunpack.c.h.b16 %v3473
        %v4293 = vunpack.c.l.b16 %v3474
        %v4294 = vunpack.c.h.b16 %v3474
        %v4295 = vunpack.c.l.b16 %v3475
        %v4296 = vunpack.c.h.b16 %v3475
        %v4297 = vunpack.c.l.b16 %v3476
        %v4298 = vunpack.c.h.b16 %v3476
        %v4299 = vunpack.c.l.b16 %v3477
        %v4300 = vunpack.c.h.b16 %v3477
        %v4301 = vunpack.c.l.b16 %v3478
        %v4302 = vunpack.c.h.b16 %v3478
        %v4303 = vunpack.c.l.b16 %v3479
        %v4304 = vunpack.c.h.b16 %v3479
        %v4305 = vunpack.c.l.b16 %v3480
        %v4306 = vunpack.c.h.b16 %v3480
        %v4307 = vunpack.c.l.b16 %v3481
        %v4308 = vunpack.c.h.b16 %v3481
        %v4309 = vunpack.c.l.b16 %v3482
        %v4310 = vunpack.c.h.b16 %v3482
        %v4311 = vunpack.c.l.b16 %v3483
        %v4312 = vunpack.c.h.b16 %v3483
        %v4313 = vunpack.c.l.b16 %v3484
        %v4314 = vunpack.c.h.b16 %v3484
        %v4315 = vunpack.c.l.b16 %v3485
        %v4316 = vunpack.c.h.b16 %v3485
        %v4317 = vunpack.c.l.b16 %v3486
        %v4318 = vunpack.c.h.b16 %v3486
        %v4319 = vunpack.c.l.b16 %v3487
        %v4320 = vunpack.c.h.b16 %v3487
        %v4321 = vunpack.c.l.b16 %v3488
        %v4322 = vunpack.c.h.b16 %v3488
        %v4323 = vunpack.c.l.b16 %v3489
        %v4324 = vunpack.c.h.b16 %v3489
        %v4325 = vunpack.c.l.b16 %v3490
        %v4326 = vunpack.c.h.b16 %v3490
        %v4327 = vunpack.c.l.b16 %v3491
        %v4328 = vunpack.c.h.b16 %v3491
        %v4329 = vunpack.c.l.b16 %v3492
        %v4330 = vunpack.c.h.b16 %v3492
        %v4331 = vunpack.c.l.b16 %v3493
        %v4332 = vunpack.c.h.b16 %v3493
        %v4333 = vunpack.c.l.b16 %v3494
        %v4334 = vunpack.c.h.b16 %v3494
        %v4335 = vunpack.c.l.b16 %v3495
        %v4336 = vunpack.c.h.b16 %v3495
        %v4337 = vunpack.c.l.b16 %v3496
        %v4338 = vunpack.c.h.b16 %v3496
        %v4339 = vunpack.c.l.b16 %v3497
        %v4340 = vunpack.c.h.b16 %v3497
        %v4341 = vunpack.c.l.b16 %v3498
        %v4342 = vunpack.c.h.b16 %v3498
        %v4343 = vunpack.c.l.b16 %v3499
        %v4344 = vunpack.c.h.b16 %v3499
        %v4345 = vunpack.c.l.b16 %v3500
        %v4346 = vunpack.c.h.b16 %v3500
        %v4347 = vunpack.c.l.b16 %v3501
        %v4348 = vunpack.c.h.b16 %v3501
        %v4349 = vunpack.c.l.b16 %v3502
        %v4350 = vunpack.c.h.b16 %v3502
        %v4351 = vunpack.c.l.b16 %v3503
        %v4352 = vunpack.c.h.b16 %v3503
        %v4353 = vunpack.c.l.b16 %v3504
        %v4354 = vunpack.c.h.b16 %v3504
        %v4355 = vunpack.c.l.b16 %v3505
        %v4356 = vunpack.c.h.b16 %v3505
        %v4357 = vunpack.c.l.b16 %v3506
        %v4358 = vunpack.c.h.b16 %v3506
        %v4359 = vunpack.c.l.b16 %v3507
        %v4360 = vunpack.c.h.b16 %v3507
        %v4361 = vunpack.c.l.b16 %v3508
        %v4362 = vunpack.c.h.b16 %v3508
        %v4363 = vunpack.c.l.b16 %v3509
        %v4364 = vunpack.c.h.b16 %v3509
        %v4365 = vunpack.c.l.b16 %v3510
        %v4366 = vunpack.c.h.b16 %v3510
        %v4367 = vunpack.c.l.b16 %v3511
        %v4368 = vunpack.c.h.b16 %v3511
        %v4369 = vunpack.c.l.b16 %v3512
        %v4370 = vunpack.c.h.b16 %v3512
        %v4371 = vunpack.c.l.b16 %v3513
        %v4372 = vunpack.c.h.b16 %v3513
        %v4373 = vunpack.c.l.b16 %v3514
        %v4374 = vunpack.c.h.b16 %v3514
        %v4375 = vunpack.c.l.b16 %v3515
        %v4376 = vunpack.c.h.b16 %v3515
        %v4377 = vunpack.c.l.b16 %v3516
        %v4378 = vunpack.c.h.b16 %v3516
        %v4379 = vunpack.c.l.b16 %v3517
        %v4380 = vunpack.c.h.b16 %v3517
        %v4381 = vunpack.c.l.b16 %v3518
        %v4382 = vunpack.c.h.b16 %v3518
        %v4383 = vunpack.c.l.b16 %v3519
        %v4384 = vunpack.c.h.b16 %v3519
        %v4385 = vunpack.c.l.b16 %v3520
        %v4386 = vunpack.c.h.b16 %v3520
        %v4387 = vunpack.c.l.b16 %v3521
        %v4388 = vunpack.c.h.b16 %v3521
        %v4389 = vunpack.c.l.b16 %v3522
        %v4390 = vunpack.c.h.b16 %v3522
        %v4391 = vunpack.c.l.b16 %v3523
        %v4392 = vunpack.c.h.b16 %v3523
        %v4393 = vunpack.c.l.b16 %v3524
        %v4394 = vunpack.c.h.b16 %v3524
        %v4395 = vunpack.c.l.b16 %v3525
        %v4396 = vunpack.c.h.b16 %v3525
        %v4397 = vunpack.c.l.b16 %v3526
        %v4398 = vunpack.c.h.b16 %v3526
        %v4399 = vunpack.c.l.b16 %v3527
        %v4400 = vunpack.c.h.b16 %v3527
        %v4401 = vunpack.c.l.b16 %v3528
        %v4402 = vunpack.c.h.b16 %v3528
        %v4403 = vunpack.c.l.b16 %v3529
        %v4404 = vunpack.c.h.b16 %v3529
        %v4405 = vunpack.c.l.b16 %v3530
        %v4406 = vunpack.c.h.b16 %v3530
        %v4407 = vunpack.c.l.b16 %v3531
        %v4408 = vunpack.c.h.b16 %v3531
        %v4409 = vunpack.c.l.b16 %v3532
        %v4410 = vunpack.c.h.b16 %v3532
        %v4411 = vunpack.c.l.b16 %v3533
        %v4412 = vunpack.c.h.b16 %v3533
        %v4413 = vunpack.c.l.b16 %v3534
        %v4414 = vunpack.c.h.b16 %v3534
        %v4415 = vunpack.c.l.b16 %v3535
        %v4416 = vunpack.c.h.b16 %v3535
        %v4417 = vunpack.c.l.b16 %v3536
        %v4418 = vunpack.c.h.b16 %v3536
        %v4419 = vunpack.c.l.b16 %v3537
        %v4420 = vunpack.c.h.b16 %v3537
        %v4421 = vunpack.c.l.b16 %v3538
        %v4422 = vunpack.c.h.b16 %v3538
        %v4423 = vunpack.c.l.b16 %v3539
        %v4424 = vunpack.c.h.b16 %v3539
        %v4425 = vunpack.c.l.b16 %v3540
        %v4426 = vunpack.c.h.b16 %v3540
        %v4427 = vunpack.c.l.b16 %v3541
        %v4428 = vunpack.c.h.b16 %v3541
        %v4429 = vunpack.c.l.b16 %v3542
        %v4430 = vunpack.c.h.b16 %v3542
        %v4431 = vunpack.c.l.b16 %v3543
        %v4432 = vunpack.c.h.b16 %v3543
        %v4433 = vunpack.c.l.b16 %v3544
        %v4434 = vunpack.c.h.b16 %v3544
        %v4435 = vunpack.c.l.b16 %v3545
        %v4436 = vunpack.c.h.b16 %v3545
        %v4437 = vunpack.c.l.b16 %v3546
        %v4438 = vunpack.c.h.b16 %v3546
        %v4439 = vunpack.c.l.b16 %v3547
        %v4440 = vunpack.c.h.b16 %v3547
        %v4441 = vunpack.c.l.b16 %v3548
        %v4442 = vunpack.c.h.b16 %v3548
        %v4443 = vunpack.c.l.b16 %v3549
        %v4444 = vunpack.c.h.b16 %v3549
        %v4445 = vunpack.c.l.b16 %v3550
        %v4446 = vunpack.c.h.b16 %v3550
        %v4447 = vunpack.c.l.b16 %v3551
        %v4448 = vunpack.c.h.b16 %v3551
        %v4449 = vunpack.c.l.b16 %v3552
        %v4450 = vunpack.c.h.b16 %v3552
        %v4451 = vunpack.c.l.b16 %v3553
        %v4452 = vunpack.c.h.b16 %v3553
        %v4453 = vunpack.c.l.b16 %v3554
        %v4454 = vunpack.c.h.b16 %v3554
        %v4455 = vunpack.c.l.b16 %v3555
        %v4456 = vunpack.c.h.b16 %v3555
        %v4457 = vunpack.c.l.b16 %v3556
        %v4458 = vunpack.c.h.b16 %v3556
        %v4459 = vunpack.c.l.b16 %v3557
        %v4460 = vunpack.c.h.b16 %v3557
        %v4461 = vunpack.c.l.b16 %v3558
        %v4462 = vunpack.c.h.b16 %v3558
        %v4463 = vunpack.c.l.b16 %v3559
        %v4464 = vunpack.c.h.b16 %v3559
        %v4465 = vunpack.c.l.b16 %v3560
        %v4466 = vunpack.c.h.b16 %v3560
        %v4467 = vunpack.c.l.b16 %v3561
        %v4468 = vunpack.c.h.b16 %v3561
        %v4469 = vunpack.c.l.b16 %v3562
        %v4470 = vunpack.c.h.b16 %v3562
        %v4471 = vunpack.c.l.b16 %v3563
        %v4472 = vunpack.c.h.b16 %v3563
        %v4473 = vunpack.c.l.b16 %v3564
        %v4474 = vunpack.c.h.b16 %v3564
        %v4475 = vunpack.c.l.b16 %v3565
        %v4476 = vunpack.c.h.b16 %v3565
        %v4477 = vunpack.c.l.b16 %v3566
        %v4478 = vunpack.c.h.b16 %v3566
        %v4479 = vunpack.c.l.b16 %v3567
        %v4480 = vunpack.c.h.b16 %v3567
        %v4481 = vunpack.c.l.b16 %v3568
        %v4482 = vunpack.c.h.b16 %v3568
        %v4483 = vunpack.c.l.b16 %v3569
        %v4484 = vunpack.c.h.b16 %v3569
        %v4485 = vunpack.c.l.b16 %v3570
        %v4486 = vunpack.c.h.b16 %v3570
        %v4487 = vunpack.c.l.b16 %v3571
        %v4488 = vunpack.c.h.b16 %v3571
        %v4489 = vunpack.c.l.b16 %v3572
        %v4490 = vunpack.c.h.b16 %v3572
        %v4491 = vunpack.c.l.b16 %v3573
        %v4492 = vunpack.c.h.b16 %v3573
        %v4493 = vunpack.c.l.b16 %v3574
        %v4494 = vunpack.c.h.b16 %v3574
        %v4495 = vunpack.c.l.b16 %v3575
        %v4496 = vunpack.c.h.b16 %v3575
        %v4497 = vunpack.c.l.b16 %v3576
        %v4498 = vunpack.c.h.b16 %v3576
        %v4499 = vunpack.c.l.b16 %v3577
        %v4500 = vunpack.c.h.b16 %v3577
        %v4501 = vunpack.c.l.b16 %v3578
        %v4502 = vunpack.c.h.b16 %v3578
        %v4503 = vunpack.c.l.b16 %v3579
        %v4504 = vunpack.c.h.b16 %v3579
        %v4505 = vunpack.c.l.b16 %v3580
        %v4506 = vunpack.c.h.b16 %v3580
        %v4507 = vunpack.c.l.b16 %v3581
        %v4508 = vunpack.c.h.b16 %v3581
        %v4509 = vunpack.c.l.b16 %v3582
        %v4510 = vunpack.c.h.b16 %v3582
        %v4511 = vunpack.c.l.b16 %v3583
        %v4512 = vunpack.c.h.b16 %v3583
        %v4513 = vunpack.c.l.b16 %v3584
        %v4514 = vunpack.c.h.b16 %v3584
        %v4515 = vunpack.c.l.b16 %v3585
        %v4516 = vunpack.c.h.b16 %v3585
        %v4517 = vunpack.c.l.b16 %v3586
        %v4518 = vunpack.c.h.b16 %v3586
        %v4519 = vunpack.c.l.b16 %v3587
        %v4520 = vunpack.c.h.b16 %v3587
        %v4521 = vunpack.c.l.b16 %v3588
        %v4522 = vunpack.c.h.b16 %v3588
        %v4523 = vunpack.c.l.b16 %v3589
        %v4524 = vunpack.c.h.b16 %v3589
        %v4525 = vunpack.c.l.b16 %v3590
        %v4526 = vunpack.c.h.b16 %v3590
        %v4527 = vunpack.c.l.b16 %v3591
        %v4528 = vunpack.c.h.b16 %v3591
        %v4529 = vunpack.c.l.b16 %v3592
        %v4530 = vunpack.c.h.b16 %v3592
        %v4531 = vunpack.c.l.b16 %v3593
        %v4532 = vunpack.c.h.b16 %v3593
        %v4533 = vunpack.c.l.b16 %v3594
        %v4534 = vunpack.c.h.b16 %v3594
        %v4535 = vunpack.c.l.b16 %v3595
        %v4536 = vunpack.c.h.b16 %v3595
        %v4537 = vunpack.c.l.b16 %v3596
        %v4538 = vunpack.c.h.b16 %v3596
        %v4539 = vunpack.c.l.b16 %v3597
        %v4540 = vunpack.c.h.b16 %v3597
        %v4541 = vunpack.c.l.b16 %v3598
        %v4542 = vunpack.c.h.b16 %v3598
        %v4543 = vunpack.c.l.b16 %v3599
        %v4544 = vunpack.c.h.b16 %v3599
        %v4545 = vunpack.c.l.b16 %v3600
        %v4546 = vunpack.c.h.b16 %v3600
        %v4547 = vunpack.c.l.b16 %v3601
        %v4548 = vunpack.c.h.b16 %v3601
        %v4549 = vunpack.c.l.b16 %v3602
        %v4550 = vunpack.c.h.b16 %v3602
        %v4551 = vunpack.c.l.b16 %v3603
        %v4552 = vunpack.c.h.b16 %v3603
        %v4553 = vunpack.c.l.b16 %v3604
        %v4554 = vunpack.c.h.b16 %v3604
        %v4555 = vunpack.c.l.b16 %v3605
        %v4556 = vunpack.c.h.b16 %v3605
        %v4557 = vunpack.c.l.b16 %v3606
        %v4558 = vunpack.c.h.b16 %v3606
        %v4559 = vunpack.c.l.b16 %v3607
        %v4560 = vunpack.c.h.b16 %v3607
        %v4561 = vunpack.c.l.b16 %v3608
        %v4562 = vunpack.c.h.b16 %v3608
        %v4563 = vunpack.c.l.b16 %v3609
        %v4564 = vunpack.c.h.b16 %v3609
        %v4565 = vunpack.c.l.b16 %v3610
        %v4566 = vunpack.c.h.b16 %v3610
        %v4567 = vunpack.c.l.b16 %v3611
        %v4568 = vunpack.c.h.b16 %v3611
        %v4569 = vunpack.c.l.b16 %v3612
        %v4570 = vunpack.c.h.b16 %v3612
        %v4571 = vunpack.c.l.b16 %v3613
        %v4572 = vunpack.c.h.b16 %v3613
        %v4573 = vunpack.c.l.b16 %v3614
        %v4574 = vunpack.c.h.b16 %v3614
        %v4575 = vunpack.c.l.b16 %v3615
        %v4576 = vunpack.c.h.b16 %v3615
        %v4577 = vunpack.c.l.b16 %v3616
        %v4578 = vunpack.c.h.b16 %v3616
        %v4579 = vunpack.c.l.b16 %v3617
        %v4580 = vunpack.c.h.b16 %v3617
        %v4581 = vunpack.c.l.b16 %v3618
        %v4582 = vunpack.c.h.b16 %v3618
        %v4583 = vunpack.c.l.b16 %v3619
        %v4584 = vunpack.c.h.b16 %v3619
        %v4585 = vunpack.c.l.b16 %v3620
        %v4586 = vunpack.c.h.b16 %v3620
        %v4587 = vunpack.c.l.b16 %v3621
        %v4588 = vunpack.c.h.b16 %v3621
        %v4589 = vunpack.c.l.b16 %v3622
        %v4590 = vunpack.c.h.b16 %v3622
        %v4591 = vunpack.c.l.b16 %v3623
        %v4592 = vunpack.c.h.b16 %v3623
        %v4593 = vunpack.c.l.b16 %v3624
        %v4594 = vunpack.c.h.b16 %v3624
        %v4595 = vunpack.c.l.b16 %v3625
        %v4596 = vunpack.c.h.b16 %v3625
        %v4597 = vunpack.c.l.b16 %v3626
        %v4598 = vunpack.c.h.b16 %v3626
        %v4599 = vunpack.c.l.b16 %v3627
        %v4600 = vunpack.c.h.b16 %v3627
        %v4601 = vunpack.c.l.b16 %v3628
        %v4602 = vunpack.c.h.b16 %v3628
        %v4603 = vunpack.c.l.b16 %v3629
        %v4604 = vunpack.c.h.b16 %v3629
        %v4605 = vunpack.c.l.b16 %v3630
        %v4606 = vunpack.c.h.b16 %v3630
        %v4607 = vunpack.c.l.b16 %v3631
        %v4608 = vunpack.c.h.b16 %v3631
        %v4609 = vunpack.c.l.b16 %v3632
        %v4610 = vunpack.c.h.b16 %v3632
        %v4611 = vunpack.c.l.b16 %v3633
        %v4612 = vunpack.c.h.b16 %v3633
        %v4613 = vunpack.c.l.b16 %v3634
        %v4614 = vunpack.c.h.b16 %v3634
        %v4615 = vunpack.c.l.b16 %v3635
        %v4616 = vunpack.c.h.b16 %v3635
        %v4617 = vunpack.c.l.b16 %v3636
        %v4618 = vunpack.c.h.b16 %v3636
        %v4619 = vunpack.c.l.b16 %v3637
        %v4620 = vunpack.c.h.b16 %v3637
        %v4621 = vunpack.c.l.b16 %v3638
        %v4622 = vunpack.c.h.b16 %v3638
        %v4623 = vunpack.c.l.b16 %v3639
        %v4624 = vunpack.c.h.b16 %v3639
        %v4625 = vunpack.c.l.b16 %v3640
        %v4626 = vunpack.c.h.b16 %v3640
        %v4627 = vunpack.c.l.b16 %v3641
        %v4628 = vunpack.c.h.b16 %v3641
        %v4629 = vunpack.c.l.b16 %v3642
        %v4630 = vunpack.c.h.b16 %v3642
        %v4631 = vunpack.c.l.b16 %v3643
        %v4632 = vunpack.c.h.b16 %v3643
        %v4633 = vunpack.c.l.b16 %v3644
        %v4634 = vunpack.c.h.b16 %v3644
        %v4635 = vunpack.c.l.b16 %v3645
        %v4636 = vunpack.c.h.b16 %v3645
        %v4637 = vunpack.c.l.b16 %v3646
        %v4638 = vunpack.c.h.b16 %v3646
        %v4639 = vunpack.c.l.b16 %v3647
        %v4640 = vunpack.c.h.b16 %v3647
        %v4641 = vunpack.c.l.b16 %v3648
        %v4642 = vunpack.c.h.b16 %v3648
        %v4643 = vunpack.c.l.b16 %v3649
        %v4644 = vunpack.c.h.b16 %v3649
        %v4645 = vunpack.c.l.b16 %v3650
        %v4646 = vunpack.c.h.b16 %v3650
        %v4647 = vunpack.c.l.b16 %v3651
        %v4648 = vunpack.c.h.b16 %v3651
        %v4649 = vunpack.c.l.b16 %v3652
        %v4650 = vunpack.c.h.b16 %v3652
        %v4651 = vunpack.c.l.b16 %v3653
        %v4652 = vunpack.c.h.b16 %v3653
        %v4653 = vunpack.c.l.b16 %v3654
        %v4654 = vunpack.c.h.b16 %v3654
        %v4655 = vunpack.c.l.b16 %v3655
        %v4656 = vunpack.c.h.b16 %v3655
        %v4657 = vunpack.c.l.b16 %v3656
        %v4658 = vunpack.c.h.b16 %v3656
        %v4659 = vunpack.c.l.b16 %v3657
        %v4660 = vunpack.c.h.b16 %v3657
        %v4661 = vunpack.c.l.b16 %v3658
        %v4662 = vunpack.c.h.b16 %v3658
        %v4663 = vunpack.c.l.b16 %v3659
        %v4664 = vunpack.c.h.b16 %v3659
        %v4665 = vunpack.c.l.b16 %v3660
        %v4666 = vunpack.c.h.b16 %v3660
        %v4667 = vunpack.c.l.b16 %v3661
        %v4668 = vunpack.c.h.b16 %v3661
        %v4669 = vunpack.c.l.b16 %v3662
        %v4670 = vunpack.c.h.b16 %v3662
        %v4671 = vunpack.c.l.b16 %v3663
        %v4672 = vunpack.c.h.b16 %v3663
        %v4673 = vunpack.c.l.b16 %v3664
        %v4674 = vunpack.c.h.b16 %v3664
        %v4675 = vunpack.c.l.b16 %v3665
        %v4676 = vunpack.c.h.b16 %v3665
        %v4677 = vunpack.c.l.b16 %v3666
        %v4678 = vunpack.c.h.b16 %v3666
        %v4679 = vunpack.c.l.b16 %v3667
        %v4680 = vunpack.c.h.b16 %v3667
        %v4681 = vunpack.c.l.b16 %v3668
        %v4682 = vunpack.c.h.b16 %v3668
        %v4683 = vunpack.c.l.b16 %v3669
        %v4684 = vunpack.c.h.b16 %v3669
        %v4685 = vunpack.c.l.b16 %v3670
        %v4686 = vunpack.c.h.b16 %v3670
        %v4687 = vunpack.c.l.b16 %v3671
        %v4688 = vunpack.c.h.b16 %v3671
        %v4689 = vunpack.c.l.b16 %v3672
        %v4690 = vunpack.c.h.b16 %v3672
        %v4691 = vunpack.c.l.b16 %v3673
        %v4692 = vunpack.c.h.b16 %v3673
        %v4693 = vunpack.c.l.b16 %v3674
        %v4694 = vunpack.c.h.b16 %v3674
        %v4695 = vunpack.c.l.b16 %v3675
        %v4696 = vunpack.c.h.b16 %v3675
        %v4697 = vunpack.c.l.b16 %v3676
        %v4698 = vunpack.c.h.b16 %v3676
        %v4699 = vunpack.c.l.b16 %v3677
        %v4700 = vunpack.c.h.b16 %v3677
        %v4701 = vunpack.c.l.b16 %v3678
        %v4702 = vunpack.c.h.b16 %v3678
        %v4703 = vunpack.c.l.b16 %v3679
        %v4704 = vunpack.c.h.b16 %v3679
        %v4705 = vunpack.c.l.b16 %v3680
        %v4706 = vunpack.c.h.b16 %v3680
        %v4707 = vunpack.c.l.b16 %v3681
        %v4708 = vunpack.c.h.b16 %v3681
        %v4709 = vunpack.c.l.b16 %v3682
        %v4710 = vunpack.c.h.b16 %v3682
        %v4711 = vunpack.c.l.b16 %v3683
        %v4712 = vunpack.c.h.b16 %v3683
        %v4713 = vunpack.c.l.b16 %v3684
        %v4714 = vunpack.c.h.b16 %v3684
        %v4715 = vunpack.c.l.b16 %v3685
        %v4716 = vunpack.c.h.b16 %v3685
        %v4717 = vunpack.c.l.b16 %v3686
        %v4718 = vunpack.c.h.b16 %v3686
        %v4719 = vunpack.c.l.b16 %v3687
        %v4720 = vunpack.c.h.b16 %v3687
        %v4721 = vunpack.c.l.b16 %v3688
        %v4722 = vunpack.c.h.b16 %v3688
        %v4723 = vunpack.c.l.b16 %v3689
        %v4724 = vunpack.c.h.b16 %v3689
        %v4725 = vunpack.c.l.b16 %v3690
        %v4726 = vunpack.c.h.b16 %v3690
        %v4727 = vunpack.c.l.b16 %v3691
        %v4728 = vunpack.c.h.b16 %v3691
        %v4729 = vunpack.c.l.b16 %v3692
        %v4730 = vunpack.c.h.b16 %v3692
        %v4731 = vunpack.c.l.b16 %v3693
        %v4732 = vunpack.c.h.b16 %v3693
        %v4733 = vunpack.c.l.b16 %v3694
        %v4734 = vunpack.c.h.b16 %v3694
        %v4735 = vunpack.c.l.b16 %v3695
        %v4736 = vunpack.c.h.b16 %v3695
        %v4737 = vunpack.c.l.b16 %v3696
        %v4738 = vunpack.c.h.b16 %v3696
        %v4739 = vunpack.c.l.b16 %v3697
        %v4740 = vunpack.c.h.b16 %v3697
        %v4741 = vunpack.c.l.b16 %v3698
        %v4742 = vunpack.c.h.b16 %v3698
        %v4743 = vunpack.c.l.b16 %v3699
        %v4744 = vunpack.c.h.b16 %v3699
        %v4745 = vunpack.c.l.b16 %v3700
        %v4746 = vunpack.c.h.b16 %v3700
        %v4747 = vunpack.c.l.b16 %v3701
        %v4748 = vunpack.c.h.b16 %v3701
        %v4749 = vunpack.c.l.b16 %v3702
        %v4750 = vunpack.c.h.b16 %v3702
        %v4751 = vunpack.c.l.b16 %v3703
        %v4752 = vunpack.c.h.b16 %v3703
        %v4753 = vunpack.c.l.b16 %v3704
        %v4754 = vunpack.c.h.b16 %v3704
        %v4755 = vunpack.c.l.b16 %v3705
        %v4756 = vunpack.c.h.b16 %v3705
        %v4757 = vunpack.c.l.b16 %v3706
        %v4758 = vunpack.c.h.b16 %v3706
        %v4759 = vunpack.c.l.b16 %v3707
        %v4760 = vunpack.c.h.b16 %v3707
        %v4761 = vunpack.c.l.b16 %v3708
        %v4762 = vunpack.c.h.b16 %v3708
        %v4763 = vunpack.c.l.b16 %v3709
        %v4764 = vunpack.c.h.b16 %v3709
        %v4765 = vunpack.c.l.b16 %v3710
        %v4766 = vunpack.c.h.b16 %v3710
        %v4767 = vunpack.c.l.b16 %v3711
        %v4768 = vunpack.c.h.b16 %v3711
        %v4769 = vunpack.c.l.b16 %v3712
        %v4770 = vunpack.c.h.b16 %v3712
        %v4771 = vunpack.c.l.b16 %v3713
        %v4772 = vunpack.c.h.b16 %v3713
        %v4773 = vunpack.c.l.b16 %v3714
        %v4774 = vunpack.c.h.b16 %v3714
        %v4775 = vunpack.c.l.b16 %v3715
        %v4776 = vunpack.c.h.b16 %v3715
        %v4777 = vunpack.c.l.b16 %v3716
        %v4778 = vunpack.c.h.b16 %v3716
        %v4779 = vunpack.c.l.b16 %v3717
        %v4780 = vunpack.c.h.b16 %v3717
        %v4781 = vunpack.c.l.b16 %v3718
        %v4782 = vunpack.c.h.b16 %v3718
        %v4783 = vunpack.c.l.b16 %v3719
        %v4784 = vunpack.c.h.b16 %v3719
        %v4785 = vunpack.c.l.b16 %v3720
        %v4786 = vunpack.c.h.b16 %v3720
        %v4787 = vunpack.c.l.b16 %v3721
        %v4788 = vunpack.c.h.b16 %v3721
        %v4789 = vunpack.c.l.b16 %v3722
        %v4790 = vunpack.c.h.b16 %v3722
        %v4791 = vunpack.c.l.b16 %v3723
        %v4792 = vunpack.c.h.b16 %v3723
        %v4793 = vunpack.c.l.b16 %v3724
        %v4794 = vunpack.c.h.b16 %v3724
        %v4795 = vunpack.c.l.b16 %v3725
        %v4796 = vunpack.c.h.b16 %v3725
        %v4797 = vunpack.c.l.b16 %v3726
        %v4798 = vunpack.c.h.b16 %v3726
        %v4799 = vunpack.c.l.b16 %v3727
        %v4800 = vunpack.c.h.b16 %v3727
        %v4801 = vunpack.c.l.b16 %v3728
        %v4802 = vunpack.c.h.b16 %v3728
        %v4803 = vunpack.c.l.b16 %v3729
        %v4804 = vunpack.c.h.b16 %v3729
        %v4805 = vunpack.c.l.b16 %v3730
        %v4806 = vunpack.c.h.b16 %v3730
        %v4807 = vunpack.c.l.b16 %v3731
        %v4808 = vunpack.c.h.b16 %v3731
        %v4809 = vunpack.c.l.b16 %v3732
        %v4810 = vunpack.c.h.b16 %v3732
        %v4811 = vunpack.c.l.b16 %v3733
        %v4812 = vunpack.c.h.b16 %v3733
        %v4813 = vunpack.c.l.b16 %v3734
        %v4814 = vunpack.c.h.b16 %v3734
        %v4815 = vunpack.c.l.b16 %v3735
        %v4816 = vunpack.c.h.b16 %v3735
        %v4817 = vunpack.c.l.b16 %v3736
        %v4818 = vunpack.c.h.b16 %v3736
        %v4819 = vunpack.c.l.b16 %v3737
        %v4820 = vunpack.c.h.b16 %v3737
        %v4821 = vunpack.c.l.b16 %v3738
        %v4822 = vunpack.c.h.b16 %v3738
        %v4823 = vunpack.c.l.b16 %v3739
        %v4824 = vunpack.c.h.b16 %v3739
        %v4825 = vunpack.c.l.b16 %v3740
        %v4826 = vunpack.c.h.b16 %v3740
        %v4827 = vunpack.c.l.b16 %v3741
        %v4828 = vunpack.c.h.b16 %v3741
        %v4829 = vunpack.c.l.b16 %v3742
        %v4830 = vunpack.c.h.b16 %v3742
        %v4831 = vunpack.c.l.b16 %v3743
        %v4832 = vunpack.c.h.b16 %v3743
        %v4833 = vunpack.c.l.b16 %v3744
        %v4834 = vunpack.c.h.b16 %v3744
        %v4835 = vunpack.c.l.b16 %v3745
        %v4836 = vunpack.c.h.b16 %v3745
        %v4837 = vunpack.c.l.b16 %v3746
        %v4838 = vunpack.c.h.b16 %v3746
        %v4839 = vunpack.c.l.b16 %v3747
        %v4840 = vunpack.c.h.b16 %v3747
        %v4841 = vunpack.c.l.b16 %v3748
        %v4842 = vunpack.c.h.b16 %v3748
        %v4843 = vunpack.c.l.b16 %v3749
        %v4844 = vunpack.c.h.b16 %v3749
        %v4845 = vunpack.c.l.b16 %v3750
        %v4846 = vunpack.c.h.b16 %v3750
        %v4847 = vunpack.c.l.b16 %v3751
        %v4848 = vunpack.c.h.b16 %v3751
        %v4849 = vunpack.c.l.b16 %v3752
        %v4850 = vunpack.c.h.b16 %v3752
        %v4851 = vunpack.c.l.b16 %v3753
        %v4852 = vunpack.c.h.b16 %v3753
        %v4853 = vunpack.c.l.b16 %v3754
        %v4854 = vunpack.c.h.b16 %v3754
        %v4855 = vunpack.c.l.b16 %v3755
        %v4856 = vunpack.c.h.b16 %v3755
        %v4857 = vunpack.c.l.b16 %v3756
        %v4858 = vunpack.c.h.b16 %v3756
        %v4859 = vunpack.c.l.b16 %v3757
        %v4860 = vunpack.c.h.b16 %v3757
        %v4861 = vunpack.c.l.b16 %v3758
        %v4862 = vunpack.c.h.b16 %v3758
        %v4863 = vunpack.c.l.b16 %v3759
        %v4864 = vunpack.c.h.b16 %v3759
        %v4865 = vunpack.c.l.b16 %v3760
        %v4866 = vunpack.c.h.b16 %v3760
        %v4867 = vunpack.c.l.b16 %v3761
        %v4868 = vunpack.c.h.b16 %v3761
        %v4869 = vunpack.c.l.b16 %v3762
        %v4870 = vunpack.c.h.b16 %v3762
        %v4871 = vunpack.c.l.b16 %v3763
        %v4872 = vunpack.c.h.b16 %v3763
        %v4873 = vunpack.c.l.b16 %v3764
        %v4874 = vunpack.c.h.b16 %v3764
        %v4875 = vunpack.c.l.b16 %v3765
        %v4876 = vunpack.c.h.b16 %v3765
        %v4877 = vunpack.c.l.b16 %v3766
        %v4878 = vunpack.c.h.b16 %v3766
        %v4879 = vunpack.c.l.b16 %v3767
        %v4880 = vunpack.c.h.b16 %v3767
        %v4881 = vunpack.c.l.b16 %v3768
        %v4882 = vunpack.c.h.b16 %v3768
        %v4883 = vunpack.c.l.b16 %v3769
        %v4884 = vunpack.c.h.b16 %v3769
        %v4885 = vunpack.c.l.b16 %v3770
        %v4886 = vunpack.c.h.b16 %v3770
        %v4887 = vunpack.c.l.b16 %v3771
        %v4888 = vunpack.c.h.b16 %v3771
        %v4889 = vunpack.c.l.b16 %v3772
        %v4890 = vunpack.c.h.b16 %v3772
        %v4891 = vunpack.c.l.b16 %v3773
        %v4892 = vunpack.c.h.b16 %v3773
        %v4893 = vunpack.c.l.b16 %v3774
        %v4894 = vunpack.c.h.b16 %v3774
        %v4895 = vunpack.c.l.b16 %v3775
        %v4896 = vunpack.c.h.b16 %v3775
        %v4897 = vunpack.c.l.b16 %v3776
        %v4898 = vunpack.c.h.b16 %v3776
        %v4899 = vunpack.c.l.b16 %v3777
        %v4900 = vunpack.c.h.b16 %v3777
        %v4901 = vunpack.c.l.b16 %v3778
        %v4902 = vunpack.c.h.b16 %v3778
        %v4903 = vunpack.c.l.b16 %v3779
        %v4904 = vunpack.c.h.b16 %v3779
        %v4905 = vunpack.c.l.b16 %v3780
        %v4906 = vunpack.c.h.b16 %v3780
        %v4907 = vunpack.c.l.b16 %v3781
        %v4908 = vunpack.c.h.b16 %v3781
        %v4909 = vunpack.c.l.b16 %v3782
        %v4910 = vunpack.c.h.b16 %v3782
        %v4911 = vunpack.c.l.b16 %v3783
        %v4912 = vunpack.c.h.b16 %v3783
        %v4913 = vunpack.c.l.b16 %v3784
        %v4914 = vunpack.c.h.b16 %v3784
        %v4915 = vunpack.c.l.b16 %v3785
        %v4916 = vunpack.c.h.b16 %v3785
        %v4917 = vunpack.c.l.b16 %v3786
        %v4918 = vunpack.c.h.b16 %v3786
        %v4919 = vunpack.c.l.b16 %v3787
        %v4920 = vunpack.c.h.b16 %v3787
        %v4921 = vunpack.c.l.b16 %v3788
        %v4922 = vunpack.c.h.b16 %v3788
        %v4923 = vunpack.c.l.b16 %v3789
        %v4924 = vunpack.c.h.b16 %v3789
        %v4925 = vunpack.c.l.b16 %v3790
        %v4926 = vunpack.c.h.b16 %v3790
        %v4927 = vunpack.c.l.b16 %v3791
        %v4928 = vunpack.c.h.b16 %v3791
        %v4929 = vunpack.c.l.b16 %v3792
        %v4930 = vunpack.c.h.b16 %v3792
        %v4931 = vunpack.c.l.b16 %v3793
        %v4932 = vunpack.c.h.b16 %v3793
        %v4933 = vunpack.c.l.b16 %v3794
        %v4934 = vunpack.c.h.b16 %v3794
        %v4935 = vunpack.c.l.b16 %v3795
        %v4936 = vunpack.c.h.b16 %v3795
        %v4937 = vunpack.c.l.b16 %v3796
        %v4938 = vunpack.c.h.b16 %v3796
        %v4939 = vunpack.c.l.b16 %v3797
        %v4940 = vunpack.c.h.b16 %v3797
        %v4941 = vunpack.c.l.b16 %v3798
        %v4942 = vunpack.c.h.b16 %v3798
        %v4943 = vunpack.c.l.b16 %v3799
        %v4944 = vunpack.c.h.b16 %v3799
        %v4945 = vunpack.c.l.b16 %v3800
        %v4946 = vunpack.c.h.b16 %v3800
        %v4947 = vunpack.c.l.b16 %v3801
        %v4948 = vunpack.c.h.b16 %v3801
        %v4949 = vunpack.c.l.b16 %v3802
        %v4950 = vunpack.c.h.b16 %v3802
        %v4951 = vunpack.c.l.b16 %v3803
        %v4952 = vunpack.c.h.b16 %v3803
        %v4953 = vunpack.c.l.b16 %v3804
        %v4954 = vunpack.c.h.b16 %v3804
        %v4955 = vunpack.c.l.b16 %v3805
        %v4956 = vunpack.c.h.b16 %v3805
        %v4957 = vunpack.c.l.b16 %v3806
        %v4958 = vunpack.c.h.b16 %v3806
        %v4959 = vpack.c.b16 %v4195, %v4191
        %v4960 = vpack.c.b16 %v4196, %v4192
        %v4961 = vpack.c.b16 %v4197, %v4193
        %v4962 = vpack.c.b16 %v4198, %v4194
        %v4963 = vpack.c.b16 %v4203, %v4199
        %v4964 = vpack.c.b16 %v4204, %v4200
        %v4965 = vpack.c.b16 %v4205, %v4201
        %v4966 = vpack.c.b16 %v4206, %v4202
        %v4967 = vpack.c.b16 %v4211, %v4207
        %v4968 = vpack.c.b16 %v4212, %v4208
        %v4969 = vpack.c.b16 %v4213, %v4209
        %v4970 = vpack.c.b16 %v4214, %v4210
        %v4971 = vpack.c.b16 %v4219, %v4215
        %v4972 = vpack.c.b16 %v4220, %v4216
        %v4973 = vpack.c.b16 %v4221, %v4217
        %v4974 = vpack.c.b16 %v4222, %v4218
        %v4975 = vpack.c.b16 %v4227, %v4223
        %v4976 = vpack.c.b16 %v4228, %v4224
        %v4977 = vpack.c.b16 %v4229, %v4225
        %v4978 = vpack.c.b16 %v4230, %v4226
        %v4979 = vpack.c.b16 %v4235, %v4231
        %v4980 = vpack.c.b16 %v4236, %v4232
        %v4981 = vpack.c.b16 %v4237, %v4233
        %v4982 = vpack.c.b16 %v4238, %v4234
        %v4983 = vpack.c.b16 %v4243, %v4239
        %v4984 = vpack.c.b16 %v4244, %v4240
        %v4985 = vpack.c.b16 %v4245, %v4241
        %v4986 = vpack.c.b16 %v4246, %v4242
        %v4987 = vpack.c.b16 %v4251, %v4247
        %v4988 = vpack.c.b16 %v4252, %v4248
        %v4989 = vpack.c.b16 %v4253, %v4249
        %v4990 = vpack.c.b16 %v4254, %v4250
        %v4991 = vpack.c.b16 %v4259, %v4255
        %v4992 = vpack.c.b16 %v4260, %v4256
        %v4993 = vpack.c.b16 %v4261, %v4257
        %v4994 = vpack.c.b16 %v4262, %v4258
        %v4995 = vpack.c.b16 %v4267, %v4263
        %v4996 = vpack.c.b16 %v4268, %v4264
        %v4997 = vpack.c.b16 %v4269, %v4265
        %v4998 = vpack.c.b16 %v4270, %v4266
        %v4999 = vpack.c.b16 %v4275, %v4271
        %v5000 = vpack.c.b16 %v4276, %v4272
        %v5001 = vpack.c.b16 %v4277, %v4273
        %v5002 = vpack.c.b16 %v4278, %v4274
        %v5003 = vpack.c.b16 %v4283, %v4279
        %v5004 = vpack.c.b16 %v4284, %v4280
        %v5005 = vpack.c.b16 %v4285, %v4281
        %v5006 = vpack.c.b16 %v4286, %v4282
        %v5007 = vpack.c.b16 %v4291, %v4287
        %v5008 = vpack.c.b16 %v4292, %v4288
        %v5009 = vpack.c.b16 %v4293, %v4289
        %v5010 = vpack.c.b16 %v4294, %v4290
        %v5011 = vpack.c.b16 %v4299, %v4295
        %v5012 = vpack.c.b16 %v4300, %v4296
        %v5013 = vpack.c.b16 %v4301, %v4297
        %v5014 = vpack.c.b16 %v4302, %v4298
        %v5015 = vpack.c.b16 %v4307, %v4303
        %v5016 = vpack.c.b16 %v4308, %v4304
        %v5017 = vpack.c.b16 %v4309, %v4305
        %v5018 = vpack.c.b16 %v4310, %v4306
        %v5019 = vpack.c.b16 %v4315, %v4311
        %v5020 = vpack.c.b16 %v4316, %v4312
        %v5021 = vpack.c.b16 %v4317, %v4313
        %v5022 = vpack.c.b16 %v4318, %v4314
        %v5023 = vpack.c.b16 %v4323, %v4319
        %v5024 = vpack.c.b16 %v4324, %v4320
        %v5025 = vpack.c.b16 %v4325, %v4321
        %v5026 = vpack.c.b16 %v4326, %v4322
        %v5027 = vpack.c.b16 %v4331, %v4327
        %v5028 = vpack.c.b16 %v4332, %v4328
        %v5029 = vpack.c.b16 %v4333, %v4329
        %v5030 = vpack.c.b16 %v4334, %v4330
        %v5031 = vpack.c.b16 %v4339, %v4335
        %v5032 = vpack.c.b16 %v4340, %v4336
        %v5033 = vpack.c.b16 %v4341, %v4337
        %v5034 = vpack.c.b16 %v4342, %v4338
        %v5035 = vpack.c.b16 %v4347, %v4343
        %v5036 = vpack.c.b16 %v4348, %v4344
        %v5037 = vpack.c.b16 %v4349, %v4345
        %v5038 = vpack.c.b16 %v4350, %v4346
        %v5039 = vpack.c.b16 %v4355, %v4351
        %v5040 = vpack.c.b16 %v4356, %v4352
        %v5041 = vpack.c.b16 %v4357, %v4353
        %v5042 = vpack.c.b16 %v4358, %v4354
        %v5043 = vpack.c.b16 %v4363, %v4359
        %v5044 = vpack.c.b16 %v4364, %v4360
        %v5045 = vpack.c.b16 %v4365, %v4361
        %v5046 = vpack.c.b16 %v4366, %v4362
        %v5047 = vpack.c.b16 %v4371, %v4367
        %v5048 = vpack.c.b16 %v4372, %v4368
        %v5049 = vpack.c.b16 %v4373, %v4369
        %v5050 = vpack.c.b16 %v4374, %v4370
        %v5051 = vpack.c.b16 %v4379, %v4375
        %v5052 = vpack.c.b16 %v4380, %v4376
        %v5053 = vpack.c.b16 %v4381, %v4377
        %v5054 = vpack.c.b16 %v4382, %v4378
        %v5055 = vpack.c.b16 %v4387, %v4383
        %v5056 = vpack.c.b16 %v4388, %v4384
        %v5057 = vpack.c.b16 %v4389, %v4385
        %v5058 = vpack.c.b16 %v4390, %v4386
        %v5059 = vpack.c.b16 %v4395, %v4391
        %v5060 = vpack.c.b16 %v4396, %v4392
        %v5061 = vpack.c.b16 %v4397, %v4393
        %v5062 = vpack.c.b16 %v4398, %v4394
        %v5063 = vpack.c.b16 %v4403, %v4399
        %v5064 = vpack.c.b16 %v4404, %v4400
        %v5065 = vpack.c.b16 %v4405, %v4401
        %v5066 = vpack.c.b16 %v4406, %v4402
        %v5067 = vpack.c.b16 %v4411, %v4407
        %v5068 = vpack.c.b16 %v4412, %v4408
        %v5069 = vpack.c.b16 %v4413, %v4409
        %v5070 = vpack.c.b16 %v4414, %v4410
        %v5071 = vpack.c.b16 %v4419, %v4415
        %v5072 = vpack.c.b16 %v4420, %v4416
        %v5073 = vpack.c.b16 %v4421, %v4417
        %v5074 = vpack.c.b16 %v4422, %v4418
        %v5075 = vpack.c.b16 %v4427, %v4423
        %v5076 = vpack.c.b16 %v4428, %v4424
        %v5077 = vpack.c.b16 %v4429, %v4425
        %v5078 = vpack.c.b16 %v4430, %v4426
        %v5079 = vpack.c.b16 %v4435, %v4431
        %v5080 = vpack.c.b16 %v4436, %v4432
        %v5081 = vpack.c.b16 %v4437, %v4433
        %v5082 = vpack.c.b16 %v4438, %v4434
        %v5083 = vpack.c.b16 %v4443, %v4439
        %v5084 = vpack.c.b16 %v4444, %v4440
        %v5085 = vpack.c.b16 %v4445, %v4441
        %v5086 = vpack.c.b16 %v4446, %v4442
        %v5087 = vpack.c.b16 %v4451, %v4447
        %v5088 = vpack.c.b16 %v4452, %v4448
        %v5089 = vpack.c.b16 %v4453, %v4449
        %v5090 = vpack.c.b16 %v4454, %v4450
        %v5091 = vpack.c.b16 %v4459, %v4455
        %v5092 = vpack.c.b16 %v4460, %v4456
        %v5093 = vpack.c.b16 %v4461, %v4457
        %v5094 = vpack.c.b16 %v4462, %v4458
        %v5095 = vpack.c.b16 %v4467, %v4463
        %v5096 = vpack.c.b16 %v4468, %v4464
        %v5097 = vpack.c.b16 %v4469, %v4465
        %v5098 = vpack.c.b16 %v4470, %v4466
        %v5099 = vpack.c.b16 %v4475, %v4471
        %v5100 = vpack.c.b16 %v4476, %v4472
        %v5101 = vpack.c.b16 %v4477, %v4473
        %v5102 = vpack.c.b16 %v4478, %v4474
        %v5103 = vpack.c.b16 %v4483, %v4479
        %v5104 = vpack.c.b16 %v4484, %v4480
        %v5105 = vpack.c.b16 %v4485, %v4481
        %v5106 = vpack.c.b16 %v4486, %v4482
        %v5107 = vpack.c.b16 %v4491, %v4487
        %v5108 = vpack.c.b16 %v4492, %v4488
        %v5109 = vpack.c.b16 %v4493, %v4489
        %v5110 = vpack.c.b16 %v4494, %v4490
        %v5111 = vpack.c.b16 %v4499, %v4495
        %v5112 = vpack.c.b16 %v4500, %v4496
        %v5113 = vpack.c.b16 %v4501, %v4497
        %v5114 = vpack.c.b16 %v4502, %v4498
        %v5115 = vpack.c.b16 %v4507, %v4503
        %v5116 = vpack.c.b16 %v4508, %v4504
        %v5117 = vpack.c.b16 %v4509, %v4505
        %v5118 = vpack.c.b16 %v4510, %v4506
        %v5119 = vpack.c.b16 %v4515, %v4511
        %v5120 = vpack.c.b16 %v4516, %v4512
        %v5121 = vpack.c.b16 %v4517, %v4513
        %v5122 = vpack.c.b16 %v4518, %v4514
        %v5123 = vpack.c.b16 %v4523, %v4519
        %v5124 = vpack.c.b16 %v4524, %v4520
        %v5125 = vpack.c.b16 %v4525, %v4521
        %v5126 = vpack.c.b16 %v4526, %v4522
        %v5127 = vpack.c.b16 %v4531, %v4527
        %v5128 = vpack.c.b16 %v4532, %v4528
        %v5129 = vpack.c.b16 %v4533, %v4529
        %v5130 = vpack.c.b16 %v4534, %v4530
        %v5131 = vpack.c.b16 %v4539, %v4535
        %v5132 = vpack.c.b16 %v4540, %v4536
        %v5133 = vpack.c.b16 %v4541, %v4537
        %v5134 = vpack.c.b16 %v4542, %v4538
        %v5135 = vpack.c.b16 %v4547, %v4543
        %v5136 = vpack.c.b16 %v4548, %v4544
        %v5137 = vpack.c.b16 %v4549, %v4545
        %v5138 = vpack.c.b16 %v4550, %v4546
        %v5139 = vpack.c.b16 %v4555, %v4551
        %v5140 = vpack.c.b16 %v4556, %v4552
        %v5141 = vpack.c.b16 %v4557, %v4553
        %v5142 = vpack.c.b16 %v4558, %v4554
        %v5143 = vpack.c.b16 %v4563, %v4559
        %v5144 = vpack.c.b16 %v4564, %v4560
        %v5145 = vpack.c.b16 %v4565, %v4561
        %v5146 = vpack.c.b16 %v4566, %v4562
        %v5147 = vpack.c.b16 %v4571, %v4567
        %v5148 = vpack.c.b16 %v4572, %v4568
        %v5149 = vpack.c.b16 %v4573, %v4569
        %v5150 = vpack.c.b16 %v4574, %v4570
        %v5151 = vpack.c.b16 %v4579, %v4575
        %v5152 = vpack.c.b16 %v4580, %v4576
        %v5153 = vpack.c.b16 %v4581, %v4577
        %v5154 = vpack.c.b16 %v4582, %v4578
        %v5155 = vpack.c.b16 %v4587, %v4583
        %v5156 = vpack.c.b16 %v4588, %v4584
        %v5157 = vpack.c.b16 %v4589, %v4585
        %v5158 = vpack.c.b16 %v4590, %v4586
        %v5159 = vpack.c.b16 %v4595, %v4591
        %v5160 = vpack.c.b16 %v4596, %v4592
        %v5161 = vpack.c.b16 %v4597, %v4593
        %v5162 = vpack.c.b16 %v4598, %v4594
        %v5163 = vpack.c.b16 %v4603, %v4599
        %v5164 = vpack.c.b16 %v4604, %v4600
        %v5165 = vpack.c.b16 %v4605, %v4601
        %v5166 = vpack.c.b16 %v4606, %v4602
        %v5167 = vpack.c.b16 %v4611, %v4607
        %v5168 = vpack.c.b16 %v4612, %v4608
        %v5169 = vpack.c.b16 %v4613, %v4609
        %v5170 = vpack.c.b16 %v4614, %v4610
        %v5171 = vpack.c.b16 %v4619, %v4615
        %v5172 = vpack.c.b16 %v4620, %v4616
        %v5173 = vpack.c.b16 %v4621, %v4617
        %v5174 = vpack.c.b16 %v4622, %v4618
        %v5175 = vpack.c.b16 %v4627, %v4623
        %v5176 = vpack.c.b16 %v4628, %v4624
        %v5177 = vpack.c.b16 %v4629, %v4625
        %v5178 = vpack.c.b16 %v4630, %v4626
        %v5179 = vpack.c.b16 %v4635, %v4631
        %v5180 = vpack.c.b16 %v4636, %v4632
        %v5181 = vpack.c.b16 %v4637, %v4633
        %v5182 = vpack.c.b16 %v4638, %v4634
        %v5183 = vpack.c.b16 %v4643, %v4639
        %v5184 = vpack.c.b16 %v4644, %v4640
        %v5185 = vpack.c.b16 %v4645, %v4641
        %v5186 = vpack.c.b16 %v4646, %v4642
        %v5187 = vpack.c.b16 %v4651, %v4647
        %v5188 = vpack.c.b16 %v4652, %v4648
        %v5189 = vpack.c.b16 %v4653, %v4649
        %v5190 = vpack.c.b16 %v4654, %v4650
        %v5191 = vpack.c.b16 %v4659, %v4655
        %v5192 = vpack.c.b16 %v4660, %v4656
        %v5193 = vpack.c.b16 %v4661, %v4657
        %v5194 = vpack.c.b16 %v4662, %v4658
        %v5195 = vpack.c.b16 %v4667, %v4663
        %v5196 = vpack.c.b16 %v4668, %v4664
        %v5197 = vpack.c.b16 %v4669, %v4665
        %v5198 = vpack.c.b16 %v4670, %v4666
        %v5199 = vpack.c.b16 %v4675, %v4671
        %v5200 = vpack.c.b16 %v4676, %v4672
        %v5201 = vpack.c.b16 %v4677, %v4673
        %v5202 = vpack.c.b16 %v4678, %v4674
        %v5203 = vpack.c.b16 %v4683, %v4679
        %v5204 = vpack.c.b16 %v4684, %v4680
        %v5205 = vpack.c.b16 %v4685, %v4681
        %v5206 = vpack.c.b16 %v4686, %v4682
        %v5207 = vpack.c.b16 %v4691, %v4687
        %v5208 = vpack.c.b16 %v4692, %v4688
        %v5209 = vpack.c.b16 %v4693, %v4689
        %v5210 = vpack.c.b16 %v4694, %v4690
        %v5211 = vpack.c.b16 %v4699, %v4695
        %v5212 = vpack.c.b16 %v4700, %v4696
        %v5213 = vpack.c.b16 %v4701, %v4697
        %v5214 = vpack.c.b16 %v4702, %v4698
        %v5215 = vpack.c.b16 %v4707, %v4703
        %v5216 = vpack.c.b16 %v4708, %v4704
        %v5217 = vpack.c.b16 %v4709, %v4705
        %v5218 = vpack.c.b16 %v4710, %v4706
        %v5219 = vpack.c.b16 %v4715, %v4711
        %v5220 = vpack.c.b16 %v4716, %v4712
        %v5221 = vpack.c.b16 %v4717, %v4713
        %v5222 = vpack.c.b16 %v4718, %v4714
        %v5223 = vpack.c.b16 %v4723, %v4719
        %v5224 = vpack.c.b16 %v4724, %v4720
        %v5225 = vpack.c.b16 %v4725, %v4721
        %v5226 = vpack.c.b16 %v4726, %v4722
        %v5227 = vpack.c.b16 %v4731, %v4727
        %v5228 = vpack.c.b16 %v4732, %v4728
        %v5229 = vpack.c.b16 %v4733, %v4729
        %v5230 = vpack.c.b16 %v4734, %v4730
        %v5231 = vpack.c.b16 %v4739, %v4735
        %v5232 = vpack.c.b16 %v4740, %v4736
        %v5233 = vpack.c.b16 %v4741, %v4737
        %v5234 = vpack.c.b16 %v4742, %v4738
        %v5235 = vpack.c.b16 %v4747, %v4743
        %v5236 = vpack.c.b16 %v4748, %v4744
        %v5237 = vpack.c.b16 %v4749, %v4745
        %v5238 = vpack.c.b16 %v4750, %v4746
        %v5239 = vpack.c.b16 %v4755, %v4751
        %v5240 = vpack.c.b16 %v4756, %v4752
        %v5241 = vpack.c.b16 %v4757, %v4753
        %v5242 = vpack.c.b16 %v4758, %v4754
        %v5243 = vpack.c.b16 %v4763, %v4759
        %v5244 = vpack.c.b16 %v4764, %v4760
        %v5245 = vpack.c.b16 %v4765, %v4761
        %v5246 = vpack.c.b16 %v4766, %v4762
        %v5247 = vpack.c.b16 %v4771, %v4767
        %v5248 = vpack.c.b16 %v4772, %v4768
        %v5249 = vpack.c.b16 %v4773, %v4769
        %v5250 = vpack.c.b16 %v4774, %v4770
        %v5251 = vpack.c.b16 %v4779, %v4775
        %v5252 = vpack.c.b16 %v4780, %v4776
        %v5253 = vpack.c.b16 %v4781, %v4777
        %v5254 = vpack.c.b16 %v4782, %v4778
        %v5255 = vpack.c.b16 %v4787, %v4783
        %v5256 = vpack.c.b16 %v4788, %v4784
        %v5257 = vpack.c.b16 %v4789, %v4785
        %v5258 = vpack.c.b16 %v4790, %v4786
        %v5259 = vpack.c.b16 %v4795, %v4791
        %v5260 = vpack.c.b16 %v4796, %v4792
        %v5261 = vpack.c.b16 %v4797, %v4793
        %v5262 = vpack.c.b16 %v4798, %v4794
        %v5263 = vpack.c.b16 %v4803, %v4799
        %v5264 = vpack.c.b16 %v4804, %v4800
        %v5265 = vpack.c.b16 %v4805, %v4801
        %v5266 = vpack.c.b16 %v4806, %v4802
        %v5267 = vpack.c.b16 %v4811, %v4807
        %v5268 = vpack.c.b16 %v4812, %v4808
        %v5269 = vpack.c.b16 %v4813, %v4809
        %v5270 = vpack.c.b16 %v4814, %v4810
        %v5271 = vpack.c.b16 %v4819, %v4815
        %v5272 = vpack.c.b16 %v4820, %v4816
        %v5273 = vpack.c.b16 %v4821, %v4817
        %v5274 = vpack.c.b16 %v4822, %v4818
        %v5275 = vpack.c.b16 %v4827, %v4823
        %v5276 = vpack.c.b16 %v4828, %v4824
        %v5277 = vpack.c.b16 %v4829, %v4825
        %v5278 = vpack.c.b16 %v4830, %v4826
        %v5279 = vpack.c.b16 %v4835, %v4831
        %v5280 = vpack.c.b16 %v4836, %v4832
        %v5281 = vpack.c.b16 %v4837, %v4833
        %v5282 = vpack.c.b16 %v4838, %v4834
        %v5283 = vpack.c.b16 %v4843, %v4839
        %v5284 = vpack.c.b16 %v4844, %v4840
        %v5285 = vpack.c.b16 %v4845, %v4841
        %v5286 = vpack.c.b16 %v4846, %v4842
        %v5287 = vpack.c.b16 %v4851, %v4847
        %v5288 = vpack.c.b16 %v4852, %v4848
        %v5289 = vpack.c.b16 %v4853, %v4849
        %v5290 = vpack.c.b16 %v4854, %v4850
        %v5291 = vpack.c.b16 %v4859, %v4855
        %v5292 = vpack.c.b16 %v4860, %v4856
        %v5293 = vpack.c.b16 %v4861, %v4857
        %v5294 = vpack.c.b16 %v4862, %v4858
        %v5295 = vpack.c.b16 %v4867, %v4863
        %v5296 = vpack.c.b16 %v4868, %v4864
        %v5297 = vpack.c.b16 %v4869, %v4865
        %v5298 = vpack.c.b16 %v4870, %v4866
        %v5299 = vpack.c.b16 %v4875, %v4871
        %v5300 = vpack.c.b16 %v4876, %v4872
        %v5301 = vpack.c.b16 %v4877, %v4873
        %v5302 = vpack.c.b16 %v4878, %v4874
        %v5303 = vpack.c.b16 %v4883, %v4879
        %v5304 = vpack.c.b16 %v4884, %v4880
        %v5305 = vpack.c.b16 %v4885, %v4881
        %v5306 = vpack.c.b16 %v4886, %v4882
        %v5307 = vpack.c.b16 %v4891, %v4887
        %v5308 = vpack.c.b16 %v4892, %v4888
        %v5309 = vpack.c.b16 %v4893, %v4889
        %v5310 = vpack.c.b16 %v4894, %v4890
        %v5311 = vpack.c.b16 %v4899, %v4895
        %v5312 = vpack.c.b16 %v4900, %v4896
        %v5313 = vpack.c.b16 %v4901, %v4897
        %v5314 = vpack.c.b16 %v4902, %v4898
        %v5315 = vpack.c.b16 %v4907, %v4903
        %v5316 = vpack.c.b16 %v4908, %v4904
        %v5317 = vpack.c.b16 %v4909, %v4905
        %v5318 = vpack.c.b16 %v4910, %v4906
        %v5319 = vpack.c.b16 %v4915, %v4911
        %v5320 = vpack.c.b16 %v4916, %v4912
        %v5321 = vpack.c.b16 %v4917, %v4913
        %v5322 = vpack.c.b16 %v4918, %v4914
        %v5323 = vpack.c.b16 %v4923, %v4919
        %v5324 = vpack.c.b16 %v4924, %v4920
        %v5325 = vpack.c.b16 %v4925, %v4921
        %v5326 = vpack.c.b16 %v4926, %v4922
        %v5327 = vpack.c.b16 %v4931, %v4927
        %v5328 = vpack.c.b16 %v4932, %v4928
        %v5329 = vpack.c.b16 %v4933, %v4929
        %v5330 = vpack.c.b16 %v4934, %v4930
        %v5331 = vpack.c.b16 %v4939, %v4935
        %v5332 = vpack.c.b16 %v4940, %v4936
        %v5333 = vpack.c.b16 %v4941, %v4937
        %v5334 = vpack.c.b16 %v4942, %v4938
        %v5335 = vpack.c.b16 %v4947, %v4943
        %v5336 = vpack.c.b16 %v4948, %v4944
        %v5337 = vpack.c.b16 %v4949, %v4945
        %v5338 = vpack.c.b16 %v4950, %v4946
        %v5339 = vpack.c.b16 %v4955, %v4951
        %v5340 = vpack.c.b16 %v4956, %v4952
        %v5341 = vpack.c.b16 %v4957, %v4953
        %v5342 = vpack.c.b16 %v4958, %v4954
        %5727 = vmatprep.subr.bf16.mxu0 %v4960
        %5728 = vmatpush1.bf16.msra.mxu0 %v4959
        %5729 = vmatprep.subr.bf16.mxu0 %v4964
        %5730 = vmatpush1.bf16.msra.mxu0 %v4963
        %5731 = vmatprep.subr.bf16.mxu0 %v4968
        %5732 = vmatpush1.bf16.msra.mxu0 %v4967
        %5733 = vmatprep.subr.bf16.mxu0 %v4972
        %5734 = vmatpush1.bf16.msra.mxu0 %v4971
        %5735 = vmatprep.subr.bf16.mxu0 %v4976
        %5736 = vmatpush1.bf16.msra.mxu0 %v4975
        %5737 = vmatprep.subr.bf16.mxu0 %v4980
        %5738 = vmatpush1.bf16.msra.mxu0 %v4979
        %5739 = vmatprep.subr.bf16.mxu0 %v4984
        %5740 = vmatpush1.bf16.msra.mxu0 %v4983
        %5741 = vmatprep.subr.bf16.mxu0 %v4988
        %5742 = vmatpush1.bf16.msra.mxu0 %v4987
        %5743 = vmatprep.subr.bf16.mxu0 %v4992
        %5744 = vmatpush1.bf16.msra.mxu0 %v4991
        %5745 = vmatprep.subr.bf16.mxu0 %v4996
        %5746 = vmatpush1.bf16.msra.mxu0 %v4995
        %5747 = vmatprep.subr.bf16.mxu0 %v5000
        %5748 = vmatpush1.bf16.msra.mxu0 %v4999
        %5749 = vmatprep.subr.bf16.mxu0 %v5004
        %5750 = vmatpush1.bf16.msra.mxu0 %v5003
        %5751 = vmatprep.subr.bf16.mxu0 %v5008
        %5752 = vmatpush1.bf16.msra.mxu0 %v5007
        %5753 = vmatprep.subr.bf16.mxu0 %v5012
        %5754 = vmatpush1.bf16.msra.mxu0 %v5011
        %5755 = vmatprep.subr.bf16.mxu0 %v5016
        %5756 = vmatpush1.bf16.msra.mxu0 %v5015
        %5757 = vmatprep.subr.bf16.mxu0 %v5020
        %5758 = vmatpush1.bf16.msra.mxu0 %v5019
        %5759 = vmatprep.mubr.bf16.mxu0 %v3412
        %5760 = vmatmul.mubr.bf16.gmra.mrb[0].mxu0 %v3411
        %v5761 = vpop.f32.mrb[0].mxu0
        %v5762 = vadd.f32 0.0, %v5761
        %v5763 = vpop.f32.mrb[0].mxu0
        %v5764 = vadd.f32 0.0, %v5763
        %v5765 = vpop.f32.mrb[0].mxu0
        %v5766 = vadd.f32 0.0, %v5765
        %v5767 = vpop.f32.mrb[0].mxu0
        %v5768 = vadd.f32 0.0, %v5767
        %5769 = vdwg.mxu0
        %5770 = vmatprep.subr.bf16.mxu0 %v5024
        %5771 = vmatpush1.bf16.msra.mxu0 %v5023
        %5772 = vmatprep.subr.bf16.mxu0 %v5028
        %5773 = vmatpush1.bf16.msra.mxu0 %v5027
        %5774 = vmatprep.subr.bf16.mxu0 %v5032
        %5775 = vmatpush1.bf16.msra.mxu0 %v5031
        %5776 = vmatprep.subr.bf16.mxu0 %v5036
        %5777 = vmatpush1.bf16.msra.mxu0 %v5035
        %5778 = vmatprep.subr.bf16.mxu0 %v5040
        %5779 = vmatpush1.bf16.msra.mxu0 %v5039
        %5780 = vmatprep.subr.bf16.mxu0 %v5044
        %5781 = vmatpush1.bf16.msra.mxu0 %v5043
        %5782 = vmatprep.subr.bf16.mxu0 %v5048
        %5783 = vmatpush1.bf16.msra.mxu0 %v5047
        %5784 = vmatprep.subr.bf16.mxu0 %v5052
        %5785 = vmatpush1.bf16.msra.mxu0 %v5051
        %5786 = vmatprep.subr.bf16.mxu0 %v5056
        %5787 = vmatpush1.bf16.msra.mxu0 %v5055
        %5788 = vmatprep.subr.bf16.mxu0 %v5060
        %5789 = vmatpush1.bf16.msra.mxu0 %v5059
        %5790 = vmatprep.subr.bf16.mxu0 %v5064
        %5791 = vmatpush1.bf16.msra.mxu0 %v5063
        %5792 = vmatprep.subr.bf16.mxu0 %v5068
        %5793 = vmatpush1.bf16.msra.mxu0 %v5067
        %5794 = vmatprep.subr.bf16.mxu0 %v5072
        %5795 = vmatpush1.bf16.msra.mxu0 %v5071
        %5796 = vmatprep.subr.bf16.mxu0 %v5076
        %5797 = vmatpush1.bf16.msra.mxu0 %v5075
        %5798 = vmatprep.subr.bf16.mxu0 %v5080
        %5799 = vmatpush1.bf16.msra.mxu0 %v5079
        %5800 = vmatprep.subr.bf16.mxu0 %v5084
        %5801 = vmatpush1.bf16.msra.mxu0 %v5083
        %5802 = vmatprep.mubr.bf16.mxu0 %v3414
        %5803 = vmatmul.mubr.bf16.gmra.mrb[0].mxu0 %v3413
        %v5804 = vpop.f32.mrb[0].mxu0
        %v5805 = vadd.f32 %v5762, %v5804
        %v5806 = vpop.f32.mrb[0].mxu0
        %v5807 = vadd.f32 %v5764, %v5806
        %v5808 = vpop.f32.mrb[0].mxu0
        %v5809 = vadd.f32 %v5766, %v5808
        %v5810 = vpop.f32.mrb[0].mxu0
        %v5811 = vadd.f32 %v5768, %v5810
        %5812 = vdwg.mxu0
        %5813 = vmatprep.subr.bf16.mxu0 %v5088
        %5814 = vmatpush1.bf16.msra.mxu0 %v5087
        %5815 = vmatprep.subr.bf16.mxu0 %v5092
        %5816 = vmatpush1.bf16.msra.mxu0 %v5091
        %5817 = vmatprep.subr.bf16.mxu0 %v5096
        %5818 = vmatpush1.bf16.msra.mxu0 %v5095
        %5819 = vmatprep.subr.bf16.mxu0 %v5100
        %5820 = vmatpush1.bf16.msra.mxu0 %v5099
        %5821 = vmatprep.subr.bf16.mxu0 %v5104
        %5822 = vmatpush1.bf16.msra.mxu0 %v5103
        %5823 = vmatprep.subr.bf16.mxu0 %v5108
        %5824 = vmatpush1.bf16.msra.mxu0 %v5107
        %5825 = vmatprep.subr.bf16.mxu0 %v5112
        %5826 = vmatpush1.bf16.msra.mxu0 %v5111
        %5827 = vmatprep.subr.bf16.mxu0 %v5116
        %5828 = vmatpush1.bf16.msra.mxu0 %v5115
        %5829 = vmatprep.subr.bf16.mxu0 %v5120
        %5830 = vmatpush1.bf16.msra.mxu0 %v5119
        %5831 = vmatprep.subr.bf16.mxu0 %v5124
        %5832 = vmatpush1.bf16.msra.mxu0 %v5123
        %5833 = vmatprep.subr.bf16.mxu0 %v5128
        %5834 = vmatpush1.bf16.msra.mxu0 %v5127
        %5835 = vmatprep.subr.bf16.mxu0 %v5132
        %5836 = vmatpush1.bf16.msra.mxu0 %v5131
        %5837 = vmatprep.subr.bf16.mxu0 %v5136
        %5838 = vmatpush1.bf16.msra.mxu0 %v5135
        %5839 = vmatprep.subr.bf16.mxu0 %v5140
        %5840 = vmatpush1.bf16.msra.mxu0 %v5139
        %5841 = vmatprep.subr.bf16.mxu0 %v5144
        %5842 = vmatpush1.bf16.msra.mxu0 %v5143
        %5843 = vmatprep.subr.bf16.mxu0 %v5148
        %5844 = vmatpush1.bf16.msra.mxu0 %v5147
        %5845 = vmatprep.mubr.bf16.mxu0 %v3416
        %5846 = vmatmul.mubr.bf16.gmra.mrb[0].mxu0 %v3415
        %v5847 = vpop.f32.mrb[0].mxu0
        %v5848 = vadd.f32 %v5805, %v5847
        %v5849 = vpop.f32.mrb[0].mxu0
        %v5850 = vadd.f32 %v5807, %v5849
        %v5851 = vpop.f32.mrb[0].mxu0
        %v5852 = vadd.f32 %v5809, %v5851
        %v5853 = vpop.f32.mrb[0].mxu0
        %v5854 = vadd.f32 %v5811, %v5853
        %5855 = vdwg.mxu0
        %5856 = vmatprep.subr.bf16.mxu0 %v5152
        %5857 = vmatpush1.bf16.msra.mxu0 %v5151
        %5858 = vmatprep.subr.bf16.mxu0 %v5156
        %5859 = vmatpush1.bf16.msra.mxu0 %v5155
        %5860 = vmatprep.subr.bf16.mxu0 %v5160
        %5861 = vmatpush1.bf16.msra.mxu0 %v5159
        %5862 = vmatprep.subr.bf16.mxu0 %v5164
        %5863 = vmatpush1.bf16.msra.mxu0 %v5163
        %5864 = vmatprep.subr.bf16.mxu0 %v5168
        %5865 = vmatpush1.bf16.msra.mxu0 %v5167
        %5866 = vmatprep.subr.bf16.mxu0 %v5172
        %5867 = vmatpush1.bf16.msra.mxu0 %v5171
        %5868 = vmatprep.subr.bf16.mxu0 %v5176
        %5869 = vmatpush1.bf16.msra.mxu0 %v5175
        %5870 = vmatprep.subr.bf16.mxu0 %v5180
        %5871 = vmatpush1.bf16.msra.mxu0 %v5179
        %5872 = vmatprep.subr.bf16.mxu0 %v5184
        %5873 = vmatpush1.bf16.msra.mxu0 %v5183
        %5874 = vmatprep.subr.bf16.mxu0 %v5188
        %5875 = vmatpush1.bf16.msra.mxu0 %v5187
        %5876 = vmatprep.subr.bf16.mxu0 %v5192
        %5877 = vmatpush1.bf16.msra.mxu0 %v5191
        %5878 = vmatprep.subr.bf16.mxu0 %v5196
        %5879 = vmatpush1.bf16.msra.mxu0 %v5195
        %5880 = vmatprep.subr.bf16.mxu0 %v5200
        %5881 = vmatpush1.bf16.msra.mxu0 %v5199
        %5882 = vmatprep.subr.bf16.mxu0 %v5204
        %5883 = vmatpush1.bf16.msra.mxu0 %v5203
        %5884 = vmatprep.subr.bf16.mxu0 %v5208
        %5885 = vmatpush1.bf16.msra.mxu0 %v5207
        %5886 = vmatprep.subr.bf16.mxu0 %v5212
        %5887 = vmatpush1.bf16.msra.mxu0 %v5211
        %5888 = vmatprep.mubr.bf16.mxu0 %v3418
        %5889 = vmatmul.mubr.bf16.gmra.mrb[0].mxu0 %v3417
        %v5890 = vpop.f32.mrb[0].mxu0
        %v5891 = vadd.f32 %v5848, %v5890
        %v5892 = vpop.f32.mrb[0].mxu0
        %v5893 = vadd.f32 %v5850, %v5892
        %v5894 = vpop.f32.mrb[0].mxu0
        %v5895 = vadd.f32 %v5852, %v5894
        %v5896 = vpop.f32.mrb[0].mxu0
        %v5897 = vadd.f32 %v5854, %v5896
        %5898 = vdwg.mxu0
        %5899 = vmatprep.subr.bf16.mxu0 %v5216
        %5900 = vmatpush1.bf16.msra.mxu0 %v5215
        %5901 = vmatprep.subr.bf16.mxu0 %v5220
        %5902 = vmatpush1.bf16.msra.mxu0 %v5219
        %5903 = vmatprep.subr.bf16.mxu0 %v5224
        %5904 = vmatpush1.bf16.msra.mxu0 %v5223
        %5905 = vmatprep.subr.bf16.mxu0 %v5228
        %5906 = vmatpush1.bf16.msra.mxu0 %v5227
        %5907 = vmatprep.subr.bf16.mxu0 %v5232
        %5908 = vmatpush1.bf16.msra.mxu0 %v5231
        %5909 = vmatprep.subr.bf16.mxu0 %v5236
        %5910 = vmatpush1.bf16.msra.mxu0 %v5235
        %5911 = vmatprep.subr.bf16.mxu0 %v5240
        %5912 = vmatpush1.bf16.msra.mxu0 %v5239
        %5913 = vmatprep.subr.bf16.mxu0 %v5244
        %5914 = vmatpush1.bf16.msra.mxu0 %v5243
        %5915 = vmatprep.subr.bf16.mxu0 %v5248
        %5916 = vmatpush1.bf16.msra.mxu0 %v5247
        %5917 = vmatprep.subr.bf16.mxu0 %v5252
        %5918 = vmatpush1.bf16.msra.mxu0 %v5251
        %5919 = vmatprep.subr.bf16.mxu0 %v5256
        %5920 = vmatpush1.bf16.msra.mxu0 %v5255
        %5921 = vmatprep.subr.bf16.mxu0 %v5260
        %5922 = vmatpush1.bf16.msra.mxu0 %v5259
        %5923 = vmatprep.subr.bf16.mxu0 %v5264
        %5924 = vmatpush1.bf16.msra.mxu0 %v5263
        %5925 = vmatprep.subr.bf16.mxu0 %v5268
        %5926 = vmatpush1.bf16.msra.mxu0 %v5267
        %5927 = vmatprep.subr.bf16.mxu0 %v5272
        %5928 = vmatpush1.bf16.msra.mxu0 %v5271
        %5929 = vmatprep.subr.bf16.mxu0 %v5276
        %5930 = vmatpush1.bf16.msra.mxu0 %v5275
        %5931 = vmatprep.mubr.bf16.mxu0 %v3420
        %5932 = vmatmul.mubr.bf16.gmra.mrb[0].mxu0 %v3419
        %v5933 = vpop.f32.mrb[0].mxu0
        %v5934 = vadd.f32 %v5891, %v5933
        %v5935 = vpop.f32.mrb[0].mxu0
        %v5936 = vadd.f32 %v5893, %v5935
        %v5937 = vpop.f32.mrb[0].mxu0
        %v5938 = vadd.f32 %v5895, %v5937
        %v5939 = vpop.f32.mrb[0].mxu0
        %v5940 = vadd.f32 %v5897, %v5939
        %5941 = vdwg.mxu0
        %5942 = vmatprep.subr.bf16.mxu0 %v5280
        %5943 = vmatpush1.bf16.msra.mxu0 %v5279
        %5944 = vmatprep.subr.bf16.mxu0 %v5284
        %5945 = vmatpush1.bf16.msra.mxu0 %v5283
        %5946 = vmatprep.subr.bf16.mxu0 %v5288
        %5947 = vmatpush1.bf16.msra.mxu0 %v5287
        %5948 = vmatprep.subr.bf16.mxu0 %v5292
        %5949 = vmatpush1.bf16.msra.mxu0 %v5291
        %5950 = vmatprep.subr.bf16.mxu0 %v5296
        %5951 = vmatpush1.bf16.msra.mxu0 %v5295
        %5952 = vmatprep.subr.bf16.mxu0 %v5300
        %5953 = vmatpush1.bf16.msra.mxu0 %v5299
        %5954 = vmatprep.subr.bf16.mxu0 %v5304
        %5955 = vmatpush1.bf16.msra.mxu0 %v5303
        %5956 = vmatprep.subr.bf16.mxu0 %v5308
        %5957 = vmatpush1.bf16.msra.mxu0 %v5307
        %5958 = vmatprep.subr.bf16.mxu0 %v5312
        %5959 = vmatpush1.bf16.msra.mxu0 %v5311
        %5960 = vmatprep.subr.bf16.mxu0 %v5316
        %5961 = vmatpush1.bf16.msra.mxu0 %v5315
        %5962 = vmatprep.subr.bf16.mxu0 %v5320
        %5963 = vmatpush1.bf16.msra.mxu0 %v5319
        %5964 = vmatprep.subr.bf16.mxu0 %v5324
        %5965 = vmatpush1.bf16.msra.mxu0 %v5323
        %5966 = vmatprep.subr.bf16.mxu0 %v5328
        %5967 = vmatpush1.bf16.msra.mxu0 %v5327
        %5968 = vmatprep.subr.bf16.mxu0 %v5332
        %5969 = vmatpush1.bf16.msra.mxu0 %v5331
        %5970 = vmatprep.subr.bf16.mxu0 %v5336
        %5971 = vmatpush1.bf16.msra.mxu0 %v5335
        %5972 = vmatprep.subr.bf16.mxu0 %v5340
        %5973 = vmatpush1.bf16.msra.mxu0 %v5339
        %5974 = vmatprep.mubr.bf16.mxu0 %v3422
        %5975 = vmatmul.mubr.bf16.gmra.mrb[0].mxu0 %v3421
        %v5976 = vpop.f32.mrb[0].mxu0
        %v5977 = vadd.f32 %v5934, %v5976
        %v5978 = vpop.f32.mrb[0].mxu0
        %v5979 = vadd.f32 %v5936, %v5978
        %v5980 = vpop.f32.mrb[0].mxu0
        %v5981 = vadd.f32 %v5938, %v5980
        %v5982 = vpop.f32.mrb[0].mxu0
        %v5983 = vadd.f32 %v5940, %v5982
        %5984 = vdwg.mxu0
        %5985 = vmatprep.subr.bf16.mxu0 %v4962
        %5986 = vmatpush1.bf16.msra.mxu0 %v4961
        %5987 = vmatprep.subr.bf16.mxu0 %v4966
        %5988 = vmatpush1.bf16.msra.mxu0 %v4965
        %5989 = vmatprep.subr.bf16.mxu0 %v4970
        %5990 = vmatpush1.bf16.msra.mxu0 %v4969
        %5991 = vmatprep.subr.bf16.mxu0 %v4974
        %5992 = vmatpush1.bf16.msra.mxu0 %v4973
        %5993 = vmatprep.subr.bf16.mxu0 %v4978
        %5994 = vmatpush1.bf16.msra.mxu0 %v4977
        %5995 = vmatprep.subr.bf16.mxu0 %v4982
        %5996 = vmatpush1.bf16.msra.mxu0 %v4981
        %5997 = vmatprep.subr.bf16.mxu0 %v4986
        %5998 = vmatpush1.bf16.msra.mxu0 %v4985
        %5999 = vmatprep.subr.bf16.mxu0 %v4990
        %6000 = vmatpush1.bf16.msra.mxu0 %v4989
        %6001 = vmatprep.subr.bf16.mxu0 %v4994
        %6002 = vmatpush1.bf16.msra.mxu0 %v4993
        %6003 = vmatprep.subr.bf16.mxu0 %v4998
        %6004 = vmatpush1.bf16.msra.mxu0 %v4997
        %6005 = vmatprep.subr.bf16.mxu0 %v5002
        %6006 = vmatpush1.bf16.msra.mxu0 %v5001
        %6007 = vmatprep.subr.bf16.mxu0 %v5006
        %6008 = vmatpush1.bf16.msra.mxu0 %v5005
        %6009 = vmatprep.subr.bf16.mxu0 %v5010
        %6010 = vmatpush1.bf16.msra.mxu0 %v5009
        %6011 = vmatprep.subr.bf16.mxu0 %v5014
        %6012 = vmatpush1.bf16.msra.mxu0 %v5013
        %6013 = vmatprep.subr.bf16.mxu0 %v5018
        %6014 = vmatpush1.bf16.msra.mxu0 %v5017
        %6015 = vmatprep.subr.bf16.mxu0 %v5022
        %6016 = vmatpush1.bf16.msra.mxu0 %v5021
        %6017 = vmatprep.mubr.bf16.mxu0 %v3412
        %6018 = vmatmul.mubr.bf16.gmra.mrb[0].mxu0 %v3411
        %v6019 = vpop.f32.mrb[0].mxu0
        %v6020 = vadd.f32 0.0, %v6019
        %v6021 = vpop.f32.mrb[0].mxu0
        %v6022 = vadd.f32 0.0, %v6021
        %v6023 = vpop.f32.mrb[0].mxu0
        %v6024 = vadd.f32 0.0, %v6023
        %v6025 = vpop.f32.mrb[0].mxu0
        %v6026 = vadd.f32 0.0, %v6025
        %6027 = vdwg.mxu0
        %6028 = vmatprep.subr.bf16.mxu0 %v5026
        %6029 = vmatpush1.bf16.msra.mxu0 %v5025
        %6030 = vmatprep.subr.bf16.mxu0 %v5030
        %6031 = vmatpush1.bf16.msra.mxu0 %v5029
        %6032 = vmatprep.subr.bf16.mxu0 %v5034
        %6033 = vmatpush1.bf16.msra.mxu0 %v5033
        %6034 = vmatprep.subr.bf16.mxu0 %v5038
        %6035 = vmatpush1.bf16.msra.mxu0 %v5037
        %6036 = vmatprep.subr.bf16.mxu0 %v5042
        %6037 = vmatpush1.bf16.msra.mxu0 %v5041
        %6038 = vmatprep.subr.bf16.mxu0 %v5046
        %6039 = vmatpush1.bf16.msra.mxu0 %v5045
        %6040 = vmatprep.subr.bf16.mxu0 %v5050
        %6041 = vmatpush1.bf16.msra.mxu0 %v5049
        %6042 = vmatprep.subr.bf16.mxu0 %v5054
        %6043 = vmatpush1.bf16.msra.mxu0 %v5053
        %6044 = vmatprep.subr.bf16.mxu0 %v5058
        %6045 = vmatpush1.bf16.msra.mxu0 %v5057
        %6046 = vmatprep.subr.bf16.mxu0 %v5062
        %6047 = vmatpush1.bf16.msra.mxu0 %v5061
        %6048 = vmatprep.subr.bf16.mxu0 %v5066
        %6049 = vmatpush1.bf16.msra.mxu0 %v5065
        %6050 = vmatprep.subr.bf16.mxu0 %v5070
        %6051 = vmatpush1.bf16.msra.mxu0 %v5069
        %6052 = vmatprep.subr.bf16.mxu0 %v5074
        %6053 = vmatpush1.bf16.msra.mxu0 %v5073
        %6054 = vmatprep.subr.bf16.mxu0 %v5078
        %6055 = vmatpush1.bf16.msra.mxu0 %v5077
        %6056 = vmatprep.subr.bf16.mxu0 %v5082
        %6057 = vmatpush1.bf16.msra.mxu0 %v5081
        %6058 = vmatprep.subr.bf16.mxu0 %v5086
        %6059 = vmatpush1.bf16.msra.mxu0 %v5085
        %6060 = vmatprep.mubr.bf16.mxu0 %v3414
        %6061 = vmatmul.mubr.bf16.gmra.mrb[0].mxu0 %v3413
        %v6062 = vpop.f32.mrb[0].mxu0
        %v6063 = vadd.f32 %v6020, %v6062
        %v6064 = vpop.f32.mrb[0].mxu0
        %v6065 = vadd.f32 %v6022, %v6064
        %v6066 = vpop.f32.mrb[0].mxu0
        %v6067 = vadd.f32 %v6024, %v6066
        %v6068 = vpop.f32.mrb[0].mxu0
        %v6069 = vadd.f32 %v6026, %v6068
        %6070 = vdwg.mxu0
        %6071 = vmatprep.subr.bf16.mxu0 %v5090
        %6072 = vmatpush1.bf16.msra.mxu0 %v5089
        %6073 = vmatprep.subr.bf16.mxu0 %v5094
        %6074 = vmatpush1.bf16.msra.mxu0 %v5093
        %6075 = vmatprep.subr.bf16.mxu0 %v5098
        %6076 = vmatpush1.bf16.msra.mxu0 %v5097
        %6077 = vmatprep.subr.bf16.mxu0 %v5102
        %6078 = vmatpush1.bf16.msra.mxu0 %v5101
        %6079 = vmatprep.subr.bf16.mxu0 %v5106
        %6080 = vmatpush1.bf16.msra.mxu0 %v5105
        %6081 = vmatprep.subr.bf16.mxu0 %v5110
        %6082 = vmatpush1.bf16.msra.mxu0 %v5109
        %6083 = vmatprep.subr.bf16.mxu0 %v5114
        %6084 = vmatpush1.bf16.msra.mxu0 %v5113
        %6085 = vmatprep.subr.bf16.mxu0 %v5118
        %6086 = vmatpush1.bf16.msra.mxu0 %v5117
        %6087 = vmatprep.subr.bf16.mxu0 %v5122
        %6088 = vmatpush1.bf16.msra.mxu0 %v5121
        %6089 = vmatprep.subr.bf16.mxu0 %v5126
        %6090 = vmatpush1.bf16.msra.mxu0 %v5125
        %6091 = vmatprep.subr.bf16.mxu0 %v5130
        %6092 = vmatpush1.bf16.msra.mxu0 %v5129
        %6093 = vmatprep.subr.bf16.mxu0 %v5134
        %6094 = vmatpush1.bf16.msra.mxu0 %v5133
        %6095 = vmatprep.subr.bf16.mxu0 %v5138
        %6096 = vmatpush1.bf16.msra.mxu0 %v5137
        %6097 = vmatprep.subr.bf16.mxu0 %v5142
        %6098 = vmatpush1.bf16.msra.mxu0 %v5141
        %6099 = vmatprep.subr.bf16.mxu0 %v5146
        %6100 = vmatpush1.bf16.msra.mxu0 %v5145
        %6101 = vmatprep.subr.bf16.mxu0 %v5150
        %6102 = vmatpush1.bf16.msra.mxu0 %v5149
        %6103 = vmatprep.mubr.bf16.mxu0 %v3416
        %6104 = vmatmul.mubr.bf16.gmra.mrb[0].mxu0 %v3415
        %v6105 = vpop.f32.mrb[0].mxu0
        %v6106 = vadd.f32 %v6063, %v6105
        %v6107 = vpop.f32.mrb[0].mxu0
        %v6108 = vadd.f32 %v6065, %v6107
        %v6109 = vpop.f32.mrb[0].mxu0
        %v6110 = vadd.f32 %v6067, %v6109
        %v6111 = vpop.f32.mrb[0].mxu0
        %v6112 = vadd.f32 %v6069, %v6111
        %6113 = vdwg.mxu0
        %6114 = vmatprep.subr.bf16.mxu0 %v5154
        %6115 = vmatpush1.bf16.msra.mxu0 %v5153
        %6116 = vmatprep.subr.bf16.mxu0 %v5158
        %6117 = vmatpush1.bf16.msra.mxu0 %v5157
        %6118 = vmatprep.subr.bf16.mxu0 %v5162
        %6119 = vmatpush1.bf16.msra.mxu0 %v5161
        %6120 = vmatprep.subr.bf16.mxu0 %v5166
        %6121 = vmatpush1.bf16.msra.mxu0 %v5165
        %6122 = vmatprep.subr.bf16.mxu0 %v5170
        %6123 = vmatpush1.bf16.msra.mxu0 %v5169
        %6124 = vmatprep.subr.bf16.mxu0 %v5174
        %6125 = vmatpush1.bf16.msra.mxu0 %v5173
        %6126 = vmatprep.subr.bf16.mxu0 %v5178
        %6127 = vmatpush1.bf16.msra.mxu0 %v5177
        %6128 = vmatprep.subr.bf16.mxu0 %v5182
        %6129 = vmatpush1.bf16.msra.mxu0 %v5181
        %6130 = vmatprep.subr.bf16.mxu0 %v5186
        %6131 = vmatpush1.bf16.msra.mxu0 %v5185
        %6132 = vmatprep.subr.bf16.mxu0 %v5190
        %6133 = vmatpush1.bf16.msra.mxu0 %v5189
        %6134 = vmatprep.subr.bf16.mxu0 %v5194
        %6135 = vmatpush1.bf16.msra.mxu0 %v5193
        %6136 = vmatprep.subr.bf16.mxu0 %v5198
        %6137 = vmatpush1.bf16.msra.mxu0 %v5197
        %6138 = vmatprep.subr.bf16.mxu0 %v5202
        %6139 = vmatpush1.bf16.msra.mxu0 %v5201
        %6140 = vmatprep.subr.bf16.mxu0 %v5206
        %6141 = vmatpush1.bf16.msra.mxu0 %v5205
        %6142 = vmatprep.subr.bf16.mxu0 %v5210
        %6143 = vmatpush1.bf16.msra.mxu0 %v5209
        %6144 = vmatprep.subr.bf16.mxu0 %v5214
        %6145 = vmatpush1.bf16.msra.mxu0 %v5213
        %6146 = vmatprep.mubr.bf16.mxu0 %v3418
        %6147 = vmatmul.mubr.bf16.gmra.mrb[0].mxu0 %v3417
        %v6148 = vpop.f32.mrb[0].mxu0
        %v6149 = vadd.f32 %v6106, %v6148
        %v6150 = vpop.f32.mrb[0].mxu0
        %v6151 = vadd.f32 %v6108, %v6150
        %v6152 = vpop.f32.mrb[0].mxu0
        %v6153 = vadd.f32 %v6110, %v6152
        %v6154 = vpop.f32.mrb[0].mxu0
        %v6155 = vadd.f32 %v6112, %v6154
        %6156 = vdwg.mxu0
        %6157 = vmatprep.subr.bf16.mxu0 %v5218
        %6158 = vmatpush1.bf16.msra.mxu0 %v5217
        %6159 = vmatprep.subr.bf16.mxu0 %v5222
        %6160 = vmatpush1.bf16.msra.mxu0 %v5221
        %6161 = vmatprep.subr.bf16.mxu0 %v5226
        %6162 = vmatpush1.bf16.msra.mxu0 %v5225
        %6163 = vmatprep.subr.bf16.mxu0 %v5230
        %6164 = vmatpush1.bf16.msra.mxu0 %v5229
        %6165 = vmatprep.subr.bf16.mxu0 %v5234
        %6166 = vmatpush1.bf16.msra.mxu0 %v5233
        %6167 = vmatprep.subr.bf16.mxu0 %v5238
        %6168 = vmatpush1.bf16.msra.mxu0 %v5237
        %6169 = vmatprep.subr.bf16.mxu0 %v5242
        %6170 = vmatpush1.bf16.msra.mxu0 %v5241
        %6171 = vmatprep.subr.bf16.mxu0 %v5246
        %6172 = vmatpush1.bf16.msra.mxu0 %v5245
        %6173 = vmatprep.subr.bf16.mxu0 %v5250
        %6174 = vmatpush1.bf16.msra.mxu0 %v5249
        %6175 = vmatprep.subr.bf16.mxu0 %v5254
        %6176 = vmatpush1.bf16.msra.mxu0 %v5253
        %6177 = vmatprep.subr.bf16.mxu0 %v5258
        %6178 = vmatpush1.bf16.msra.mxu0 %v5257
        %6179 = vmatprep.subr.bf16.mxu0 %v5262
        %6180 = vmatpush1.bf16.msra.mxu0 %v5261
        %6181 = vmatprep.subr.bf16.mxu0 %v5266
        %6182 = vmatpush1.bf16.msra.mxu0 %v5265
        %6183 = vmatprep.subr.bf16.mxu0 %v5270
        %6184 = vmatpush1.bf16.msra.mxu0 %v5269
        %6185 = vmatprep.subr.bf16.mxu0 %v5274
        %6186 = vmatpush1.bf16.msra.mxu0 %v5273
        %6187 = vmatprep.subr.bf16.mxu0 %v5278
        %6188 = vmatpush1.bf16.msra.mxu0 %v5277
        %6189 = vmatprep.mubr.bf16.mxu0 %v3420
        %6190 = vmatmul.mubr.bf16.gmra.mrb[0].mxu0 %v3419
        %v6191 = vpop.f32.mrb[0].mxu0
        %v6192 = vadd.f32 %v6149, %v6191
        %v6193 = vpop.f32.mrb[0].mxu0
        %v6194 = vadd.f32 %v6151, %v6193
        %v6195 = vpop.f32.mrb[0].mxu0
        %v6196 = vadd.f32 %v6153, %v6195
        %v6197 = vpop.f32.mrb[0].mxu0
        %v6198 = vadd.f32 %v6155, %v6197
        %6199 = vdwg.mxu0
        %6200 = vmatprep.subr.bf16.mxu0 %v5282
        %6201 = vmatpush1.bf16.msra.mxu0 %v5281
        %6202 = vmatprep.subr.bf16.mxu0 %v5286
        %6203 = vmatpush1.bf16.msra.mxu0 %v5285
        %6204 = vmatprep.subr.bf16.mxu0 %v5290
        %6205 = vmatpush1.bf16.msra.mxu0 %v5289
        %6206 = vmatprep.subr.bf16.mxu0 %v5294
        %6207 = vmatpush1.bf16.msra.mxu0 %v5293
        %6208 = vmatprep.subr.bf16.mxu0 %v5298
        %6209 = vmatpush1.bf16.msra.mxu0 %v5297
        %6210 = vmatprep.subr.bf16.mxu0 %v5302
        %6211 = vmatpush1.bf16.msra.mxu0 %v5301
        %6212 = vmatprep.subr.bf16.mxu0 %v5306
        %6213 = vmatpush1.bf16.msra.mxu0 %v5305
        %6214 = vmatprep.subr.bf16.mxu0 %v5310
        %6215 = vmatpush1.bf16.msra.mxu0 %v5309
        %6216 = vmatprep.subr.bf16.mxu0 %v5314
        %6217 = vmatpush1.bf16.msra.mxu0 %v5313
        %6218 = vmatprep.subr.bf16.mxu0 %v5318
        %6219 = vmatpush1.bf16.msra.mxu0 %v5317
        %6220 = vmatprep.subr.bf16.mxu0 %v5322
        %6221 = vmatpush1.bf16.msra.mxu0 %v5321
        %6222 = vmatprep.subr.bf16.mxu0 %v5326
        %6223 = vmatpush1.bf16.msra.mxu0 %v5325
        %6224 = vmatprep.subr.bf16.mxu0 %v5330
        %6225 = vmatpush1.bf16.msra.mxu0 %v5329
        %6226 = vmatprep.subr.bf16.mxu0 %v5334
        %6227 = vmatpush1.bf16.msra.mxu0 %v5333
        %6228 = vmatprep.subr.bf16.mxu0 %v5338
        %6229 = vmatpush1.bf16.msra.mxu0 %v5337
        %6230 = vmatprep.subr.bf16.mxu0 %v5342
        %6231 = vmatpush1.bf16.msra.mxu0 %v5341
        %6232 = vmatprep.mubr.bf16.mxu0 %v3422
        %6233 = vmatmul.mubr.bf16.gmra.mrb[0].mxu0 %v3421
        %v6234 = vpop.f32.mrb[0].mxu0
        %v6235 = vadd.f32 %v6192, %v6234
        %v6236 = vpop.f32.mrb[0].mxu0
        %v6237 = vadd.f32 %v6194, %v6236
        %v6238 = vpop.f32.mrb[0].mxu0
        %v6239 = vadd.f32 %v6196, %v6238
        %v6240 = vpop.f32.mrb[0].mxu0
        %v6241 = vadd.f32 %v6198, %v6240
        %6242 = vdwg.mxu0
        %v6243 = vld [vmem:[#allocation11] sm:$0xf]
        %v6245 = vlaneseq
        %v6246 = vshrl.u32 %v6245, 7
        %v6247 = vsub.s32 0, %v6246
        %v6248 = vrot.slane %v6243, %v6247
        %v6249 = vlaneseq
        %v6250 = vshrl.u32 %v6249, 7
        %v6251 = vsub.s32 1, %v6250
        %v6252 = vrot.slane %v6243, %v6251
        %v6253 = vlaneseq
        %v6254 = vshrl.u32 %v6253, 7
        %v6255 = vsub.s32 2, %v6254
        %v6256 = vrot.slane %v6243, %v6255
        %v6257 = vlaneseq
        %v6258 = vshrl.u32 %v6257, 7
        %v6259 = vsub.s32 3, %v6258
        %v6260 = vrot.slane %v6243, %v6259
        %v6265 = vmul.f32 %v5977, %v6248
        %v6266 = vmul.f32 %v5979, %v6252
        %v6267 = vmul.f32 %v6235, %v6256
        %v6268 = vmul.f32 %v6237, %v6260
        %v6269 = vmul.f32 %v5981, %v6248
        %v6270 = vmul.f32 %v5983, %v6252
        %v6271 = vmul.f32 %v6239, %v6256
        %v6272 = vmul.f32 %v6241, %v6260
        %v6273 = vld [vmem:[#allocation13] sm:$0xf]
        %v6275 = vlaneseq
        %v6276 = vshrl.u32 %v6275, 7
        %v6277 = vsub.s32 0, %v6276
        %v6278 = vrot.slane %v6273, %v6277
        %v6279 = vlaneseq
        %v6280 = vshrl.u32 %v6279, 7
        %v6281 = vsub.s32 1, %v6280
        %v6282 = vrot.slane %v6273, %v6281
        %v6283 = vlaneseq
        %v6284 = vshrl.u32 %v6283, 7
        %v6285 = vsub.s32 2, %v6284
        %v6286 = vrot.slane %v6273, %v6285
        %v6287 = vlaneseq
        %v6288 = vshrl.u32 %v6287, 7
        %v6289 = vsub.s32 3, %v6288
        %v6290 = vrot.slane %v6273, %v6289
        %v6295 = vadd.f32 %v6265, %v6278
        %v6296 = vadd.f32 %v6266, %v6282
        %v6297 = vadd.f32 %v6267, %v6286
        %v6298 = vadd.f32 %v6268, %v6290
        %v6299 = vadd.f32 %v6269, %v6278
        %v6300 = vadd.f32 %v6270, %v6282
        %v6301 = vadd.f32 %v6271, %v6286
        %v6302 = vadd.f32 %v6272, %v6290
        %v6303 = vadd.f32 %v6295, %v376
        %v6304 = vadd.f32 %v6296, %v377
        %v6305 = vadd.f32 %v6297, %v378
        %v6306 = vadd.f32 %v6298, %v379
        %v6307 = vadd.f32 %v6299, %v380
        %v6308 = vadd.f32 %v6300, %v381
        %v6309 = vadd.f32 %v6301, %v382
        %v6310 = vadd.f32 %v6302, %v383
        %v6311 = vmax.f32 %v6303, 0.0
        %v6312 = vmax.f32 %v6304, 0.0
        %v6313 = vmax.f32 %v6305, 0.0
        %v6314 = vmax.f32 %v6306, 0.0
        %v6315 = vmax.f32 %v6307, 0.0
        %v6316 = vmax.f32 %v6308, 0.0
        %v6317 = vmax.f32 %v6309, 0.0
        %v6318 = vmax.f32 %v6310, 0.0
        %6319 = vst [vmem:[%s375] sm:$0xff] %v6311
        %6320 = vst [vmem:[%s375 + $0x8] sm:$0xff] %v6312
        %6321 = vst [vmem:[%s375 + $0x10] sm:$0xff] %v6313
        %6322 = vst [vmem:[%s375 + $0x18] sm:$0xff] %v6314
        %6323 = vst [vmem:[%s375 + $0x20] sm:$0xff] %v6315
        %6324 = vst [vmem:[%s375 + $0x28] sm:$0xff] %v6316
        %6325 = vst [vmem:[%s375 + $0x30] sm:$0xff] %v6317
        %6326 = vst [vmem:[%s375 + $0x38] sm:$0xff] %v6318
        %s6327 = sand.u32 %s187, 1
        %s6328 = scalar_lea.sflag [#allocation4], %s6327
        %s6329 = sand.u32 %s187, 1
        %s6330 = smul.addr %s6329, 64
        %s6331 = scalar_lea.vmem [#allocation14], %s6330
        // Predicated region
        $region77: #{resblock_lane_dense.1} parent=47 // pred_check
          %p6332 = pneg %p197
        $region78: #{resblock_lane_dense.1} parent=47 // pred_check_branch
          %6334 = sbr.rel (%p6332) target = $region80
        $region79: #{resblock_lane_dense.1} parent=47 // pred_region
          %s6336 = ssub.s32 1024, 1024
          %6337 = vsyncadd %s6328, %s6336
          %s6338 = smul.addr %s27, 8
          %s6339 = smul.addr %s6338, 128
          %s6340 = scalar_lea.hbm %s7, %s6339
          %s6341 = sshll.u32 %s6331, 4
          %s6342 = int_to_ptr.vmem [resolvable:$true] %s6341
          %6347 = dma.vmem_to_hbm [thread:$0]  %s6342, 1024, %s6340, %s6328, 512, 512, 32
        $region80: #{resblock_lane_dense.1} parent=47 // pred_fallthru
          _
      $region48: #{resblock_lane_dense.1} parent=5 // pred_fallthru
        _
      %p6348 = scmp.le.s32.totalorder 2, %s22
      // Predicated region
      $region81: #{resblock_lane_dense.1} parent=5 // pred_check
        %p6349 = pneg %p6348
      $region82: #{resblock_lane_dense.1} parent=5 // pred_check_branch
        %6351 = sbr.rel (%p6349) target = $region84
      $region83: #{resblock_lane_dense.1} parent=5 // pred_region
        %s6352 = ssub.s32 %s22, 2
        // Predicated region
        $region85: #{resblock_lane_dense.1} parent=83 // pred_check
          %p6353 = pneg %p203
        $region86: #{resblock_lane_dense.1} parent=83 // pred_check_branch
          %6355 = sbr.rel (%p6353) target = $region88
        $region87: #{resblock_lane_dense.1} parent=83 // pred_region
          %s6356 = sand.u32 %s188, 1
          %s6357 = scalar_lea.sflag [#allocation4], %s6356
          %s6358 = sand.u32 %s188, 1
          %s6359 = smul.addr %s6358, 64
          %s6360 = scalar_lea.vmem [#allocation14], %s6359
          %6361 = dma.done %s6357, 1024
        $region88: #{resblock_lane_dense.1} parent=83 // pred_fallthru
          _
      $region84: #{resblock_lane_dense.1} parent=5 // pred_fallthru
        _
    $region6: #{resblock_lane_dense.1} parent=1 // loop_footer
      %s26 = sadd.s32 1, %s22
    $region7: #{resblock_lane_dense.1} parent=1 // loop_footer_branch
      %21 = sbr.rel target = $region3
    $region8: #{resblock_lane_dense.1} parent=1 // loop_exit
      _
    %6362 = vsyncpa [#allocation3], 1
    %s6363 = scalar_lea.sflag [#allocation3], 1
    %6364 = vsyncpa %s6363, 1
    %6365 = vsyncpa [#allocation6], 1
    %6366 = vsyncpa [#allocation9], 1
    %6367 = vsyncpa [#allocation12], 1
    %6368 = vsyncpa [#allocation4], 1
    %s6369 = scalar_lea.sflag [#allocation4], 1
    %6370 = vsyncpa %s6369, 1

</llo_original>
